<compile_context>
chip_gen: v5e
topology: v5e:2x2
jax: 0.10.0
libtpu: 0.0.40
codegen_flags: <defaults>
</compile_context>

<pallas_src>
import functools

import numpy as np
import jax
import jax.numpy as jnp
from jax import lax
from jax.experimental import pallas as pl
from jax.experimental.pallas import tpu as pltpu


def _round_up(x, m):
    return (x + m - 1) // m * m


def _pick_vmem_limit():
    try:
        info = pltpu.get_tpu_info()
        cap = getattr(info, "vmem_capacity_bytes", None)
    except Exception:
        cap = None
    if cap is None:
        return 48 * 1024 * 1024
    if cap <= 64 * 1024 * 1024:        # v7x: 64 MiB / TC -> leave Mosaic headroom
        return 40 * 1024 * 1024
    return 96 * 1024 * 1024            # v5e / v6e: 128 MiB


_VMEM_LIMIT = _pick_vmem_limit()


# ---------------------------------------------------------------------------
# Tiled MXU matmul: bf16 operands, f32 accumulator scratch, K grid axis last,
# bf16 (or f32) output so downstream kernels read half the bytes.
# ---------------------------------------------------------------------------

def _matmul_kernel(a_ref, b_ref, o_ref, acc_ref):
    @pl.when(pl.program_id(2) == 0)
    def _():
        acc_ref[...] = jnp.zeros_like(acc_ref)

    acc_ref[...] += jnp.dot(a_ref[...], b_ref[...],
                            preferred_element_type=jnp.float32)

    @pl.when(pl.program_id(2) == pl.num_programs(2) - 1)
    def _():
        o_ref[...] = acc_ref[...].astype(o_ref.dtype)


@functools.lru_cache(maxsize=None)
def _matmul_call(M, K, N, tm, tk, tn, out_dtype):
    return pl.pallas_call(
        _matmul_kernel,
        out_shape=jax.ShapeDtypeStruct((M, N), out_dtype),
        grid_spec=pltpu.PrefetchScalarGridSpec(
            num_scalar_prefetch=0,
            grid=(pl.cdiv(M, tm), pl.cdiv(N, tn), pl.cdiv(K, tk)),
            in_specs=[pl.BlockSpec((tm, tk), lambda i, j, k: (i, k)),
                      pl.BlockSpec((tk, tn), lambda i, j, k: (k, j))],
            out_specs=pl.BlockSpec((tm, tn), lambda i, j, k: (i, j)),
            scratch_shapes=[pltpu.VMEM((tm, tn), jnp.float32)]),
        compiler_params=pltpu.CompilerParams(
            dimension_semantics=("parallel", "parallel", "arbitrary"),
            vmem_limit_bytes=_VMEM_LIMIT),
    )


def _pick_tk(K):
    if K <= 2048:
        return K
    for cand in range(2048, 0, -128):
        if K % cand == 0:
            return cand
    for cand in range(2048, 0, -8):
        if K % cand == 0:
            return cand
    return K


def _matmul_tiles(M, K, N):
    # M: prefer 256-wide tiles; partial last M block (if any) is masked by
    # Pallas, so activations are never padded / sliced in HBM.
    if M % 256 == 0:
        tm = 256
    elif M % 128 == 0:
        tm = 128
    elif M <= 1024:
        tm = M
    else:
        tm = 128
    tk = _pick_tk(K)
    # N is a multiple of 128 by construction (weight N lane-padded once).
    if N % 512 == 0:
        tn = 512
    elif N % 256 == 0:
        tn = 256
    elif N % 128 == 0:
        tn = 128
    else:
        tn = N
    return tm, tk, tn


def pallas_matmul(a, b, out_dtype=jnp.bfloat16):
    """(M, K) @ (K, N) -> (M, N); bf16 MXU operands, f32 accumulation."""
    M, K = a.shape
    K2, N = b.shape
    assert K == K2
    tm, tk, tn = _matmul_tiles(M, K, N)
    assert K % tk == 0  # partial K blocks would corrupt the reduction
    a = a.astype(jnp.bfloat16)   # no-op for the bf16 activation chain
    b = b.astype(jnp.bfloat16)
    return _matmul_call(M, K, N, tm, tk, tn, out_dtype)(a, b)


# ---------------------------------------------------------------------------
# Fused GroupNorm (+ optional residual add) (+ optional ReLU) kernel.
#
# grid = (B, 2, NT):  phase 0 accumulates Sum(x)/Sum(x^2) over HW tiles into a
# VMEM scratch (direct f32 reductions); phase 1 turns the group-averaged stats
# into per-channel (scale, shift) once and applies a single FMA per element,
# fused with the residual add / ReLU.  With NT == 1 the single HW block stays
# resident across both phases (no extra DMA).  The output can optionally be
# written transposed, i.e. in (B, C, HW) layout, folding the final
# NHWC->NCHW transpose into the kernel.
# ---------------------------------------------------------------------------

def _gn_kernel(*refs, eps, relu, has_res, nchw):
    if has_res:
        x_ref, r_ref, w_ref, b_ref, pm_ref, o_ref, sums, coefs = refs
    else:
        x_ref, w_ref, b_ref, pm_ref, o_ref, sums, coefs = refs
        r_ref = None

    p = pl.program_id(1)
    t = pl.program_id(2)

    @pl.when((p == 0) & (t == 0))
    def _():
        sums[...] = jnp.zeros_like(sums)

    x = x_ref[0].astype(jnp.float32)                      # (tHW, Cp)

    @pl.when(p == 0)
    def _():
        sums[0:1, :] += jnp.sum(x, axis=0, keepdims=True)
        sums[1:2, :] += jnp.sum(x * x, axis=0, keepdims=True)

    @pl.when((p == 1) & (t == 0))
    def _():
        # Tiny group-average product on already-reduced sums (rows 2..7 are 0).
        s = jnp.dot(sums[...], pm_ref[...], preferred_element_type=jnp.float32)
        mean = s[0:1, :]
        var = jnp.maximum(s[1:2, :] - mean * mean, 0.0)
        scale = lax.rsqrt(var + eps) * w_ref[...]
        coefs[0:1, :] = scale
        coefs[1:2, :] = b_ref[...] - mean * scale

    @pl.when(p == 1)
    def _():
        y = x * coefs[0:1, :] + coefs[1:2, :]             # one FMA per element
        if has_res:
            y = y + r_ref[0].astype(jnp.float32)
        if relu:
            y = jnp.maximum(y, 0.0)
        if nchw:
            o_ref[0] = y.T.astype(o_ref.dtype)            # (Cp, tHW)
        else:
            o_ref[0] = y.astype(o_ref.dtype)


@functools.lru_cache(maxsize=None)
def _gn_call(B, HW, Cp, NT, eps, relu, has_res, nchw, out_dtype):
    tHW = HW // NT
    kernel = functools.partial(_gn_kernel, eps=eps, relu=relu,
                               has_res=has_res, nchw=nchw)
    x_spec = pl.BlockSpec((1, tHW, Cp), lambda b, p, t: (b, t, 0))
    # Residual / output only advance during the normalize phase (p == 1), so
    # phase 0 never triggers redundant DMA or garbage writebacks.
    r_spec = pl.BlockSpec((1, tHW, Cp), lambda b, p, t: (b, t * p, 0))
    vec_spec = pl.BlockSpec((1, Cp), lambda b, p, t: (0, 0))
    mat_spec = pl.BlockSpec((Cp, Cp), lambda b, p, t: (0, 0))
    if nchw:
        out_spec = pl.BlockSpec((1, Cp, tHW), lambda b, p, t: (b, 0, t * p))
        out_shape = jax.ShapeDtypeStruct((B, Cp, HW), out_dtype)
    else:
        out_spec = pl.BlockSpec((1, tHW, Cp), lambda b, p, t: (b, t * p, 0))
        out_shape = jax.ShapeDtypeStruct((B, HW, Cp), out_dtype)
    in_specs = [x_spec] + ([r_spec] if has_res else []) \
               + [vec_spec, vec_spec, mat_spec]
    return pl.pallas_call(
        kernel,
        out_shape=out_shape,
        grid_spec=pltpu.PrefetchScalarGridSpec(
            num_scalar_prefetch=0,
            grid=(B, 2, NT),
            in_specs=in_specs,
            out_specs=out_spec,
            scratch_shapes=[pltpu.VMEM((8, Cp), jnp.float32),
                            pltpu.VMEM((2, Cp), jnp.float32)]),
        compiler_params=pltpu.CompilerParams(
            dimension_semantics=("parallel", "arbitrary", "arbitrary"),
            vmem_limit_bytes=_VMEM_LIMIT),
    )


@functools.lru_cache(maxsize=None)
def _group_avg_matrix(C, Cp, G, HW):
    """(Cp, Cp) matrix turning per-channel sums into per-channel group means.

    Padded channels (>= C) are all-zero activations; give them identity rows
    so their stats are harmless (mean 0, var 0 -> output stays 0)."""
    cg = C // G
    m = np.zeros((Cp, Cp), np.float32)
    for c in range(C):
        g0 = (c // cg) * cg
        m[g0:g0 + cg, c] = 1.0 / (cg * HW)
    for c in range(C, Cp):
        m[c, c] = 1.0 / HW
    return m


def _pick_nt(HW, Cp, lane_out):
    tile_bytes = 4 * 1024 * 1024           # f32-equivalent budget per HW tile
    if HW * Cp * 4 <= tile_bytes:
        return 1
    step = 128 if lane_out else 8
    for nt in range(2, HW + 1):
        thw = HW // nt
        if HW % nt == 0 and thw % step == 0 and thw * Cp * 4 <= tile_bytes:
            return nt
    return 1


def group_norm(x, gamma, beta, num_groups, eps, *, relu=False, residual=None,
               out_nchw=False, out_dtype=jnp.bfloat16):
    """GroupNorm over (B, HW, Cp) activations whose channels may be lane-padded."""
    B, HW, Cp = x.shape
    C = gamma.shape[0]
    assert C % num_groups == 0
    NT = _pick_nt(HW, Cp, lane_out=out_nchw)
    pmat = jnp.asarray(_group_avg_matrix(C, Cp, num_groups, HW))
    g = jnp.pad(gamma.astype(jnp.float32), (0, Cp - C),
                constant_values=1.0).reshape(1, Cp)
    b = jnp.pad(beta.astype(jnp.float32), (0, Cp - C),
                constant_values=0.0).reshape(1, Cp)
    args = [x] + ([residual] if residual is not None else []) + [g, b, pmat]
    call = _gn_call(B, HW, Cp, NT, float(eps), bool(relu),
                    residual is not None, bool(out_nchw), out_dtype)
    return call(*args)


# ---------------------------------------------------------------------------
# Weight-standardized convolutions lowered to the Pallas matmul.
# ---------------------------------------------------------------------------

def _std_weight(w):
    # StdConv2d: standardize over (cin, kh, kw) with biased variance.
    m = jnp.mean(w, axis=(1, 2, 3), keepdims=True)
    v = jnp.var(w, axis=(1, 2, 3), keepdims=True)
    return (w - m) / jnp.sqrt(v + 1e-5)


def _pad_weight(w2d, k_to, n_to):
    K, N = w2d.shape
    return jnp.pad(w2d, ((0, k_to - K), (0, n_to - N)))


def _im2col3x3(x_bhwc, stride):
    # TODO(synk): patch construction stays an XLA data-prep op (bf16, so half
    # the bytes); the in-kernel 9-tap haloed variant is not implemented.
    B, H, W, C = x_bhwc.shape
    xp = jnp.pad(x_bhwc, ((0, 0), (1, 1), (1, 1), (0, 0)))
    Ho = (H - 1) // stride + 1
    Wo = (W - 1) // stride + 1
    cols = [xp[:, i:i + stride * Ho:stride, j:j + stride * Wo:stride, :]
            for i in range(3) for j in range(3)]
    patches = jnp.concatenate(cols, axis=-1)            # (B, Ho, Wo, 9*C) bf16
    return patches.reshape(B * Ho * Wo, 9 * C), Ho, Wo


# ---------------------------------------------------------------------------
# PreActBottleneck forward.
# ---------------------------------------------------------------------------

@functools.partial(jax.jit, static_argnames=("stride",))
def preact_bottleneck_forward(params, x_nchw, stride=1):
    """x_nchw: (B, Cin, H, W) float32 -> (B, Cout, Ho, Wo) float32."""
    B, cin, H, W = x_nchw.shape
    cmid = params["conv1_w"].shape[0]
    cout = params["conv3_w"].shape[0]
    cmid_p = _round_up(cmid, 128)
    cout_p = _round_up(cout, 128)

    # TODO(synk): the leading NCHW->NHWC transpose remains an XLA op; the
    # trailing one is folded into the final GN kernel below.
    x = jnp.transpose(x_nchw, (0, 2, 3, 1)).astype(jnp.bfloat16)   # NHWC bf16

    Ho = (H - 1) // stride + 1
    Wo = (W - 1) // stride + 1

    # ---- main branch: conv1x1 -> GN+ReLU -> conv3x3(s) -> GN+ReLU -> conv1x1
    w1 = _pad_weight(_std_weight(params["conv1_w"])[:, :, 0, 0].T, cin, cmid_p)
    y = pallas_matmul(x.reshape(B * H * W, cin), w1).reshape(B, H * W, cmid_p)
    y = group_norm(y, params["gn1_w"], params["gn1_b"], 32, 1e-6, relu=True)

    patches, Ho, Wo = _im2col3x3(y.reshape(B, H, W, cmid_p), stride)
    w2 = jnp.transpose(_std_weight(params["conv2_w"]), (2, 3, 1, 0))  # kh,kw,ci,co
    w2 = jnp.pad(w2, ((0, 0), (0, 0),
                      (0, cmid_p - cmid), (0, cmid_p - cmid)))
    w2 = w2.reshape(9 * cmid_p, cmid_p)
    y = pallas_matmul(patches, w2).reshape(B, Ho * Wo, cmid_p)
    y = group_norm(y, params["gn2_w"], params["gn2_b"], 32, 1e-6, relu=True)

    w3 = _pad_weight(_std_weight(params["conv3_w"])[:, :, 0, 0].T, cmid_p, cout_p)
    y = pallas_matmul(y.reshape(B * Ho * Wo, cmid_p), w3).reshape(B, Ho * Wo, cout_p)

    # ---- residual branch
    if "down_w" in params:
        xs = x[:, ::stride, ::stride, :]                              # (B,Ho,Wo,cin)
        wd = _pad_weight(_std_weight(params["down_w"])[:, :, 0, 0].T, cin, cout_p)
        r = pallas_matmul(xs.reshape(B * Ho * Wo, cin), wd).reshape(B, Ho * Wo, cout_p)
        r = group_norm(r, params["gnp_w"], params["gnp_b"], cout, 1e-5, relu=False)
    else:
        assert cin == cout and stride == 1, "identity residual needs cin==cout, stride==1"
        r = x.reshape(B, H * W, cin)
        if cout_p != cout:
            r = jnp.pad(r, ((0, 0), (0, 0), (0, cout_p - cout)))

    # ---- gn3 + residual add + ReLU fused, output written directly in NCHW
    out = group_norm(y, params["gn3_w"], params["gn3_b"], 32, 1e-6, relu=True,
                     residual=r, out_nchw=True, out_dtype=jnp.float32)
    out = out[:, :cout, :].reshape(B, cout, Ho, Wo)
    return out


# ---------------------------------------------------------------------------
# Pure-JAX f32 reference (loose numerical sanity check; bf16 MXU operands).
# ---------------------------------------------------------------------------

def _ref_forward(params, x, stride):
    def conv(x, w, s, pad):
        return lax.conv_general_dilated(
            x, _std_weight(w), (s, s), [(pad, pad), (pad, pad)],
            dimension_numbers=("NCHW", "OIHW", "NCHW"))

    def gn(x, g, w, b, eps):
        B, C, H, W = x.shape
        xg = x.reshape(B, g, C // g, H, W)
        m = jnp.mean(xg, axis=(2, 3, 4), keepdims=True)
        v = jnp.var(xg, axis=(2, 3, 4), keepdims=True)
        xg = (xg - m) / jnp.sqrt(v + eps)
        return (xg.reshape(B, C, H, W) * w[None, :, None, None]
                + b[None, :, None, None])

    cout = params["conv3_w"].shape[0]
    y = jax.nn.relu(gn(conv(x, params["conv1_w"], 1, 0), 32,
                       params["gn1_w"], params["gn1_b"], 1e-6))
    y = jax.nn.relu(gn(conv(y, params["conv2_w"], stride, 1), 32,
                       params["gn2_w"], params["gn2_b"], 1e-6))
    y = gn(conv(y, params["conv3_w"], 1, 0), 32,
           params["gn3_w"], params["gn3_b"], 1e-6)
    if "down_w" in params:
        r = gn(conv(x, params["down_w"], stride, 0), cout,
               params["gnp_w"], params["gnp_b"], 1e-5)
    else:
        r = x
    return jax.nn.relu(r + y)


if __name__ == "__main__":
    key = jax.random.PRNGKey(0)
    ks = jax.random.split(key, 10)

    # Small shapes consistent with the module: GroupNorm(32, cmid) needs
    # cmid % 32 == 0; stride=2 + cin != cout exercises the downsample branch.
    B, cin, H, W = 2, 64, 16, 16
    cout, cmid, stride = 128, 32, 2

    def conv_w(k, co, ci, kh, kw):
        return jax.random.normal(k, (co, ci, kh, kw), jnp.float32) / np.sqrt(ci * kh * kw)

    def affine(kw_, kb_, c):
        return (1.0 + 0.1 * jax.random.normal(kw_, (c,), jnp.float32),
                0.1 * jax.random.normal(kb_, (c,), jnp.float32))

    gn1_w, gn1_b = affine(ks[4], ks[5], cmid)
    gn2_w, gn2_b = affine(ks[6], ks[7], cmid)
    gn3_w, gn3_b = affine(ks[8], ks[9], cout)

    params = dict(
        conv1_w=conv_w(ks[0], cmid, cin, 1, 1), gn1_w=gn1_w, gn1_b=gn1_b,
        conv2_w=conv_w(ks[1], cmid, cmid, 3, 3), gn2_w=gn2_w, gn2_b=gn2_b,
        conv3_w=conv_w(ks[2], cout, cmid, 1, 1), gn3_w=gn3_w, gn3_b=gn3_b,
        down_w=conv_w(ks[3], cout, cin, 1, 1),
        gnp_w=jnp.ones((cout,), jnp.float32),
        gnp_b=jnp.zeros((cout,), jnp.float32),
    )
    x = jax.random.normal(key, (B, cin, H, W), jnp.float32)

    out = preact_bottleneck_forward(params, x, stride=stride)
    out = jax.block_until_ready(out)
    assert out.shape == (B, cout, H // stride, W // stride), out.shape
    assert bool(jnp.all(jnp.isfinite(out)))

    # Loose check vs f32 reference (bf16 MXU operands & bf16 inter-kernel
    # activations => generous tolerance).
    ref = _ref_forward(params, x, stride)
    max_err = float(jnp.max(jnp.abs(out - ref)))
    assert max_err < 0.35, max_err

    print("KERNEL_OK")
</pallas_src>

<mosaic_0001>
module attributes {stable_mosaic.version = 11 : i64} {
  func.func @_matmul_kernel(%arg0: i32, %arg1: i32, %arg2: i32, %arg3: memref<256x64xbf16, #tpu.memory_space<vmem>>, %arg4: memref<64x128xbf16, #tpu.memory_space<vmem>>, %arg5: memref<256x128xbf16, #tpu.memory_space<vmem>>, %arg6: memref<256x128xf32, #tpu.memory_space<vmem>>) attributes {dimension_semantics = [#tpu.dimension_semantics<parallel>, #tpu.dimension_semantics<parallel>, #tpu.dimension_semantics<arbitrary>], iteration_bounds = array<i64: 2, 1, 1>, scalar_prefetch = 0 : i64, scratch_operands = 1 : i64, tpu.core_type = #tpu.core_type<tc>, window_params = [{transform_indices = @transform_0, window_bounds = array<i64: 256, 64>}, {transform_indices = @transform_1, window_bounds = array<i64: 64, 128>}, {transform_indices = @transform_2, window_bounds = array<i64: 256, 128>}]} {
    %c0_i32 = arith.constant 0 : i32
    %0 = arith.cmpi eq, %arg2, %c0_i32 : i32
    %1 = arith.extui %0 : i1 to i32
    %c0_i32_0 = arith.constant 0 : i32
    %2 = arith.cmpi ne, %1, %c0_i32_0 : i32
    scf.if %2 {
      %cst_10 = arith.constant 0.000000e+00 : f32
      %12 = vector.broadcast %cst_10 : f32 to vector<256x128xf32>
      %c0_11 = arith.constant 0 : index
      %c0_12 = arith.constant 0 : index
      %13 = vector.load %arg6[%c0_11, %c0_12] : memref<256x128xf32, #tpu.memory_space<vmem>>, vector<256x128xf32>
      tpu.vector_store %arg6[%c0_11, %c0_12], %12 {strides = array<i32>} : memref<256x128xf32, #tpu.memory_space<vmem>>, vector<256x128xf32>,
    } else {
    }
    %c0 = arith.constant 0 : index
    %c0_1 = arith.constant 0 : index
    %3 = vector.load %arg6[%c0, %c0_1] : memref<256x128xf32, #tpu.memory_space<vmem>>, vector<256x128xf32>
    %c0_2 = arith.constant 0 : index
    %c0_3 = arith.constant 0 : index
    %4 = vector.load %arg3[%c0_2, %c0_3] : memref<256x64xbf16, #tpu.memory_space<vmem>>, vector<256x64xbf16>
    %c0_4 = arith.constant 0 : index
    %c0_5 = arith.constant 0 : index
    %5 = vector.load %arg4[%c0_4, %c0_5] : memref<64x128xbf16, #tpu.memory_space<vmem>>, vector<64x128xbf16>
    %cst = arith.constant dense<0.000000e+00> : vector<256x128xf32>
    %6 = tpu.matmul %4, %5, %cst {dimension_numbers = #tpu.dot_dimension_numbers<[1], [0], [0], [1], [0, 0, 1, 1], [], []>} : vector<256x64xbf16>, vector<64x128xbf16>, vector<256x128xf32> -> vector<256x128xf32>
    %7 = arith.addf %3, %6 : vector<256x128xf32>
    %c0_6 = arith.constant 0 : index
    %c0_7 = arith.constant 0 : index
    %8 = vector.load %arg6[%c0_6, %c0_7] : memref<256x128xf32, #tpu.memory_space<vmem>>, vector<256x128xf32>
    tpu.vector_store %arg6[%c0_6, %c0_7], %7 {strides = array<i32>} : memref<256x128xf32, #tpu.memory_space<vmem>>, vector<256x128xf32>,
    %c0_i32_8 = arith.constant 0 : i32
    %9 = arith.cmpi eq, %arg2, %c0_i32_8 : i32
    %10 = arith.extui %9 : i1 to i32
    %c0_i32_9 = arith.constant 0 : i32
    %11 = arith.cmpi ne, %10, %c0_i32_9 : i32
    scf.if %11 {
      %c0_10 = arith.constant 0 : index
      %c0_11 = arith.constant 0 : index
      %12 = vector.load %arg6[%c0_10, %c0_11] : memref<256x128xf32, #tpu.memory_space<vmem>>, vector<256x128xf32>
      %13 = arith.truncf %12 : vector<256x128xf32> to vector<256x128xbf16>
      %c0_12 = arith.constant 0 : index
      %c0_13 = arith.constant 0 : index
      %14 = vector.load %arg5[%c0_12, %c0_13] : memref<256x128xbf16, #tpu.memory_space<vmem>>, vector<256x128xbf16>
      tpu.vector_store %arg5[%c0_12, %c0_13], %13 {strides = array<i32>} : memref<256x128xbf16, #tpu.memory_space<vmem>>, vector<256x128xbf16>,
    } else {
    }
    return
  }
  func.func @transform_0(%arg0: i32, %arg1: i32, %arg2: i32) -> (i32, i32) {
    %c0_i32 = arith.constant 0 : i32
    return %arg0, %arg2 : i32, i32
  }
  func.func @transform_1(%arg0: i32, %arg1: i32, %arg2: i32) -> (i32, i32) {
    %c0_i32 = arith.constant 0 : i32
    return %arg2, %arg1 : i32, i32
  }
  func.func @transform_2(%arg0: i32, %arg1: i32, %arg2: i32) -> (i32, i32) {
    %c0_i32 = arith.constant 0 : i32
    return %arg0, %arg1 : i32, i32
  }
}

module attributes {stable_mosaic.version = 11 : i64} {
  func.func @_gn_kernel(%arg0: i32, %arg1: i32, %arg2: i32, %arg3: memref<1x256x128xbf16, #tpu.memory_space<vmem>>, %arg4: memref<1x128xf32, #tpu.memory_space<vmem>>, %arg5: memref<1x128xf32, #tpu.memory_space<vmem>>, %arg6: memref<128x128xf32, #tpu.memory_space<vmem>>, %arg7: memref<1x256x128xbf16, #tpu.memory_space<vmem>>, %arg8: memref<8x128xf32, #tpu.memory_space<vmem>>, %arg9: memref<2x128xf32, #tpu.memory_space<vmem>>) attributes {dimension_semantics = [#tpu.dimension_semantics<parallel>, #tpu.dimension_semantics<arbitrary>, #tpu.dimension_semantics<arbitrary>], iteration_bounds = array<i64: 2, 2, 1>, scalar_prefetch = 0 : i64, scratch_operands = 2 : i64, tpu.core_type = #tpu.core_type<tc>, window_params = [{transform_indices = @transform_0, window_bounds = array<i64: 1, 256, 128>}, {pipeline_mode = #tpu.pipeline_mode<synchronous>, transform_indices = @transform_1, window_bounds = array<i64: 1, 128>}, {pipeline_mode = #tpu.pipeline_mode<synchronous>, transform_indices = @transform_2, window_bounds = array<i64: 1, 128>}, {pipeline_mode = #tpu.pipeline_mode<synchronous>, transform_indices = @transform_3, window_bounds = array<i64: 128, 128>}, {transform_indices = @transform_4, window_bounds = array<i64: 1, 256, 128>}]} {
    %c0_i32 = arith.constant 0 : i32
    %0 = arith.cmpi eq, %arg1, %c0_i32 : i32
    %c0_i32_0 = arith.constant 0 : i32
    %1 = arith.cmpi eq, %arg2, %c0_i32_0 : i32
    %2 = arith.andi %0, %1 : i1
    %3 = arith.extui %2 : i1 to i32
    %c0_i32_1 = arith.constant 0 : i32
    %4 = arith.cmpi ne, %3, %c0_i32_1 : i32
    scf.if %4 {
      %cst = arith.constant 0.000000e+00 : f32
      %19 = vector.broadcast %cst : f32 to vector<8x128xf32>
      %c0_10 = arith.constant 0 : index
      %c0_11 = arith.constant 0 : index
      %20 = vector.load %arg8[%c0_10, %c0_11] : memref<8x128xf32, #tpu.memory_space<vmem>>, vector<8x128xf32>
      tpu.vector_store %arg8[%c0_10, %c0_11], %19 {strides = array<i32>} : memref<8x128xf32, #tpu.memory_space<vmem>>, vector<8x128xf32>,
    } else {
    }
    %c0 = arith.constant 0 : index
    %c0_2 = arith.constant 0 : index
    %c0_3 = arith.constant 0 : index
    %5 = vector.load %arg3[%c0, %c0_2, %c0_3] : memref<1x256x128xbf16, #tpu.memory_space<vmem>>, vector<1x256x128xbf16>
    %6 = vector.shape_cast %5 : vector<1x256x128xbf16> to vector<256x128xbf16>
    %7 = arith.extf %6 : vector<256x128xbf16> to vector<256x128xf32>
    %c0_i32_4 = arith.constant 0 : i32
    %8 = arith.cmpi eq, %arg1, %c0_i32_4 : i32
    %9 = arith.extui %8 : i1 to i32
    %c0_i32_5 = arith.constant 0 : i32
    %10 = arith.cmpi ne, %9, %c0_i32_5 : i32
    scf.if %10 {
      %c0_10 = arith.constant 0 : index
      %c0_11 = arith.constant 0 : index
      %19 = vector.load %arg8[%c0_10, %c0_11] : memref<8x128xf32, #tpu.memory_space<vmem>>, vector<1x128xf32>
      %cst = arith.constant dense<0.000000e+00> : vector<128xf32>
      %20 = vector.multi_reduction <add>, %7, %cst [0] : vector<256x128xf32> to vector<128xf32>
      %21 = vector.shape_cast %20 : vector<128xf32> to vector<1x128xf32>
      %22 = arith.addf %19, %21 : vector<1x128xf32>
      %c0_12 = arith.constant 0 : index
      %c0_13 = arith.constant 0 : index
      %23 = vector.load %arg8[%c0_12, %c0_13] : memref<8x128xf32, #tpu.memory_space<vmem>>, vector<1x128xf32>
      tpu.vector_store %arg8[%c0_12, %c0_13], %22 {strides = array<i32>} : memref<8x128xf32, #tpu.memory_space<vmem>>, vector<1x128xf32>,
      %c1 = arith.constant 1 : index
      %c0_14 = arith.constant 0 : index
      %24 = vector.load %arg8[%c1, %c0_14] : memref<8x128xf32, #tpu.memory_space<vmem>>, vector<1x128xf32>
      %25 = arith.mulf %7, %7 : vector<256x128xf32>
      %cst_15 = arith.constant dense<0.000000e+00> : vector<128xf32>
      %26 = vector.multi_reduction <add>, %25, %cst_15 [0] : vector<256x128xf32> to vector<128xf32>
      %27 = vector.shape_cast %26 : vector<128xf32> to vector<1x128xf32>
      %28 = arith.addf %24, %27 : vector<1x128xf32>
      %c1_16 = arith.constant 1 : index
      %c0_17 = arith.constant 0 : index
      %29 = vector.load %arg8[%c1_16, %c0_17] : memref<8x128xf32, #tpu.memory_space<vmem>>, vector<1x128xf32>
      tpu.vector_store %arg8[%c1_16, %c0_17], %28 {strides = array<i32>} : memref<8x128xf32, #tpu.memory_space<vmem>>, vector<1x128xf32>,
    } else {
    }
    %c1_i32 = arith.constant 1 : i32
    %11 = arith.cmpi eq, %arg1, %c1_i32 : i32
    %c0_i32_6 = arith.constant 0 : i32
    %12 = arith.cmpi eq, %arg2, %c0_i32_6 : i32
    %13 = arith.andi %11, %12 : i1
    %14 = arith.extui %13 : i1 to i32
    %c0_i32_7 = arith.constant 0 : i32
    %15 = arith.cmpi ne, %14, %c0_i32_7 : i32
    scf.if %15 {
      %c0_10 = arith.constant 0 : index
      %c0_11 = arith.constant 0 : index
      %19 = vector.load %arg8[%c0_10, %c0_11] : memref<8x128xf32, #tpu.memory_space<vmem>>, vector<8x128xf32>
      %c0_12 = arith.constant 0 : index
      %c0_13 = arith.constant 0 : index
      %20 = vector.load %arg6[%c0_12, %c0_13] : memref<128x128xf32, #tpu.memory_space<vmem>>, vector<128x128xf32>
      %cst = arith.constant dense<0.000000e+00> : vector<8x128xf32>
      %21 = tpu.matmul %19, %20, %cst {dimension_numbers = #tpu.dot_dimension_numbers<[1], [0], [0], [1], [0, 0, 1, 1], [], []>} : vector<8x128xf32>, vector<128x128xf32>, vector<8x128xf32> -> vector<8x128xf32>
      %22 = vector.extract_strided_slice %21 {offsets = [0, 0], sizes = [1, 128], strides = [1, 1]} : vector<8x128xf32> to vector<1x128xf32>
      %23 = vector.extract_strided_slice %21 {offsets = [1, 0], sizes = [1, 128], strides = [1, 1]} : vector<8x128xf32> to vector<1x128xf32>
      %24 = arith.mulf %22, %22 : vector<1x128xf32>
      %25 = arith.subf %23, %24 : vector<1x128xf32>
      %cst_14 = arith.constant 0.000000e+00 : f32
      %26 = vector.broadcast %cst_14 : f32 to vector<1x128xf32>
      %27 = arith.maximumf %25, %26 : vector<1x128xf32>
      %cst_15 = arith.constant 9.99999997E-7 : f32
      %28 = vector.broadcast %cst_15 : f32 to vector<1x128xf32>
      %29 = arith.addf %27, %28 : vector<1x128xf32>
      %30 = math.rsqrt %29 : vector<1x128xf32>
      %c0_16 = arith.constant 0 : index
      %c0_17 = arith.constant 0 : index
      %31 = vector.load %arg4[%c0_16, %c0_17] : memref<1x128xf32, #tpu.memory_space<vmem>>, vector<1x128xf32>
      %32 = arith.mulf %30, %31 : vector<1x128xf32>
      %c0_18 = arith.constant 0 : index
      %c0_19 = arith.constant 0 : index
      %33 = vector.load %arg9[%c0_18, %c0_19] : memref<2x128xf32, #tpu.memory_space<vmem>>, vector<1x128xf32>
      tpu.vector_store %arg9[%c0_18, %c0_19], %32 {strides = array<i32>} : memref<2x128xf32, #tpu.memory_space<vmem>>, vector<1x128xf32>,
      %c0_20 = arith.constant 0 : index
      %c0_21 = arith.constant 0 : index
      %34 = vector.load %arg5[%c0_20, %c0_21] : memref<1x128xf32, #tpu.memory_space<vmem>>, vector<1x128xf32>
      %35 = arith.mulf %22, %32 : vector<1x128xf32>
      %36 = arith.subf %34, %35 : vector<1x128xf32>
      %c1 = arith.constant 1 : index
      %c0_22 = arith.constant 0 : index
      %37 = vector.load %arg9[%c1, %c0_22] : memref<2x128xf32, #tpu.memory_space<vmem>>, vector<1x128xf32>
      tpu.vector_store %arg9[%c1, %c0_22], %36 {strides = array<i32>} : memref<2x128xf32, #tpu.memory_space<vmem>>, vector<1x128xf32>,
    } else {
    }
    %c1_i32_8 = arith.constant 1 : i32
    %16 = arith.cmpi eq, %arg1, %c1_i32_8 : i32
    %17 = arith.extui %16 : i1 to i32
    %c0_i32_9 = arith.constant 0 : i32
    %18 = arith.cmpi ne, %17, %c0_i32_9 : i32
    scf.if %18 {
      %c0_10 = arith.constant 0 : index
      %c0_11 = arith.constant 0 : index
      %19 = vector.load %arg9[%c0_10, %c0_11] : memref<2x128xf32, #tpu.memory_space<vmem>>, vector<1x128xf32>
      %20 = vector.broadcast %19 : vector<1x128xf32> to vector<256x128xf32>
      %21 = arith.mulf %7, %20 : vector<256x128xf32>
      %c1 = arith.constant 1 : index
      %c0_12 = arith.constant 0 : index
      %22 = vector.load %arg9[%c1, %c0_12] : memref<2x128xf32, #tpu.memory_space<vmem>>, vector<1x128xf32>
      %23 = vector.broadcast %22 : vector<1x128xf32> to vector<256x128xf32>
      %24 = arith.addf %21, %23 : vector<256x128xf32>
      %cst = arith.constant 0.000000e+00 : f32
      %25 = vector.broadcast %cst : f32 to vector<256x128xf32>
      %26 = arith.maximumf %24, %25 : vector<256x128xf32>
      %27 = arith.truncf %26 : vector<256x128xf32> to vector<256x128xbf16>
      %c0_13 = arith.constant 0 : index
      %c0_14 = arith.constant 0 : index
      %c0_15 = arith.constant 0 : index
      %28 = vector.load %arg7[%c0_13, %c0_14, %c0_15] : memref<1x256x128xbf16, #tpu.memory_space<vmem>>, vector<1x256x128xbf16>
      %29 = vector.shape_cast %28 : vector<1x256x128xbf16> to vector<256x128xbf16>
      %30 = vector.shape_cast %27 : vector<256x128xbf16> to vector<1x256x128xbf16>
      tpu.vector_store %arg7[%c0_13, %c0_14, %c0_15], %30 {strides = array<i32>} : memref<1x256x128xbf16, #tpu.memory_space<vmem>>, vector<1x256x128xbf16>,
    } else {
    }
    return
  }
  func.func @transform_0(%arg0: i32, %arg1: i32, %arg2: i32) -> (i32, i32, i32) {
    %c0_i32 = arith.constant 0 : i32
    %c0_i32_0 = arith.constant 0 : i32
    return %arg0, %arg2, %c0_i32 : i32, i32, i32
  }
  func.func @transform_1(%arg0: i32, %arg1: i32, %arg2: i32) -> (i32, i32) {
    %c0_i32 = arith.constant 0 : i32
    %c0_i32_0 = arith.constant 0 : i32
    %c0_i32_1 = arith.constant 0 : i32
    return %c0_i32, %c0_i32_0 : i32, i32
  }
  func.func @transform_2(%arg0: i32, %arg1: i32, %arg2: i32) -> (i32, i32) {
    %c0_i32 = arith.constant 0 : i32
    %c0_i32_0 = arith.constant 0 : i32
    %c0_i32_1 = arith.constant 0 : i32
    return %c0_i32, %c0_i32_0 : i32, i32
  }
  func.func @transform_3(%arg0: i32, %arg1: i32, %arg2: i32) -> (i32, i32) {
    %c0_i32 = arith.constant 0 : i32
    %c0_i32_0 = arith.constant 0 : i32
    %c0_i32_1 = arith.constant 0 : i32
    return %c0_i32, %c0_i32_0 : i32, i32
  }
  func.func @transform_4(%arg0: i32, %arg1: i32, %arg2: i32) -> (i32, i32, i32) {
    %0 = arith.muli %arg2, %arg1 : i32
    %c0_i32 = arith.constant 0 : i32
    %c0_i32_0 = arith.constant 0 : i32
    return %arg0, %0, %c0_i32 : i32, i32, i32
  }
}

module attributes {stable_mosaic.version = 11 : i64} {
  func.func @_matmul_kernel(%arg0: i32, %arg1: i32, %arg2: i32, %arg3: memref<128x1152xbf16, #tpu.memory_space<vmem>>, %arg4: memref<1152x128xbf16, #tpu.memory_space<vmem>>, %arg5: memref<128x128xbf16, #tpu.memory_space<vmem>>, %arg6: memref<128x128xf32, #tpu.memory_space<vmem>>) attributes {dimension_semantics = [#tpu.dimension_semantics<parallel>, #tpu.dimension_semantics<parallel>, #tpu.dimension_semantics<arbitrary>], iteration_bounds = array<i64: 1, 1, 1>, scalar_prefetch = 0 : i64, scratch_operands = 1 : i64, tpu.core_type = #tpu.core_type<tc>, window_params = [{transform_indices = @transform_0, window_bounds = array<i64: 128, 1152>}, {transform_indices = @transform_1, window_bounds = array<i64: 1152, 128>}, {transform_indices = @transform_2, window_bounds = array<i64: 128, 128>}]} {
    %c0_i32 = arith.constant 0 : i32
    %0 = arith.cmpi eq, %arg2, %c0_i32 : i32
    %1 = arith.extui %0 : i1 to i32
    %c0_i32_0 = arith.constant 0 : i32
    %2 = arith.cmpi ne, %1, %c0_i32_0 : i32
    scf.if %2 {
      %cst_10 = arith.constant 0.000000e+00 : f32
      %12 = vector.broadcast %cst_10 : f32 to vector<128x128xf32>
      %c0_11 = arith.constant 0 : index
      %c0_12 = arith.constant 0 : index
      %13 = vector.load %arg6[%c0_11, %c0_12] : memref<128x128xf32, #tpu.memory_space<vmem>>, vector<128x128xf32>
      tpu.vector_store %arg6[%c0_11, %c0_12], %12 {strides = array<i32>} : memref<128x128xf32, #tpu.memory_space<vmem>>, vector<128x128xf32>,
    } else {
    }
    %c0 = arith.constant 0 : index
    %c0_1 = arith.constant 0 : index
    %3 = vector.load %arg6[%c0, %c0_1] : memref<128x128xf32, #tpu.memory_space<vmem>>, vector<128x128xf32>
    %c0_2 = arith.constant 0 : index
    %c0_3 = arith.constant 0 : index
    %4 = vector.load %arg3[%c0_2, %c0_3] : memref<128x1152xbf16, #tpu.memory_space<vmem>>, vector<128x1152xbf16>
    %c0_4 = arith.constant 0 : index
    %c0_5 = arith.constant 0 : index
    %5 = vector.load %arg4[%c0_4, %c0_5] : memref<1152x128xbf16, #tpu.memory_space<vmem>>, vector<1152x128xbf16>
    %cst = arith.constant dense<0.000000e+00> : vector<128x128xf32>
    %6 = tpu.matmul %4, %5, %cst {dimension_numbers = #tpu.dot_dimension_numbers<[1], [0], [0], [1], [0, 0, 1, 1], [], []>} : vector<128x1152xbf16>, vector<1152x128xbf16>, vector<128x128xf32> -> vector<128x128xf32>
    %7 = arith.addf %3, %6 : vector<128x128xf32>
    %c0_6 = arith.constant 0 : index
    %c0_7 = arith.constant 0 : index
    %8 = vector.load %arg6[%c0_6, %c0_7] : memref<128x128xf32, #tpu.memory_space<vmem>>, vector<128x128xf32>
    tpu.vector_store %arg6[%c0_6, %c0_7], %7 {strides = array<i32>} : memref<128x128xf32, #tpu.memory_space<vmem>>, vector<128x128xf32>,
    %c0_i32_8 = arith.constant 0 : i32
    %9 = arith.cmpi eq, %arg2, %c0_i32_8 : i32
    %10 = arith.extui %9 : i1 to i32
    %c0_i32_9 = arith.constant 0 : i32
    %11 = arith.cmpi ne, %10, %c0_i32_9 : i32
    scf.if %11 {
      %c0_10 = arith.constant 0 : index
      %c0_11 = arith.constant 0 : index
      %12 = vector.load %arg6[%c0_10, %c0_11] : memref<128x128xf32, #tpu.memory_space<vmem>>, vector<128x128xf32>
      %13 = arith.truncf %12 : vector<128x128xf32> to vector<128x128xbf16>
      %c0_12 = arith.constant 0 : index
      %c0_13 = arith.constant 0 : index
      %14 = vector.load %arg5[%c0_12, %c0_13] : memref<128x128xbf16, #tpu.memory_space<vmem>>, vector<128x128xbf16>
      tpu.vector_store %arg5[%c0_12, %c0_13], %13 {strides = array<i32>} : memref<128x128xbf16, #tpu.memory_space<vmem>>, vector<128x128xbf16>,
    } else {
    }
    return
  }
  func.func @transform_0(%arg0: i32, %arg1: i32, %arg2: i32) -> (i32, i32) {
    %c0_i32 = arith.constant 0 : i32
    return %arg0, %arg2 : i32, i32
  }
  func.func @transform_1(%arg0: i32, %arg1: i32, %arg2: i32) -> (i32, i32) {
    %c0_i32 = arith.constant 0 : i32
    return %arg2, %arg1 : i32, i32
  }
  func.func @transform_2(%arg0: i32, %arg1: i32, %arg2: i32) -> (i32, i32) {
    %c0_i32 = arith.constant 0 : i32
    return %arg0, %arg1 : i32, i32
  }
}

module attributes {stable_mosaic.version = 11 : i64} {
  func.func @_gn_kernel(%arg0: i32, %arg1: i32, %arg2: i32, %arg3: memref<1x64x128xbf16, #tpu.memory_space<vmem>>, %arg4: memref<1x128xf32, #tpu.memory_space<vmem>>, %arg5: memref<1x128xf32, #tpu.memory_space<vmem>>, %arg6: memref<128x128xf32, #tpu.memory_space<vmem>>, %arg7: memref<1x64x128xbf16, #tpu.memory_space<vmem>>, %arg8: memref<8x128xf32, #tpu.memory_space<vmem>>, %arg9: memref<2x128xf32, #tpu.memory_space<vmem>>) attributes {dimension_semantics = [#tpu.dimension_semantics<parallel>, #tpu.dimension_semantics<arbitrary>, #tpu.dimension_semantics<arbitrary>], iteration_bounds = array<i64: 2, 2, 1>, scalar_prefetch = 0 : i64, scratch_operands = 2 : i64, tpu.core_type = #tpu.core_type<tc>, window_params = [{transform_indices = @transform_0, window_bounds = array<i64: 1, 64, 128>}, {pipeline_mode = #tpu.pipeline_mode<synchronous>, transform_indices = @transform_1, window_bounds = array<i64: 1, 128>}, {pipeline_mode = #tpu.pipeline_mode<synchronous>, transform_indices = @transform_2, window_bounds = array<i64: 1, 128>}, {pipeline_mode = #tpu.pipeline_mode<synchronous>, transform_indices = @transform_3, window_bounds = array<i64: 128, 128>}, {transform_indices = @transform_4, window_bounds = array<i64: 1, 64, 128>}]} {
    %c0_i32 = arith.constant 0 : i32
    %0 = arith.cmpi eq, %arg1, %c0_i32 : i32
    %c0_i32_0 = arith.constant 0 : i32
    %1 = arith.cmpi eq, %arg2, %c0_i32_0 : i32
    %2 = arith.andi %0, %1 : i1
    %3 = arith.extui %2 : i1 to i32
    %c0_i32_1 = arith.constant 0 : i32
    %4 = arith.cmpi ne, %3, %c0_i32_1 : i32
    scf.if %4 {
      %cst = arith.constant 0.000000e+00 : f32
      %19 = vector.broadcast %cst : f32 to vector<8x128xf32>
      %c0_10 = arith.constant 0 : index
      %c0_11 = arith.constant 0 : index
      %20 = vector.load %arg8[%c0_10, %c0_11] : memref<8x128xf32, #tpu.memory_space<vmem>>, vector<8x128xf32>
      tpu.vector_store %arg8[%c0_10, %c0_11], %19 {strides = array<i32>} : memref<8x128xf32, #tpu.memory_space<vmem>>, vector<8x128xf32>,
    } else {
    }
    %c0 = arith.constant 0 : index
    %c0_2 = arith.constant 0 : index
    %c0_3 = arith.constant 0 : index
    %5 = vector.load %arg3[%c0, %c0_2, %c0_3] : memref<1x64x128xbf16, #tpu.memory_space<vmem>>, vector<1x64x128xbf16>
    %6 = vector.shape_cast %5 : vector<1x64x128xbf16> to vector<64x128xbf16>
    %7 = arith.extf %6 : vector<64x128xbf16> to vector<64x128xf32>
    %c0_i32_4 = arith.constant 0 : i32
    %8 = arith.cmpi eq, %arg1, %c0_i32_4 : i32
    %9 = arith.extui %8 : i1 to i32
    %c0_i32_5 = arith.constant 0 : i32
    %10 = arith.cmpi ne, %9, %c0_i32_5 : i32
    scf.if %10 {
      %c0_10 = arith.constant 0 : index
      %c0_11 = arith.constant 0 : index
      %19 = vector.load %arg8[%c0_10, %c0_11] : memref<8x128xf32, #tpu.memory_space<vmem>>, vector<1x128xf32>
      %cst = arith.constant dense<0.000000e+00> : vector<128xf32>
      %20 = vector.multi_reduction <add>, %7, %cst [0] : vector<64x128xf32> to vector<128xf32>
      %21 = vector.shape_cast %20 : vector<128xf32> to vector<1x128xf32>
      %22 = arith.addf %19, %21 : vector<1x128xf32>
      %c0_12 = arith.constant 0 : index
      %c0_13 = arith.constant 0 : index
      %23 = vector.load %arg8[%c0_12, %c0_13] : memref<8x128xf32, #tpu.memory_space<vmem>>, vector<1x128xf32>
      tpu.vector_store %arg8[%c0_12, %c0_13], %22 {strides = array<i32>} : memref<8x128xf32, #tpu.memory_space<vmem>>, vector<1x128xf32>,
      %c1 = arith.constant 1 : index
      %c0_14 = arith.constant 0 : index
      %24 = vector.load %arg8[%c1, %c0_14] : memref<8x128xf32, #tpu.memory_space<vmem>>, vector<1x128xf32>
      %25 = arith.mulf %7, %7 : vector<64x128xf32>
      %cst_15 = arith.constant dense<0.000000e+00> : vector<128xf32>
      %26 = vector.multi_reduction <add>, %25, %cst_15 [0] : vector<64x128xf32> to vector<128xf32>
      %27 = vector.shape_cast %26 : vector<128xf32> to vector<1x128xf32>
      %28 = arith.addf %24, %27 : vector<1x128xf32>
      %c1_16 = arith.constant 1 : index
      %c0_17 = arith.constant 0 : index
      %29 = vector.load %arg8[%c1_16, %c0_17] : memref<8x128xf32, #tpu.memory_space<vmem>>, vector<1x128xf32>
      tpu.vector_store %arg8[%c1_16, %c0_17], %28 {strides = array<i32>} : memref<8x128xf32, #tpu.memory_space<vmem>>, vector<1x128xf32>,
    } else {
    }
    %c1_i32 = arith.constant 1 : i32
    %11 = arith.cmpi eq, %arg1, %c1_i32 : i32
    %c0_i32_6 = arith.constant 0 : i32
    %12 = arith.cmpi eq, %arg2, %c0_i32_6 : i32
    %13 = arith.andi %11, %12 : i1
    %14 = arith.extui %13 : i1 to i32
    %c0_i32_7 = arith.constant 0 : i32
    %15 = arith.cmpi ne, %14, %c0_i32_7 : i32
    scf.if %15 {
      %c0_10 = arith.constant 0 : index
      %c0_11 = arith.constant 0 : index
      %19 = vector.load %arg8[%c0_10, %c0_11] : memref<8x128xf32, #tpu.memory_space<vmem>>, vector<8x128xf32>
      %c0_12 = arith.constant 0 : index
      %c0_13 = arith.constant 0 : index
      %20 = vector.load %arg6[%c0_12, %c0_13] : memref<128x128xf32, #tpu.memory_space<vmem>>, vector<128x128xf32>
      %cst = arith.constant dense<0.000000e+00> : vector<8x128xf32>
      %21 = tpu.matmul %19, %20, %cst {dimension_numbers = #tpu.dot_dimension_numbers<[1], [0], [0], [1], [0, 0, 1, 1], [], []>} : vector<8x128xf32>, vector<128x128xf32>, vector<8x128xf32> -> vector<8x128xf32>
      %22 = vector.extract_strided_slice %21 {offsets = [0, 0], sizes = [1, 128], strides = [1, 1]} : vector<8x128xf32> to vector<1x128xf32>
      %23 = vector.extract_strided_slice %21 {offsets = [1, 0], sizes = [1, 128], strides = [1, 1]} : vector<8x128xf32> to vector<1x128xf32>
      %24 = arith.mulf %22, %22 : vector<1x128xf32>
      %25 = arith.subf %23, %24 : vector<1x128xf32>
      %cst_14 = arith.constant 0.000000e+00 : f32
      %26 = vector.broadcast %cst_14 : f32 to vector<1x128xf32>
      %27 = arith.maximumf %25, %26 : vector<1x128xf32>
      %cst_15 = arith.constant 9.99999997E-7 : f32
      %28 = vector.broadcast %cst_15 : f32 to vector<1x128xf32>
      %29 = arith.addf %27, %28 : vector<1x128xf32>
      %30 = math.rsqrt %29 : vector<1x128xf32>
      %c0_16 = arith.constant 0 : index
      %c0_17 = arith.constant 0 : index
      %31 = vector.load %arg4[%c0_16, %c0_17] : memref<1x128xf32, #tpu.memory_space<vmem>>, vector<1x128xf32>
      %32 = arith.mulf %30, %31 : vector<1x128xf32>
      %c0_18 = arith.constant 0 : index
      %c0_19 = arith.constant 0 : index
      %33 = vector.load %arg9[%c0_18, %c0_19] : memref<2x128xf32, #tpu.memory_space<vmem>>, vector<1x128xf32>
      tpu.vector_store %arg9[%c0_18, %c0_19], %32 {strides = array<i32>} : memref<2x128xf32, #tpu.memory_space<vmem>>, vector<1x128xf32>,
      %c0_20 = arith.constant 0 : index
      %c0_21 = arith.constant 0 : index
      %34 = vector.load %arg5[%c0_20, %c0_21] : memref<1x128xf32, #tpu.memory_space<vmem>>, vector<1x128xf32>
      %35 = arith.mulf %22, %32 : vector<1x128xf32>
      %36 = arith.subf %34, %35 : vector<1x128xf32>
      %c1 = arith.constant 1 : index
      %c0_22 = arith.constant 0 : index
      %37 = vector.load %arg9[%c1, %c0_22] : memref<2x128xf32, #tpu.memory_space<vmem>>, vector<1x128xf32>
      tpu.vector_store %arg9[%c1, %c0_22], %36 {strides = array<i32>} : memref<2x128xf32, #tpu.memory_space<vmem>>, vector<1x128xf32>,
    } else {
    }
    %c1_i32_8 = arith.constant 1 : i32
    %16 = arith.cmpi eq, %arg1, %c1_i32_8 : i32
    %17 = arith.extui %16 : i1 to i32
    %c0_i32_9 = arith.constant 0 : i32
    %18 = arith.cmpi ne, %17, %c0_i32_9 : i32
    scf.if %18 {
      %c0_10 = arith.constant 0 : index
      %c0_11 = arith.constant 0 : index
      %19 = vector.load %arg9[%c0_10, %c0_11] : memref<2x128xf32, #tpu.memory_space<vmem>>, vector<1x128xf32>
      %20 = vector.broadcast %19 : vector<1x128xf32> to vector<64x128xf32>
      %21 = arith.mulf %7, %20 : vector<64x128xf32>
      %c1 = arith.constant 1 : index
      %c0_12 = arith.constant 0 : index
      %22 = vector.load %arg9[%c1, %c0_12] : memref<2x128xf32, #tpu.memory_space<vmem>>, vector<1x128xf32>
      %23 = vector.broadcast %22 : vector<1x128xf32> to vector<64x128xf32>
      %24 = arith.addf %21, %23 : vector<64x128xf32>
      %cst = arith.constant 0.000000e+00 : f32
      %25 = vector.broadcast %cst : f32 to vector<64x128xf32>
      %26 = arith.maximumf %24, %25 : vector<64x128xf32>
      %27 = arith.truncf %26 : vector<64x128xf32> to vector<64x128xbf16>
      %c0_13 = arith.constant 0 : index
      %c0_14 = arith.constant 0 : index
      %c0_15 = arith.constant 0 : index
      %28 = vector.load %arg7[%c0_13, %c0_14, %c0_15] : memref<1x64x128xbf16, #tpu.memory_space<vmem>>, vector<1x64x128xbf16>
      %29 = vector.shape_cast %28 : vector<1x64x128xbf16> to vector<64x128xbf16>
      %30 = vector.shape_cast %27 : vector<64x128xbf16> to vector<1x64x128xbf16>
      tpu.vector_store %arg7[%c0_13, %c0_14, %c0_15], %30 {strides = array<i32>} : memref<1x64x128xbf16, #tpu.memory_space<vmem>>, vector<1x64x128xbf16>,
    } else {
    }
    return
  }
  func.func @transform_0(%arg0: i32, %arg1: i32, %arg2: i32) -> (i32, i32, i32) {
    %c0_i32 = arith.constant 0 : i32
    %c0_i32_0 = arith.constant 0 : i32
    return %arg0, %arg2, %c0_i32 : i32, i32, i32
  }
  func.func @transform_1(%arg0: i32, %arg1: i32, %arg2: i32) -> (i32, i32) {
    %c0_i32 = arith.constant 0 : i32
    %c0_i32_0 = arith.constant 0 : i32
    %c0_i32_1 = arith.constant 0 : i32
    return %c0_i32, %c0_i32_0 : i32, i32
  }
  func.func @transform_2(%arg0: i32, %arg1: i32, %arg2: i32) -> (i32, i32) {
    %c0_i32 = arith.constant 0 : i32
    %c0_i32_0 = arith.constant 0 : i32
    %c0_i32_1 = arith.constant 0 : i32
    return %c0_i32, %c0_i32_0 : i32, i32
  }
  func.func @transform_3(%arg0: i32, %arg1: i32, %arg2: i32) -> (i32, i32) {
    %c0_i32 = arith.constant 0 : i32
    %c0_i32_0 = arith.constant 0 : i32
    %c0_i32_1 = arith.constant 0 : i32
    return %c0_i32, %c0_i32_0 : i32, i32
  }
  func.func @transform_4(%arg0: i32, %arg1: i32, %arg2: i32) -> (i32, i32, i32) {
    %0 = arith.muli %arg2, %arg1 : i32
    %c0_i32 = arith.constant 0 : i32
    %c0_i32_0 = arith.constant 0 : i32
    return %arg0, %0, %c0_i32 : i32, i32, i32
  }
}

module attributes {stable_mosaic.version = 11 : i64} {
  func.func @_matmul_kernel(%arg0: i32, %arg1: i32, %arg2: i32, %arg3: memref<128x128xbf16, #tpu.memory_space<vmem>>, %arg4: memref<128x128xbf16, #tpu.memory_space<vmem>>, %arg5: memref<128x128xbf16, #tpu.memory_space<vmem>>, %arg6: memref<128x128xf32, #tpu.memory_space<vmem>>) attributes {dimension_semantics = [#tpu.dimension_semantics<parallel>, #tpu.dimension_semantics<parallel>, #tpu.dimension_semantics<arbitrary>], iteration_bounds = array<i64: 1, 1, 1>, scalar_prefetch = 0 : i64, scratch_operands = 1 : i64, tpu.core_type = #tpu.core_type<tc>, window_params = [{transform_indices = @transform_0, window_bounds = array<i64: 128, 128>}, {transform_indices = @transform_1, window_bounds = array<i64: 128, 128>}, {transform_indices = @transform_2, window_bounds = array<i64: 128, 128>}]} {
    %c0_i32 = arith.constant 0 : i32
    %0 = arith.cmpi eq, %arg2, %c0_i32 : i32
    %1 = arith.extui %0 : i1 to i32
    %c0_i32_0 = arith.constant 0 : i32
    %2 = arith.cmpi ne, %1, %c0_i32_0 : i32
    scf.if %2 {
      %cst_10 = arith.constant 0.000000e+00 : f32
      %12 = vector.broadcast %cst_10 : f32 to vector<128x128xf32>
      %c0_11 = arith.constant 0 : index
      %c0_12 = arith.constant 0 : index
      %13 = vector.load %arg6[%c0_11, %c0_12] : memref<128x128xf32, #tpu.memory_space<vmem>>, vector<128x128xf32>
      tpu.vector_store %arg6[%c0_11, %c0_12], %12 {strides = array<i32>} : memref<128x128xf32, #tpu.memory_space<vmem>>, vector<128x128xf32>,
    } else {
    }
    %c0 = arith.constant 0 : index
    %c0_1 = arith.constant 0 : index
    %3 = vector.load %arg6[%c0, %c0_1] : memref<128x128xf32, #tpu.memory_space<vmem>>, vector<128x128xf32>
    %c0_2 = arith.constant 0 : index
    %c0_3 = arith.constant 0 : index
    %4 = vector.load %arg3[%c0_2, %c0_3] : memref<128x128xbf16, #tpu.memory_space<vmem>>, vector<128x128xbf16>
    %c0_4 = arith.constant 0 : index
    %c0_5 = arith.constant 0 : index
    %5 = vector.load %arg4[%c0_4, %c0_5] : memref<128x128xbf16, #tpu.memory_space<vmem>>, vector<128x128xbf16>
    %cst = arith.constant dense<0.000000e+00> : vector<128x128xf32>
    %6 = tpu.matmul %4, %5, %cst {dimension_numbers = #tpu.dot_dimension_numbers<[1], [0], [0], [1], [0, 0, 1, 1], [], []>} : vector<128x128xbf16>, vector<128x128xbf16>, vector<128x128xf32> -> vector<128x128xf32>
    %7 = arith.addf %3, %6 : vector<128x128xf32>
    %c0_6 = arith.constant 0 : index
    %c0_7 = arith.constant 0 : index
    %8 = vector.load %arg6[%c0_6, %c0_7] : memref<128x128xf32, #tpu.memory_space<vmem>>, vector<128x128xf32>
    tpu.vector_store %arg6[%c0_6, %c0_7], %7 {strides = array<i32>} : memref<128x128xf32, #tpu.memory_space<vmem>>, vector<128x128xf32>,
    %c0_i32_8 = arith.constant 0 : i32
    %9 = arith.cmpi eq, %arg2, %c0_i32_8 : i32
    %10 = arith.extui %9 : i1 to i32
    %c0_i32_9 = arith.constant 0 : i32
    %11 = arith.cmpi ne, %10, %c0_i32_9 : i32
    scf.if %11 {
      %c0_10 = arith.constant 0 : index
      %c0_11 = arith.constant 0 : index
      %12 = vector.load %arg6[%c0_10, %c0_11] : memref<128x128xf32, #tpu.memory_space<vmem>>, vector<128x128xf32>
      %13 = arith.truncf %12 : vector<128x128xf32> to vector<128x128xbf16>
      %c0_12 = arith.constant 0 : index
      %c0_13 = arith.constant 0 : index
      %14 = vector.load %arg5[%c0_12, %c0_13] : memref<128x128xbf16, #tpu.memory_space<vmem>>, vector<128x128xbf16>
      tpu.vector_store %arg5[%c0_12, %c0_13], %13 {strides = array<i32>} : memref<128x128xbf16, #tpu.memory_space<vmem>>, vector<128x128xbf16>,
    } else {
    }
    return
  }
  func.func @transform_0(%arg0: i32, %arg1: i32, %arg2: i32) -> (i32, i32) {
    %c0_i32 = arith.constant 0 : i32
    return %arg0, %arg2 : i32, i32
  }
  func.func @transform_1(%arg0: i32, %arg1: i32, %arg2: i32) -> (i32, i32) {
    %c0_i32 = arith.constant 0 : i32
    return %arg2, %arg1 : i32, i32
  }
  func.func @transform_2(%arg0: i32, %arg1: i32, %arg2: i32) -> (i32, i32) {
    %c0_i32 = arith.constant 0 : i32
    return %arg0, %arg1 : i32, i32
  }
}

module attributes {stable_mosaic.version = 11 : i64} {
  func.func @_matmul_kernel(%arg0: i32, %arg1: i32, %arg2: i32, %arg3: memref<128x64xbf16, #tpu.memory_space<vmem>>, %arg4: memref<64x128xbf16, #tpu.memory_space<vmem>>, %arg5: memref<128x128xbf16, #tpu.memory_space<vmem>>, %arg6: memref<128x128xf32, #tpu.memory_space<vmem>>) attributes {dimension_semantics = [#tpu.dimension_semantics<parallel>, #tpu.dimension_semantics<parallel>, #tpu.dimension_semantics<arbitrary>], iteration_bounds = array<i64: 1, 1, 1>, scalar_prefetch = 0 : i64, scratch_operands = 1 : i64, tpu.core_type = #tpu.core_type<tc>, window_params = [{transform_indices = @transform_0, window_bounds = array<i64: 128, 64>}, {transform_indices = @transform_1, window_bounds = array<i64: 64, 128>}, {transform_indices = @transform_2, window_bounds = array<i64: 128, 128>}]} {
    %c0_i32 = arith.constant 0 : i32
    %0 = arith.cmpi eq, %arg2, %c0_i32 : i32
    %1 = arith.extui %0 : i1 to i32
    %c0_i32_0 = arith.constant 0 : i32
    %2 = arith.cmpi ne, %1, %c0_i32_0 : i32
    scf.if %2 {
      %cst_10 = arith.constant 0.000000e+00 : f32
      %12 = vector.broadcast %cst_10 : f32 to vector<128x128xf32>
      %c0_11 = arith.constant 0 : index
      %c0_12 = arith.constant 0 : index
      %13 = vector.load %arg6[%c0_11, %c0_12] : memref<128x128xf32, #tpu.memory_space<vmem>>, vector<128x128xf32>
      tpu.vector_store %arg6[%c0_11, %c0_12], %12 {strides = array<i32>} : memref<128x128xf32, #tpu.memory_space<vmem>>, vector<128x128xf32>,
    } else {
    }
    %c0 = arith.constant 0 : index
    %c0_1 = arith.constant 0 : index
    %3 = vector.load %arg6[%c0, %c0_1] : memref<128x128xf32, #tpu.memory_space<vmem>>, vector<128x128xf32>
    %c0_2 = arith.constant 0 : index
    %c0_3 = arith.constant 0 : index
    %4 = vector.load %arg3[%c0_2, %c0_3] : memref<128x64xbf16, #tpu.memory_space<vmem>>, vector<128x64xbf16>
    %c0_4 = arith.constant 0 : index
    %c0_5 = arith.constant 0 : index
    %5 = vector.load %arg4[%c0_4, %c0_5] : memref<64x128xbf16, #tpu.memory_space<vmem>>, vector<64x128xbf16>
    %cst = arith.constant dense<0.000000e+00> : vector<128x128xf32>
    %6 = tpu.matmul %4, %5, %cst {dimension_numbers = #tpu.dot_dimension_numbers<[1], [0], [0], [1], [0, 0, 1, 1], [], []>} : vector<128x64xbf16>, vector<64x128xbf16>, vector<128x128xf32> -> vector<128x128xf32>
    %7 = arith.addf %3, %6 : vector<128x128xf32>
    %c0_6 = arith.constant 0 : index
    %c0_7 = arith.constant 0 : index
    %8 = vector.load %arg6[%c0_6, %c0_7] : memref<128x128xf32, #tpu.memory_space<vmem>>, vector<128x128xf32>
    tpu.vector_store %arg6[%c0_6, %c0_7], %7 {strides = array<i32>} : memref<128x128xf32, #tpu.memory_space<vmem>>, vector<128x128xf32>,
    %c0_i32_8 = arith.constant 0 : i32
    %9 = arith.cmpi eq, %arg2, %c0_i32_8 : i32
    %10 = arith.extui %9 : i1 to i32
    %c0_i32_9 = arith.constant 0 : i32
    %11 = arith.cmpi ne, %10, %c0_i32_9 : i32
    scf.if %11 {
      %c0_10 = arith.constant 0 : index
      %c0_11 = arith.constant 0 : index
      %12 = vector.load %arg6[%c0_10, %c0_11] : memref<128x128xf32, #tpu.memory_space<vmem>>, vector<128x128xf32>
      %13 = arith.truncf %12 : vector<128x128xf32> to vector<128x128xbf16>
      %c0_12 = arith.constant 0 : index
      %c0_13 = arith.constant 0 : index
      %14 = vector.load %arg5[%c0_12, %c0_13] : memref<128x128xbf16, #tpu.memory_space<vmem>>, vector<128x128xbf16>
      tpu.vector_store %arg5[%c0_12, %c0_13], %13 {strides = array<i32>} : memref<128x128xbf16, #tpu.memory_space<vmem>>, vector<128x128xbf16>,
    } else {
    }
    return
  }
  func.func @transform_0(%arg0: i32, %arg1: i32, %arg2: i32) -> (i32, i32) {
    %c0_i32 = arith.constant 0 : i32
    return %arg0, %arg2 : i32, i32
  }
  func.func @transform_1(%arg0: i32, %arg1: i32, %arg2: i32) -> (i32, i32) {
    %c0_i32 = arith.constant 0 : i32
    return %arg2, %arg1 : i32, i32
  }
  func.func @transform_2(%arg0: i32, %arg1: i32, %arg2: i32) -> (i32, i32) {
    %c0_i32 = arith.constant 0 : i32
    return %arg0, %arg1 : i32, i32
  }
}

module attributes {stable_mosaic.version = 11 : i64} {
  func.func @_gn_kernel(%arg0: i32, %arg1: i32, %arg2: i32, %arg3: memref<1x64x128xbf16, #tpu.memory_space<vmem>>, %arg4: memref<1x64x128xbf16, #tpu.memory_space<vmem>>, %arg5: memref<1x128xf32, #tpu.memory_space<vmem>>, %arg6: memref<1x128xf32, #tpu.memory_space<vmem>>, %arg7: memref<128x128xf32, #tpu.memory_space<vmem>>, %arg8: memref<1x128x64xf32, #tpu.memory_space<vmem>>, %arg9: memref<8x128xf32, #tpu.memory_space<vmem>>, %arg10: memref<2x128xf32, #tpu.memory_space<vmem>>) attributes {dimension_semantics = [#tpu.dimension_semantics<parallel>, #tpu.dimension_semantics<arbitrary>, #tpu.dimension_semantics<arbitrary>], iteration_bounds = array<i64: 2, 2, 1>, scalar_prefetch = 0 : i64, scratch_operands = 2 : i64, tpu.core_type = #tpu.core_type<tc>, window_params = [{transform_indices = @transform_0, window_bounds = array<i64: 1, 64, 128>}, {transform_indices = @transform_1, window_bounds = array<i64: 1, 64, 128>}, {pipeline_mode = #tpu.pipeline_mode<synchronous>, transform_indices = @transform_2, window_bounds = array<i64: 1, 128>}, {pipeline_mode = #tpu.pipeline_mode<synchronous>, transform_indices = @transform_3, window_bounds = array<i64: 1, 128>}, {pipeline_mode = #tpu.pipeline_mode<synchronous>, transform_indices = @transform_4, window_bounds = array<i64: 128, 128>}, {transform_indices = @transform_5, window_bounds = array<i64: 1, 128, 64>}]} {
    %c0_i32 = arith.constant 0 : i32
    %0 = arith.cmpi eq, %arg1, %c0_i32 : i32
    %c0_i32_0 = arith.constant 0 : i32
    %1 = arith.cmpi eq, %arg2, %c0_i32_0 : i32
    %2 = arith.andi %0, %1 : i1
    %3 = arith.extui %2 : i1 to i32
    %c0_i32_1 = arith.constant 0 : i32
    %4 = arith.cmpi ne, %3, %c0_i32_1 : i32
    scf.if %4 {
      %cst = arith.constant 0.000000e+00 : f32
      %19 = vector.broadcast %cst : f32 to vector<8x128xf32>
      %c0_10 = arith.constant 0 : index
      %c0_11 = arith.constant 0 : index
      %20 = vector.load %arg9[%c0_10, %c0_11] : memref<8x128xf32, #tpu.memory_space<vmem>>, vector<8x128xf32>
      tpu.vector_store %arg9[%c0_10, %c0_11], %19 {strides = array<i32>} : memref<8x128xf32, #tpu.memory_space<vmem>>, vector<8x128xf32>,
    } else {
    }
    %c0 = arith.constant 0 : index
    %c0_2 = arith.constant 0 : index
    %c0_3 = arith.constant 0 : index
    %5 = vector.load %arg3[%c0, %c0_2, %c0_3] : memref<1x64x128xbf16, #tpu.memory_space<vmem>>, vector<1x64x128xbf16>
    %6 = vector.shape_cast %5 : vector<1x64x128xbf16> to vector<64x128xbf16>
    %7 = arith.extf %6 : vector<64x128xbf16> to vector<64x128xf32>
    %c0_i32_4 = arith.constant 0 : i32
    %8 = arith.cmpi eq, %arg1, %c0_i32_4 : i32
    %9 = arith.extui %8 : i1 to i32
    %c0_i32_5 = arith.constant 0 : i32
    %10 = arith.cmpi ne, %9, %c0_i32_5 : i32
    scf.if %10 {
      %c0_10 = arith.constant 0 : index
      %c0_11 = arith.constant 0 : index
      %19 = vector.load %arg9[%c0_10, %c0_11] : memref<8x128xf32, #tpu.memory_space<vmem>>, vector<1x128xf32>
      %cst = arith.constant dense<0.000000e+00> : vector<128xf32>
      %20 = vector.multi_reduction <add>, %7, %cst [0] : vector<64x128xf32> to vector<128xf32>
      %21 = vector.shape_cast %20 : vector<128xf32> to vector<1x128xf32>
      %22 = arith.addf %19, %21 : vector<1x128xf32>
      %c0_12 = arith.constant 0 : index
      %c0_13 = arith.constant 0 : index
      %23 = vector.load %arg9[%c0_12, %c0_13] : memref<8x128xf32, #tpu.memory_space<vmem>>, vector<1x128xf32>
      tpu.vector_store %arg9[%c0_12, %c0_13], %22 {strides = array<i32>} : memref<8x128xf32, #tpu.memory_space<vmem>>, vector<1x128xf32>,
      %c1 = arith.constant 1 : index
      %c0_14 = arith.constant 0 : index
      %24 = vector.load %arg9[%c1, %c0_14] : memref<8x128xf32, #tpu.memory_space<vmem>>, vector<1x128xf32>
      %25 = arith.mulf %7, %7 : vector<64x128xf32>
      %cst_15 = arith.constant dense<0.000000e+00> : vector<128xf32>
      %26 = vector.multi_reduction <add>, %25, %cst_15 [0] : vector<64x128xf32> to vector<128xf32>
      %27 = vector.shape_cast %26 : vector<128xf32> to vector<1x128xf32>
      %28 = arith.addf %24, %27 : vector<1x128xf32>
      %c1_16 = arith.constant 1 : index
      %c0_17 = arith.constant 0 : index
      %29 = vector.load %arg9[%c1_16, %c0_17] : memref<8x128xf32, #tpu.memory_space<vmem>>, vector<1x128xf32>
      tpu.vector_store %arg9[%c1_16, %c0_17], %28 {strides = array<i32>} : memref<8x128xf32, #tpu.memory_space<vmem>>, vector<1x128xf32>,
    } else {
    }
    %c1_i32 = arith.constant 1 : i32
    %11 = arith.cmpi eq, %arg1, %c1_i32 : i32
    %c0_i32_6 = arith.constant 0 : i32
    %12 = arith.cmpi eq, %arg2, %c0_i32_6 : i32
    %13 = arith.andi %11, %12 : i1
    %14 = arith.extui %13 : i1 to i32
    %c0_i32_7 = arith.constant 0 : i32
    %15 = arith.cmpi ne, %14, %c0_i32_7 : i32
    scf.if %15 {
      %c0_10 = arith.constant 0 : index
      %c0_11 = arith.constant 0 : index
      %19 = vector.load %arg9[%c0_10, %c0_11] : memref<8x128xf32, #tpu.memory_space<vmem>>, vector<8x128xf32>
      %c0_12 = arith.constant 0 : index
      %c0_13 = arith.constant 0 : index
      %20 = vector.load %arg7[%c0_12, %c0_13] : memref<128x128xf32, #tpu.memory_space<vmem>>, vector<128x128xf32>
      %cst = arith.constant dense<0.000000e+00> : vector<8x128xf32>
      %21 = tpu.matmul %19, %20, %cst {dimension_numbers = #tpu.dot_dimension_numbers<[1], [0], [0], [1], [0, 0, 1, 1], [], []>} : vector<8x128xf32>, vector<128x128xf32>, vector<8x128xf32> -> vector<8x128xf32>
      %22 = vector.extract_strided_slice %21 {offsets = [0, 0], sizes = [1, 128], strides = [1, 1]} : vector<8x128xf32> to vector<1x128xf32>
      %23 = vector.extract_strided_slice %21 {offsets = [1, 0], sizes = [1, 128], strides = [1, 1]} : vector<8x128xf32> to vector<1x128xf32>
      %24 = arith.mulf %22, %22 : vector<1x128xf32>
      %25 = arith.subf %23, %24 : vector<1x128xf32>
      %cst_14 = arith.constant 0.000000e+00 : f32
      %26 = vector.broadcast %cst_14 : f32 to vector<1x128xf32>
      %27 = arith.maximumf %25, %26 : vector<1x128xf32>
      %cst_15 = arith.constant 9.99999997E-7 : f32
      %28 = vector.broadcast %cst_15 : f32 to vector<1x128xf32>
      %29 = arith.addf %27, %28 : vector<1x128xf32>
      %30 = math.rsqrt %29 : vector<1x128xf32>
      %c0_16 = arith.constant 0 : index
      %c0_17 = arith.constant 0 : index
      %31 = vector.load %arg5[%c0_16, %c0_17] : memref<1x128xf32, #tpu.memory_space<vmem>>, vector<1x128xf32>
      %32 = arith.mulf %30, %31 : vector<1x128xf32>
      %c0_18 = arith.constant 0 : index
      %c0_19 = arith.constant 0 : index
      %33 = vector.load %arg10[%c0_18, %c0_19] : memref<2x128xf32, #tpu.memory_space<vmem>>, vector<1x128xf32>
      tpu.vector_store %arg10[%c0_18, %c0_19], %32 {strides = array<i32>} : memref<2x128xf32, #tpu.memory_space<vmem>>, vector<1x128xf32>,
      %c0_20 = arith.constant 0 : index
      %c0_21 = arith.constant 0 : index
      %34 = vector.load %arg6[%c0_20, %c0_21] : memref<1x128xf32, #tpu.memory_space<vmem>>, vector<1x128xf32>
      %35 = arith.mulf %22, %32 : vector<1x128xf32>
      %36 = arith.subf %34, %35 : vector<1x128xf32>
      %c1 = arith.constant 1 : index
      %c0_22 = arith.constant 0 : index
      %37 = vector.load %arg10[%c1, %c0_22] : memref<2x128xf32, #tpu.memory_space<vmem>>, vector<1x128xf32>
      tpu.vector_store %arg10[%c1, %c0_22], %36 {strides = array<i32>} : memref<2x128xf32, #tpu.memory_space<vmem>>, vector<1x128xf32>,
    } else {
    }
    %c1_i32_8 = arith.constant 1 : i32
    %16 = arith.cmpi eq, %arg1, %c1_i32_8 : i32
    %17 = arith.extui %16 : i1 to i32
    %c0_i32_9 = arith.constant 0 : i32
    %18 = arith.cmpi ne, %17, %c0_i32_9 : i32
    scf.if %18 {
      %c0_10 = arith.constant 0 : index
      %c0_11 = arith.constant 0 : index
      %19 = vector.load %arg10[%c0_10, %c0_11] : memref<2x128xf32, #tpu.memory_space<vmem>>, vector<1x128xf32>
      %20 = vector.broadcast %19 : vector<1x128xf32> to vector<64x128xf32>
      %21 = arith.mulf %7, %20 : vector<64x128xf32>
      %c1 = arith.constant 1 : index
      %c0_12 = arith.constant 0 : index
      %22 = vector.load %arg10[%c1, %c0_12] : memref<2x128xf32, #tpu.memory_space<vmem>>, vector<1x128xf32>
      %23 = vector.broadcast %22 : vector<1x128xf32> to vector<64x128xf32>
      %24 = arith.addf %21, %23 : vector<64x128xf32>
      %c0_13 = arith.constant 0 : index
      %c0_14 = arith.constant 0 : index
      %c0_15 = arith.constant 0 : index
      %25 = vector.load %arg4[%c0_13, %c0_14, %c0_15] : memref<1x64x128xbf16, #tpu.memory_space<vmem>>, vector<1x64x128xbf16>
      %26 = vector.shape_cast %25 : vector<1x64x128xbf16> to vector<64x128xbf16>
      %27 = arith.extf %26 : vector<64x128xbf16> to vector<64x128xf32>
      %28 = arith.addf %24, %27 : vector<64x128xf32>
      %cst = arith.constant 0.000000e+00 : f32
      %29 = vector.broadcast %cst : f32 to vector<64x128xf32>
      %30 = arith.maximumf %28, %29 : vector<64x128xf32>
      %31 = tpu.transpose %30, [1, 0] : vector<64x128xf32> -> vector<128x64xf32>
      %c0_16 = arith.constant 0 : index
      %c0_17 = arith.constant 0 : index
      %c0_18 = arith.constant 0 : index
      %32 = vector.load %arg8[%c0_16, %c0_17, %c0_18] : memref<1x128x64xf32, #tpu.memory_space<vmem>>, vector<1x128x64xf32>
      %33 = vector.shape_cast %32 : vector<1x128x64xf32> to vector<128x64xf32>
      %34 = vector.shape_cast %31 : vector<128x64xf32> to vector<1x128x64xf32>
      tpu.vector_store %arg8[%c0_16, %c0_17, %c0_18], %34 {strides = array<i32>} : memref<1x128x64xf32, #tpu.memory_space<vmem>>, vector<1x128x64xf32>,
    } else {
    }
    return
  }
  func.func @transform_0(%arg0: i32, %arg1: i32, %arg2: i32) -> (i32, i32, i32) {
    %c0_i32 = arith.constant 0 : i32
    %c0_i32_0 = arith.constant 0 : i32
    return %arg0, %arg2, %c0_i32 : i32, i32, i32
  }
  func.func @transform_1(%arg0: i32, %arg1: i32, %arg2: i32) -> (i32, i32, i32) {
    %0 = arith.muli %arg2, %arg1 : i32
    %c0_i32 = arith.constant 0 : i32
    %c0_i32_0 = arith.constant 0 : i32
    return %arg0, %0, %c0_i32 : i32, i32, i32
  }
  func.func @transform_2(%arg0: i32, %arg1: i32, %arg2: i32) -> (i32, i32) {
    %c0_i32 = arith.constant 0 : i32
    %c0_i32_0 = arith.constant 0 : i32
    %c0_i32_1 = arith.constant 0 : i32
    return %c0_i32, %c0_i32_0 : i32, i32
  }
  func.func @transform_3(%arg0: i32, %arg1: i32, %arg2: i32) -> (i32, i32) {
    %c0_i32 = arith.constant 0 : i32
    %c0_i32_0 = arith.constant 0 : i32
    %c0_i32_1 = arith.constant 0 : i32
    return %c0_i32, %c0_i32_0 : i32, i32
  }
  func.func @transform_4(%arg0: i32, %arg1: i32, %arg2: i32) -> (i32, i32) {
    %c0_i32 = arith.constant 0 : i32
    %c0_i32_0 = arith.constant 0 : i32
    %c0_i32_1 = arith.constant 0 : i32
    return %c0_i32, %c0_i32_0 : i32, i32
  }
  func.func @transform_5(%arg0: i32, %arg1: i32, %arg2: i32) -> (i32, i32, i32) {
    %0 = arith.muli %arg2, %arg1 : i32
    %c0_i32 = arith.constant 0 : i32
    %c0_i32_0 = arith.constant 0 : i32
    return %arg0, %c0_i32, %0 : i32, i32, i32
  }
}

module attributes {stable_mosaic.version = 11 : i64} {
  func.func @_gn_kernel(%arg0: i32, %arg1: i32, %arg2: i32, %arg3: memref<1x64x128xbf16, #tpu.memory_space<vmem>>, %arg4: memref<1x128xf32, #tpu.memory_space<vmem>>, %arg5: memref<1x128xf32, #tpu.memory_space<vmem>>, %arg6: memref<128x128xf32, #tpu.memory_space<vmem>>, %arg7: memref<1x64x128xbf16, #tpu.memory_space<vmem>>, %arg8: memref<8x128xf32, #tpu.memory_space<vmem>>, %arg9: memref<2x128xf32, #tpu.memory_space<vmem>>) attributes {dimension_semantics = [#tpu.dimension_semantics<parallel>, #tpu.dimension_semantics<arbitrary>, #tpu.dimension_semantics<arbitrary>], iteration_bounds = array<i64: 2, 2, 1>, scalar_prefetch = 0 : i64, scratch_operands = 2 : i64, tpu.core_type = #tpu.core_type<tc>, window_params = [{transform_indices = @transform_0, window_bounds = array<i64: 1, 64, 128>}, {pipeline_mode = #tpu.pipeline_mode<synchronous>, transform_indices = @transform_1, window_bounds = array<i64: 1, 128>}, {pipeline_mode = #tpu.pipeline_mode<synchronous>, transform_indices = @transform_2, window_bounds = array<i64: 1, 128>}, {pipeline_mode = #tpu.pipeline_mode<synchronous>, transform_indices = @transform_3, window_bounds = array<i64: 128, 128>}, {transform_indices = @transform_4, window_bounds = array<i64: 1, 64, 128>}]} {
    %c0_i32 = arith.constant 0 : i32
    %0 = arith.cmpi eq, %arg1, %c0_i32 : i32
    %c0_i32_0 = arith.constant 0 : i32
    %1 = arith.cmpi eq, %arg2, %c0_i32_0 : i32
    %2 = arith.andi %0, %1 : i1
    %3 = arith.extui %2 : i1 to i32
    %c0_i32_1 = arith.constant 0 : i32
    %4 = arith.cmpi ne, %3, %c0_i32_1 : i32
    scf.if %4 {
      %cst = arith.constant 0.000000e+00 : f32
      %19 = vector.broadcast %cst : f32 to vector<8x128xf32>
      %c0_10 = arith.constant 0 : index
      %c0_11 = arith.constant 0 : index
      %20 = vector.load %arg8[%c0_10, %c0_11] : memref<8x128xf32, #tpu.memory_space<vmem>>, vector<8x128xf32>
      tpu.vector_store %arg8[%c0_10, %c0_11], %19 {strides = array<i32>} : memref<8x128xf32, #tpu.memory_space<vmem>>, vector<8x128xf32>,
    } else {
    }
    %c0 = arith.constant 0 : index
    %c0_2 = arith.constant 0 : index
    %c0_3 = arith.constant 0 : index
    %5 = vector.load %arg3[%c0, %c0_2, %c0_3] : memref<1x64x128xbf16, #tpu.memory_space<vmem>>, vector<1x64x128xbf16>
    %6 = vector.shape_cast %5 : vector<1x64x128xbf16> to vector<64x128xbf16>
    %7 = arith.extf %6 : vector<64x128xbf16> to vector<64x128xf32>
    %c0_i32_4 = arith.constant 0 : i32
    %8 = arith.cmpi eq, %arg1, %c0_i32_4 : i32
    %9 = arith.extui %8 : i1 to i32
    %c0_i32_5 = arith.constant 0 : i32
    %10 = arith.cmpi ne, %9, %c0_i32_5 : i32
    scf.if %10 {
      %c0_10 = arith.constant 0 : index
      %c0_11 = arith.constant 0 : index
      %19 = vector.load %arg8[%c0_10, %c0_11] : memref<8x128xf32, #tpu.memory_space<vmem>>, vector<1x128xf32>
      %cst = arith.constant dense<0.000000e+00> : vector<128xf32>
      %20 = vector.multi_reduction <add>, %7, %cst [0] : vector<64x128xf32> to vector<128xf32>
      %21 = vector.shape_cast %20 : vector<128xf32> to vector<1x128xf32>
      %22 = arith.addf %19, %21 : vector<1x128xf32>
      %c0_12 = arith.constant 0 : index
      %c0_13 = arith.constant 0 : index
      %23 = vector.load %arg8[%c0_12, %c0_13] : memref<8x128xf32, #tpu.memory_space<vmem>>, vector<1x128xf32>
      tpu.vector_store %arg8[%c0_12, %c0_13], %22 {strides = array<i32>} : memref<8x128xf32, #tpu.memory_space<vmem>>, vector<1x128xf32>,
      %c1 = arith.constant 1 : index
      %c0_14 = arith.constant 0 : index
      %24 = vector.load %arg8[%c1, %c0_14] : memref<8x128xf32, #tpu.memory_space<vmem>>, vector<1x128xf32>
      %25 = arith.mulf %7, %7 : vector<64x128xf32>
      %cst_15 = arith.constant dense<0.000000e+00> : vector<128xf32>
      %26 = vector.multi_reduction <add>, %25, %cst_15 [0] : vector<64x128xf32> to vector<128xf32>
      %27 = vector.shape_cast %26 : vector<128xf32> to vector<1x128xf32>
      %28 = arith.addf %24, %27 : vector<1x128xf32>
      %c1_16 = arith.constant 1 : index
      %c0_17 = arith.constant 0 : index
      %29 = vector.load %arg8[%c1_16, %c0_17] : memref<8x128xf32, #tpu.memory_space<vmem>>, vector<1x128xf32>
      tpu.vector_store %arg8[%c1_16, %c0_17], %28 {strides = array<i32>} : memref<8x128xf32, #tpu.memory_space<vmem>>, vector<1x128xf32>,
    } else {
    }
    %c1_i32 = arith.constant 1 : i32
    %11 = arith.cmpi eq, %arg1, %c1_i32 : i32
    %c0_i32_6 = arith.constant 0 : i32
    %12 = arith.cmpi eq, %arg2, %c0_i32_6 : i32
    %13 = arith.andi %11, %12 : i1
    %14 = arith.extui %13 : i1 to i32
    %c0_i32_7 = arith.constant 0 : i32
    %15 = arith.cmpi ne, %14, %c0_i32_7 : i32
    scf.if %15 {
      %c0_10 = arith.constant 0 : index
      %c0_11 = arith.constant 0 : index
      %19 = vector.load %arg8[%c0_10, %c0_11] : memref<8x128xf32, #tpu.memory_space<vmem>>, vector<8x128xf32>
      %c0_12 = arith.constant 0 : index
      %c0_13 = arith.constant 0 : index
      %20 = vector.load %arg6[%c0_12, %c0_13] : memref<128x128xf32, #tpu.memory_space<vmem>>, vector<128x128xf32>
      %cst = arith.constant dense<0.000000e+00> : vector<8x128xf32>
      %21 = tpu.matmul %19, %20, %cst {dimension_numbers = #tpu.dot_dimension_numbers<[1], [0], [0], [1], [0, 0, 1, 1], [], []>} : vector<8x128xf32>, vector<128x128xf32>, vector<8x128xf32> -> vector<8x128xf32>
      %22 = vector.extract_strided_slice %21 {offsets = [0, 0], sizes = [1, 128], strides = [1, 1]} : vector<8x128xf32> to vector<1x128xf32>
      %23 = vector.extract_strided_slice %21 {offsets = [1, 0], sizes = [1, 128], strides = [1, 1]} : vector<8x128xf32> to vector<1x128xf32>
      %24 = arith.mulf %22, %22 : vector<1x128xf32>
      %25 = arith.subf %23, %24 : vector<1x128xf32>
      %cst_14 = arith.constant 0.000000e+00 : f32
      %26 = vector.broadcast %cst_14 : f32 to vector<1x128xf32>
      %27 = arith.maximumf %25, %26 : vector<1x128xf32>
      %cst_15 = arith.constant 9.99999974E-6 : f32
      %28 = vector.broadcast %cst_15 : f32 to vector<1x128xf32>
      %29 = arith.addf %27, %28 : vector<1x128xf32>
      %30 = math.rsqrt %29 : vector<1x128xf32>
      %c0_16 = arith.constant 0 : index
      %c0_17 = arith.constant 0 : index
      %31 = vector.load %arg4[%c0_16, %c0_17] : memref<1x128xf32, #tpu.memory_space<vmem>>, vector<1x128xf32>
      %32 = arith.mulf %30, %31 : vector<1x128xf32>
      %c0_18 = arith.constant 0 : index
      %c0_19 = arith.constant 0 : index
      %33 = vector.load %arg9[%c0_18, %c0_19] : memref<2x128xf32, #tpu.memory_space<vmem>>, vector<1x128xf32>
      tpu.vector_store %arg9[%c0_18, %c0_19], %32 {strides = array<i32>} : memref<2x128xf32, #tpu.memory_space<vmem>>, vector<1x128xf32>,
      %c0_20 = arith.constant 0 : index
      %c0_21 = arith.constant 0 : index
      %34 = vector.load %arg5[%c0_20, %c0_21] : memref<1x128xf32, #tpu.memory_space<vmem>>, vector<1x128xf32>
      %35 = arith.mulf %22, %32 : vector<1x128xf32>
      %36 = arith.subf %34, %35 : vector<1x128xf32>
      %c1 = arith.constant 1 : index
      %c0_22 = arith.constant 0 : index
      %37 = vector.load %arg9[%c1, %c0_22] : memref<2x128xf32, #tpu.memory_space<vmem>>, vector<1x128xf32>
      tpu.vector_store %arg9[%c1, %c0_22], %36 {strides = array<i32>} : memref<2x128xf32, #tpu.memory_space<vmem>>, vector<1x128xf32>,
    } else {
    }
    %c1_i32_8 = arith.constant 1 : i32
    %16 = arith.cmpi eq, %arg1, %c1_i32_8 : i32
    %17 = arith.extui %16 : i1 to i32
    %c0_i32_9 = arith.constant 0 : i32
    %18 = arith.cmpi ne, %17, %c0_i32_9 : i32
    scf.if %18 {
      %c0_10 = arith.constant 0 : index
      %c0_11 = arith.constant 0 : index
      %19 = vector.load %arg9[%c0_10, %c0_11] : memref<2x128xf32, #tpu.memory_space<vmem>>, vector<1x128xf32>
      %20 = vector.broadcast %19 : vector<1x128xf32> to vector<64x128xf32>
      %21 = arith.mulf %7, %20 : vector<64x128xf32>
      %c1 = arith.constant 1 : index
      %c0_12 = arith.constant 0 : index
      %22 = vector.load %arg9[%c1, %c0_12] : memref<2x128xf32, #tpu.memory_space<vmem>>, vector<1x128xf32>
      %23 = vector.broadcast %22 : vector<1x128xf32> to vector<64x128xf32>
      %24 = arith.addf %21, %23 : vector<64x128xf32>
      %25 = arith.truncf %24 : vector<64x128xf32> to vector<64x128xbf16>
      %c0_13 = arith.constant 0 : index
      %c0_14 = arith.constant 0 : index
      %c0_15 = arith.constant 0 : index
      %26 = vector.load %arg7[%c0_13, %c0_14, %c0_15] : memref<1x64x128xbf16, #tpu.memory_space<vmem>>, vector<1x64x128xbf16>
      %27 = vector.shape_cast %26 : vector<1x64x128xbf16> to vector<64x128xbf16>
      %28 = vector.shape_cast %25 : vector<64x128xbf16> to vector<1x64x128xbf16>
      tpu.vector_store %arg7[%c0_13, %c0_14, %c0_15], %28 {strides = array<i32>} : memref<1x64x128xbf16, #tpu.memory_space<vmem>>, vector<1x64x128xbf16>,
    } else {
    }
    return
  }
  func.func @transform_0(%arg0: i32, %arg1: i32, %arg2: i32) -> (i32, i32, i32) {
    %c0_i32 = arith.constant 0 : i32
    %c0_i32_0 = arith.constant 0 : i32
    return %arg0, %arg2, %c0_i32 : i32, i32, i32
  }
  func.func @transform_1(%arg0: i32, %arg1: i32, %arg2: i32) -> (i32, i32) {
    %c0_i32 = arith.constant 0 : i32
    %c0_i32_0 = arith.constant 0 : i32
    %c0_i32_1 = arith.constant 0 : i32
    return %c0_i32, %c0_i32_0 : i32, i32
  }
  func.func @transform_2(%arg0: i32, %arg1: i32, %arg2: i32) -> (i32, i32) {
    %c0_i32 = arith.constant 0 : i32
    %c0_i32_0 = arith.constant 0 : i32
    %c0_i32_1 = arith.constant 0 : i32
    return %c0_i32, %c0_i32_0 : i32, i32
  }
  func.func @transform_3(%arg0: i32, %arg1: i32, %arg2: i32) -> (i32, i32) {
    %c0_i32 = arith.constant 0 : i32
    %c0_i32_0 = arith.constant 0 : i32
    %c0_i32_1 = arith.constant 0 : i32
    return %c0_i32, %c0_i32_0 : i32, i32
  }
  func.func @transform_4(%arg0: i32, %arg1: i32, %arg2: i32) -> (i32, i32, i32) {
    %0 = arith.muli %arg2, %arg1 : i32
    %c0_i32 = arith.constant 0 : i32
    %c0_i32_0 = arith.constant 0 : i32
    return %arg0, %0, %c0_i32 : i32, i32, i32
  }
}

</mosaic_0001>

<llo_original>
// kernel: preact_bottleneck_forward.9
$region0: #{preact_bottleneck_forward.9}
  #allocation0 [shape = 'u32[]', space=smem, size = 0x4, offset = 0x4, fixed_abs, tag = 'smem constant byte address 0x4 - core index']
  #allocation1 [shape = 'u32[72,128]{1,0:T(1,128)}', space=vmem, size = 0x9000, scoped, tag = 'internal scratch']
  #allocation2 [shape = 'f32[8,128]{1,0:T(8,128)}', space=vmem, size = 0x1000, scoped, tag = 'scratch operand']
  #allocation3 [shape = 'f32[2,128]{1,0:T(2,128)}', space=vmem, size = 0x400, scoped, tag = 'scratch operand']
  %s0 = inlined_call_operand.vmem [shape: bf16[2,256,128], index: 0, kind: input, shape index: {}]
  %s1 = inlined_call_operand.vmem [shape: f32[1,128], index: 1, kind: input, shape index: {}]
  %s2 = inlined_call_operand.vmem [shape: f32[1,128], index: 2, kind: input, shape index: {}]
  %s3 = inlined_call_operand.vmem [shape: f32[128,128], index: 3, kind: input, shape index: {}]
  %s4 = inlined_call_operand.vmem [shape: bf16[2,256,128], index: 4, kind: output, shape index: {}]
  %s5 = sld [smem:[#allocation0]]
  $region65: #{preact_bottleneck_forward.9} parent=0
    _
  %s7 = ssub.s32 1, %s5
  %s8 = scalar_select 0, %s7, %s5
  loop: start=0, step=1, limit=6
  $region2: #{preact_bottleneck_forward.9} parent=0 // loop_pre_header
    _
  $region3: #{preact_bottleneck_forward.9} parent=0 // loop_header
    %s10 = sphi 0, %s14
    %p11 = scmp.ge.s32.totalorder %s10, 6
    %s17 = sphi 0, %s36
    %s18 = sphi 0, %s32
    %s19 = sphi 0, %s28
    %s20 = sphi 0, %s17
    %s21 = sphi 0, %s18
    %s22 = sphi 0, %s19
    %s23 = sphi 0, %s20
    %s24 = sphi 0, %s21
    %s25 = sphi 0, %s22
    %s41 = sphi 0, %s43
    %s44 = sphi 0, %s41
    %s45 = sphi 0, %s44
    %s61 = sphi 0, %s45
    %s65 = sphi 0, %s65
    %s67 = sphi 0, %s65
    %s68 = sphi 0, %s67
    %s82 = sphi 0, %s68
    %s86 = sphi 0, %s86
    %s88 = sphi 0, %s86
    %s89 = sphi 0, %s88
    %s103 = sphi 0, %s89
    %s107 = sphi 0, %s107
    %s109 = sphi 0, %s107
    %s110 = sphi 0, %s109
    %s124 = sphi 0, %s110
    %s134 = sphi 0, %s136
    %s137 = sphi 0, %s134
    %s138 = sphi 0, %s137
    %s154 = sphi 0, %s138
  $region4: #{preact_bottleneck_forward.9} parent=0 // loop_header_branch
    %13 = sbr.rel (%p11) target = $region8
  $region5: #{preact_bottleneck_forward.9} parent=0 // loop_body
    %s15 = ssub.s32 %s10, 1
    %s16 = ssub.s32 %s10, 2
    %s26 = sadd.s32 1, %s19
    %p27 = scmp.ge.s32.totalorder %s26, 1
    %s28 = scalar_select %p27, 0, %s26
    %s29 = sadd.s32 1, %s18
    %s30 = scalar_select %p27, %s29, %s18
    %p31 = scmp.ge.s32.totalorder %s30, 2
    %s32 = scalar_select %p31, 0, %s30
    %s33 = sadd.s32 1, %s17
    %s34 = scalar_select %p31, %s33, %s17
    %p35 = scmp.ge.s32.totalorder %s34, 2
    %s36 = scalar_select %p35, 0, %s34
    %s37 = ssub.s32 %s17, %s36
    %s38 = ssub.s32 %s19, %s28
    %s39 = sor.u32 %s37, %s38
    %p40 = scmp.eq.s32.totalorder %s39, 0
    %s42 = sadd.s32 %s41, 1
    %s43 = scalar_select %p40, %s41, %s42
    %p46 = pneg %p40
    %p47 = scmp.eq.s32.totalorder %s10, 3
    %p48 = por %p46, %p47
    %p49 = scmp.ne.s32.totalorder %s41, %s44
    %p50 = scmp.eq.s32.totalorder %s10, 0
    %p51 = por %p49, %p50
    %p52 = scmp.ne.s32.totalorder %s41, %s44
    %p53 = scmp.eq.s32.totalorder %s15, 3
    %p54 = por %p52, %p53
    %p55 = scmp.ne.s32.totalorder %s44, %s45
    %p56 = scmp.eq.s32.totalorder %s15, 0
    %p57 = por %p55, %p56
    %p58 = scmp.ne.s32.totalorder %s44, %s45
    %p59 = scmp.eq.s32.totalorder %s16, 3
    %p60 = por %p58, %p59
    %p62 = scmp.ne.s32.totalorder %s45, %s61
    %p63 = scmp.eq.s32.totalorder %s16, 0
    %p64 = por %p62, %p63
    %s66 = sadd.s32 %s65, 1
    %p69 = scmp.eq.s32.totalorder %s10, 3
    %p70 = scmp.ne.s32.totalorder %s65, %s67
    %p71 = scmp.eq.s32.totalorder %s10, 0
    %p72 = por %p70, %p71
    %p73 = scmp.ne.s32.totalorder %s65, %s67
    %p74 = scmp.eq.s32.totalorder %s15, 3
    %p75 = por %p73, %p74
    %p76 = scmp.ne.s32.totalorder %s67, %s68
    %p77 = scmp.eq.s32.totalorder %s15, 0
    %p78 = por %p76, %p77
    %p79 = scmp.ne.s32.totalorder %s67, %s68
    %p80 = scmp.eq.s32.totalorder %s16, 3
    %p81 = por %p79, %p80
    %p83 = scmp.ne.s32.totalorder %s68, %s82
    %p84 = scmp.eq.s32.totalorder %s16, 0
    %p85 = por %p83, %p84
    %s87 = sadd.s32 %s86, 1
    %p90 = scmp.eq.s32.totalorder %s10, 3
    %p91 = scmp.ne.s32.totalorder %s86, %s88
    %p92 = scmp.eq.s32.totalorder %s10, 0
    %p93 = por %p91, %p92
    %p94 = scmp.ne.s32.totalorder %s86, %s88
    %p95 = scmp.eq.s32.totalorder %s15, 3
    %p96 = por %p94, %p95
    %p97 = scmp.ne.s32.totalorder %s88, %s89
    %p98 = scmp.eq.s32.totalorder %s15, 0
    %p99 = por %p97, %p98
    %p100 = scmp.ne.s32.totalorder %s88, %s89
    %p101 = scmp.eq.s32.totalorder %s16, 3
    %p102 = por %p100, %p101
    %p104 = scmp.ne.s32.totalorder %s89, %s103
    %p105 = scmp.eq.s32.totalorder %s16, 0
    %p106 = por %p104, %p105
    %s108 = sadd.s32 %s107, 1
    %p111 = scmp.eq.s32.totalorder %s10, 3
    %p112 = scmp.ne.s32.totalorder %s107, %s109
    %p113 = scmp.eq.s32.totalorder %s10, 0
    %p114 = por %p112, %p113
    %p115 = scmp.ne.s32.totalorder %s107, %s109
    %p116 = scmp.eq.s32.totalorder %s15, 3
    %p117 = por %p115, %p116
    %p118 = scmp.ne.s32.totalorder %s109, %s110
    %p119 = scmp.eq.s32.totalorder %s15, 0
    %p120 = por %p118, %p119
    %p121 = scmp.ne.s32.totalorder %s109, %s110
    %p122 = scmp.eq.s32.totalorder %s16, 3
    %p123 = por %p121, %p122
    %p125 = scmp.ne.s32.totalorder %s110, %s124
    %p126 = scmp.eq.s32.totalorder %s16, 0
    %p127 = por %p125, %p126
    %s128 = smul.u32 %s19, %s18
    %s129 = smul.u32 %s28, %s32
    %s130 = ssub.s32 %s17, %s36
    %s131 = ssub.s32 %s128, %s129
    %s132 = sor.u32 %s130, %s131
    %p133 = scmp.eq.s32.totalorder %s132, 0
    %s135 = sadd.s32 %s134, 1
    %s136 = scalar_select %p133, %s134, %s135
    %p139 = pneg %p133
    %p140 = scmp.eq.s32.totalorder %s10, 3
    %p141 = por %p139, %p140
    %p142 = scmp.ne.s32.totalorder %s134, %s137
    %p143 = scmp.eq.s32.totalorder %s10, 0
    %p144 = por %p142, %p143
    %p145 = scmp.ne.s32.totalorder %s134, %s137
    %p146 = scmp.eq.s32.totalorder %s15, 3
    %p147 = por %p145, %p146
    %p148 = scmp.ne.s32.totalorder %s137, %s138
    %p149 = scmp.eq.s32.totalorder %s15, 0
    %p150 = por %p148, %p149
    %p151 = scmp.ne.s32.totalorder %s137, %s138
    %p152 = scmp.eq.s32.totalorder %s16, 3
    %p153 = por %p151, %p152
    %p155 = scmp.ne.s32.totalorder %s138, %s154
    %p156 = scmp.eq.s32.totalorder %s16, 0
    %p157 = por %p155, %p156
    %p158 = scmp.le.s32.totalorder 1, %s10
    %p159 = scmp.lt.s32.totalorder %s10, 5
    %p160 = pnand %p158, %p159
    %p161 = pneg %p160
    // Predicated region
    $region9: #{preact_bottleneck_forward.9} parent=5 // pred_check
      _
    $region10: #{preact_bottleneck_forward.9} parent=5 // pred_check_branch
      %163 = sbr.rel (%p160) target = $region12
    $region11: #{preact_bottleneck_forward.9} parent=5 // pred_region
      %s164 = ssub.s32 %s10, 1
      // Predicated region
      $region13: #{preact_bottleneck_forward.9} parent=11 // pred_check
        %p165 = pneg %p78
      $region14: #{preact_bottleneck_forward.9} parent=11 // pred_check_branch
        %167 = sbr.rel (%p165) target = $region16
      $region15: #{preact_bottleneck_forward.9} parent=11 // pred_region
        _
      $region16: #{preact_bottleneck_forward.9} parent=11 // pred_fallthru
        _
      // Predicated region
      $region17: #{preact_bottleneck_forward.9} parent=11 // pred_check
        %p168 = pneg %p99
      $region18: #{preact_bottleneck_forward.9} parent=11 // pred_check_branch
        %170 = sbr.rel (%p168) target = $region20
      $region19: #{preact_bottleneck_forward.9} parent=11 // pred_region
        _
      $region20: #{preact_bottleneck_forward.9} parent=11 // pred_fallthru
        _
      // Predicated region
      $region21: #{preact_bottleneck_forward.9} parent=11 // pred_check
        %p171 = pneg %p120
      $region22: #{preact_bottleneck_forward.9} parent=11 // pred_check_branch
        %173 = sbr.rel (%p171) target = $region24
      $region23: #{preact_bottleneck_forward.9} parent=11 // pred_region
        _
      $region24: #{preact_bottleneck_forward.9} parent=11 // pred_fallthru
        _
    $region12: #{preact_bottleneck_forward.9} parent=5 // pred_fallthru
      _
    %p174 = scmp.lt.s32.totalorder %s10, 4
    // Predicated region
    $region25: #{preact_bottleneck_forward.9} parent=5 // pred_check
      %p175 = pneg %p174
    $region26: #{preact_bottleneck_forward.9} parent=5 // pred_check_branch
      %177 = sbr.rel (%p175) target = $region28
    $region27: #{preact_bottleneck_forward.9} parent=5 // pred_region
      // Predicated region
      $region29: #{preact_bottleneck_forward.9} parent=27 // pred_check
        %p178 = pneg %p51
      $region30: #{preact_bottleneck_forward.9} parent=27 // pred_check_branch
        %180 = sbr.rel (%p178) target = $region32
      $region31: #{preact_bottleneck_forward.9} parent=27 // pred_region
        %s181 = smul.u32 32, %s19
        %p182 = scmp.lt.s32.totalorder %s17, 1
        %s183 = scalar_select %p182, %s17, 1
        %p184 = scmp.lt.s32.totalorder %s181, 31
        %s185 = scalar_select %p184, %s181, 31
        %s186 = smul.addr %s183, 32
        %s187 = sadd.s32 %s185, %s186
        %s188 = smul.addr %s187, 4
        %s189 = scalar_lea.vmem %s0, %s188
        %s190 = smul.u32 32, %s19
      $region32: #{preact_bottleneck_forward.9} parent=27 // pred_fallthru
        _
    $region28: #{preact_bottleneck_forward.9} parent=5 // pred_fallthru
      _
    %p191 = scmp.le.s32.totalorder 1, %s10
    %p192 = scmp.lt.s32.totalorder %s10, 5
    %p193 = pnand %p191, %p192
    %p194 = pneg %p193
    // Predicated region
    $region33: #{preact_bottleneck_forward.9} parent=5 // pred_check
      _
    $region34: #{preact_bottleneck_forward.9} parent=5 // pred_check_branch
      %196 = sbr.rel (%p193) target = $region36
    $region35: #{preact_bottleneck_forward.9} parent=5 // pred_region
      %s197 = ssub.s32 %s10, 1
      %s198 = smul.u32 32, %s22
      %p199 = scmp.lt.s32.totalorder %s20, 1
      %s200 = scalar_select %p199, %s20, 1
      %p201 = scmp.lt.s32.totalorder %s198, 31
      %s202 = scalar_select %p201, %s198, 31
      %s203 = smul.addr %s200, 32
      %s204 = sadd.s32 %s202, %s203
      %s205 = smul.addr %s204, 4
      %s206 = scalar_lea.vmem %s0, %s205
      %p207 = pneg %p57
      %p208 = pneg %p54
      %p209 = pneg %p78
      %p210 = pneg %p75
      %p211 = pneg %p99
      %p212 = pneg %p96
      %p213 = pneg %p120
      %p214 = pneg %p117
      %p215 = pneg %p150
      %p216 = pneg %p147
      %s217 = smul.u32 %s22, %s21
      %s218 = smul.u32 32, %s217
      %p219 = scmp.lt.s32.totalorder %s20, 1
      %s220 = scalar_select %p219, %s20, 1
      %p221 = scmp.lt.s32.totalorder %s218, 31
      %s222 = scalar_select %p221, %s218, 31
      %s223 = smul.addr %s220, 32
      %s224 = sadd.s32 %s222, %s223
      %s225 = smul.addr %s224, 4
      %s226 = scalar_lea.vmem %s4, %s225
      %s227 = smul.u32 32, %s22
      %p228 = scmp.lt.s32.totalorder %s20, 1
      %s229 = scalar_select %p228, %s20, 1
      %p230 = scmp.lt.s32.totalorder %s227, 31
      %s231 = scalar_select %p230, %s227, 31
      %s232 = smul.addr %s229, 32
      %s233 = sadd.s32 %s231, %s232
      %s234 = smul.addr %s233, 4
      %s235 = scalar_lea.vmem %s0, %s234
      %s236 = smul.u32 32, %s22
      %s237 = smul.u32 %s22, %s21
      %s238 = smul.u32 32, %s237
      %p239 = scmp.lt.s32.totalorder %s20, 1
      %s240 = scalar_select %p239, %s20, 1
      %p241 = scmp.lt.s32.totalorder %s238, 31
      %s242 = scalar_select %p241, %s238, 31
      %s243 = smul.addr %s240, 32
      %s244 = sadd.s32 %s242, %s243
      %s245 = smul.addr %s244, 4
      %s246 = scalar_lea.vmem %s4, %s245
      %s247 = smul.u32 %s22, %s21
      %s248 = smul.u32 32, %s247
      %p249 = scmp.eq.s32.totalorder %s21, 0
      %p250 = scmp.eq.s32.totalorder %s22, 0
      %p251 = pnand %p249, %p250
      %p252 = pneg %p251
      // Predicated region
      $region37: #{preact_bottleneck_forward.9} parent=35 // pred_check
        _
      $region38: #{preact_bottleneck_forward.9} parent=35 // pred_check_branch
        %254 = sbr.rel (%p251) target = $region40
      $region39: #{preact_bottleneck_forward.9} parent=35 // pred_region
        %255 = vst [vmem:[#allocation2] sm:$0xff] 0.0
      $region40: #{preact_bottleneck_forward.9} parent=35 // pred_fallthru
        _
      %v256 = vld [vmem:[%s235] sm:$0xf]
      %v257 = vld [vmem:[%s235 + $0x4] sm:$0xf]
      %v258 = vld [vmem:[%s235 + $0x8] sm:$0xf]
      %v259 = vld [vmem:[%s235 + $0xc] sm:$0xf]
      %v260 = vld [vmem:[%s235 + $0x10] sm:$0xf]
      %v261 = vld [vmem:[%s235 + $0x14] sm:$0xf]
      %v262 = vld [vmem:[%s235 + $0x18] sm:$0xf]
      %v263 = vld [vmem:[%s235 + $0x1c] sm:$0xf]
      %v264 = vld [vmem:[%s235 + $0x20] sm:$0xf]
      %v265 = vld [vmem:[%s235 + $0x24] sm:$0xf]
      %v266 = vld [vmem:[%s235 + $0x28] sm:$0xf]
      %v267 = vld [vmem:[%s235 + $0x2c] sm:$0xf]
      %v268 = vld [vmem:[%s235 + $0x30] sm:$0xf]
      %v269 = vld [vmem:[%s235 + $0x34] sm:$0xf]
      %v270 = vld [vmem:[%s235 + $0x38] sm:$0xf]
      %v271 = vld [vmem:[%s235 + $0x3c] sm:$0xf]
      %v272 = vld [vmem:[%s235 + $0x40] sm:$0xf]
      %v273 = vld [vmem:[%s235 + $0x44] sm:$0xf]
      %v274 = vld [vmem:[%s235 + $0x48] sm:$0xf]
      %v275 = vld [vmem:[%s235 + $0x4c] sm:$0xf]
      %v276 = vld [vmem:[%s235 + $0x50] sm:$0xf]
      %v277 = vld [vmem:[%s235 + $0x54] sm:$0xf]
      %v278 = vld [vmem:[%s235 + $0x58] sm:$0xf]
      %v279 = vld [vmem:[%s235 + $0x5c] sm:$0xf]
      %v280 = vld [vmem:[%s235 + $0x60] sm:$0xf]
      %v281 = vld [vmem:[%s235 + $0x64] sm:$0xf]
      %v282 = vld [vmem:[%s235 + $0x68] sm:$0xf]
      %v283 = vld [vmem:[%s235 + $0x6c] sm:$0xf]
      %v284 = vld [vmem:[%s235 + $0x70] sm:$0xf]
      %v285 = vld [vmem:[%s235 + $0x74] sm:$0xf]
      %v286 = vld [vmem:[%s235 + $0x78] sm:$0xf]
      %v287 = vld [vmem:[%s235 + $0x7c] sm:$0xf]
      %v288 = vunpack.c.l.bf16 %v256
      %v289 = vunpack.c.l.bf16 %v257
      %v290 = vunpack.c.l.bf16 %v258
      %v291 = vunpack.c.l.bf16 %v259
      %v292 = vunpack.c.l.bf16 %v260
      %v293 = vunpack.c.l.bf16 %v261
      %v294 = vunpack.c.l.bf16 %v262
      %v295 = vunpack.c.l.bf16 %v263
      %v296 = vunpack.c.l.bf16 %v264
      %v297 = vunpack.c.l.bf16 %v265
      %v298 = vunpack.c.l.bf16 %v266
      %v299 = vunpack.c.l.bf16 %v267
      %v300 = vunpack.c.l.bf16 %v268
      %v301 = vunpack.c.l.bf16 %v269
      %v302 = vunpack.c.l.bf16 %v270
      %v303 = vunpack.c.l.bf16 %v271
      %v304 = vunpack.c.l.bf16 %v272
      %v305 = vunpack.c.l.bf16 %v273
      %v306 = vunpack.c.l.bf16 %v274
      %v307 = vunpack.c.l.bf16 %v275
      %v308 = vunpack.c.l.bf16 %v276
      %v309 = vunpack.c.l.bf16 %v277
      %v310 = vunpack.c.l.bf16 %v278
      %v311 = vunpack.c.l.bf16 %v279
      %v312 = vunpack.c.l.bf16 %v280
      %v313 = vunpack.c.l.bf16 %v281
      %v314 = vunpack.c.l.bf16 %v282
      %v315 = vunpack.c.l.bf16 %v283
      %v316 = vunpack.c.l.bf16 %v284
      %v317 = vunpack.c.l.bf16 %v285
      %v318 = vunpack.c.l.bf16 %v286
      %v319 = vunpack.c.l.bf16 %v287
      // Predicated region
      $region41: #{preact_bottleneck_forward.9} parent=35 // pred_check
        %p320 = pneg %p249
      $region42: #{preact_bottleneck_forward.9} parent=35 // pred_check_branch
        %322 = sbr.rel (%p320) target = $region44
      $region43: #{preact_bottleneck_forward.9} parent=35 // pred_region
        %v323 = vld [vmem:[#allocation2] sm:$0x1]
        %v324 = vadd.f32 %v288, %v289
        %v325 = vadd.f32 %v324, %v290
        %v326 = vadd.f32 %v325, %v291
        %v327 = vadd.f32 %v326, %v292
        %v328 = vadd.f32 %v327, %v293
        %v329 = vadd.f32 %v328, %v294
        %v330 = vadd.f32 %v329, %v295
        %v331 = vadd.f32 %v330, %v296
        %v332 = vadd.f32 %v331, %v297
        %v333 = vadd.f32 %v332, %v298
        %v334 = vadd.f32 %v333, %v299
        %v335 = vadd.f32 %v334, %v300
        %v336 = vadd.f32 %v335, %v301
        %v337 = vadd.f32 %v336, %v302
        %v338 = vadd.f32 %v337, %v303
        %v339 = vadd.f32 %v338, %v304
        %v340 = vadd.f32 %v339, %v305
        %v341 = vadd.f32 %v340, %v306
        %v342 = vadd.f32 %v341, %v307
        %v343 = vadd.f32 %v342, %v308
        %v344 = vadd.f32 %v343, %v309
        %v345 = vadd.f32 %v344, %v310
        %v346 = vadd.f32 %v345, %v311
        %v347 = vadd.f32 %v346, %v312
        %v348 = vadd.f32 %v347, %v313
        %v349 = vadd.f32 %v348, %v314
        %v350 = vadd.f32 %v349, %v315
        %v351 = vadd.f32 %v350, %v316
        %v352 = vadd.f32 %v351, %v317
        %v353 = vadd.f32 %v352, %v318
        %v354 = vadd.f32 %v353, %v319
        %v355 = vrot.slane %v354, 4
        %v356 = vadd.f32 %v354, %v355
        %v357 = vrot.slane %v356, 2
        %v358 = vadd.f32 %v356, %v357
        %v359 = vrot.slane %v358, 1
        %v360 = vadd.f32 %v358, %v359
        %v361 = vadd.f32 %v323, %v360
        %362 = vst [vmem:[#allocation2] sm:$0x1] %v361
        %v363 = vld [vmem:[#allocation2 + $0x1] sm:$0x1]
        %v364 = vmul.f32 %v288, %v288
        %v365 = vmul.f32 %v289, %v289
        %v366 = vmul.f32 %v290, %v290
        %v367 = vmul.f32 %v291, %v291
        %v368 = vmul.f32 %v292, %v292
        %v369 = vmul.f32 %v293, %v293
        %v370 = vmul.f32 %v294, %v294
        %v371 = vmul.f32 %v295, %v295
        %v372 = vmul.f32 %v296, %v296
        %v373 = vmul.f32 %v297, %v297
        %v374 = vmul.f32 %v298, %v298
        %v375 = vmul.f32 %v299, %v299
        %v376 = vmul.f32 %v300, %v300
        %v377 = vmul.f32 %v301, %v301
        %v378 = vmul.f32 %v302, %v302
        %v379 = vmul.f32 %v303, %v303
        %v380 = vmul.f32 %v304, %v304
        %v381 = vmul.f32 %v305, %v305
        %v382 = vmul.f32 %v306, %v306
        %v383 = vmul.f32 %v307, %v307
        %v384 = vmul.f32 %v308, %v308
        %v385 = vmul.f32 %v309, %v309
        %v386 = vmul.f32 %v310, %v310
        %v387 = vmul.f32 %v311, %v311
        %v388 = vmul.f32 %v312, %v312
        %v389 = vmul.f32 %v313, %v313
        %v390 = vmul.f32 %v314, %v314
        %v391 = vmul.f32 %v315, %v315
        %v392 = vmul.f32 %v316, %v316
        %v393 = vmul.f32 %v317, %v317
        %v394 = vmul.f32 %v318, %v318
        %v395 = vmul.f32 %v319, %v319
        %v396 = vadd.f32 %v364, %v365
        %v397 = vadd.f32 %v396, %v366
        %v398 = vadd.f32 %v397, %v367
        %v399 = vadd.f32 %v398, %v368
        %v400 = vadd.f32 %v399, %v369
        %v401 = vadd.f32 %v400, %v370
        %v402 = vadd.f32 %v401, %v371
        %v403 = vadd.f32 %v402, %v372
        %v404 = vadd.f32 %v403, %v373
        %v405 = vadd.f32 %v404, %v374
        %v406 = vadd.f32 %v405, %v375
        %v407 = vadd.f32 %v406, %v376
        %v408 = vadd.f32 %v407, %v377
        %v409 = vadd.f32 %v408, %v378
        %v410 = vadd.f32 %v409, %v379
        %v411 = vadd.f32 %v410, %v380
        %v412 = vadd.f32 %v411, %v381
        %v413 = vadd.f32 %v412, %v382
        %v414 = vadd.f32 %v413, %v383
        %v415 = vadd.f32 %v414, %v384
        %v416 = vadd.f32 %v415, %v385
        %v417 = vadd.f32 %v416, %v386
        %v418 = vadd.f32 %v417, %v387
        %v419 = vadd.f32 %v418, %v388
        %v420 = vadd.f32 %v419, %v389
        %v421 = vadd.f32 %v420, %v390
        %v422 = vadd.f32 %v421, %v391
        %v423 = vadd.f32 %v422, %v392
        %v424 = vadd.f32 %v423, %v393
        %v425 = vadd.f32 %v424, %v394
        %v426 = vadd.f32 %v425, %v395
        %v427 = vrot.slane %v426, 4
        %v428 = vadd.f32 %v426, %v427
        %v429 = vrot.slane %v428, 2
        %v430 = vadd.f32 %v428, %v429
        %v431 = vrot.slane %v430, 1
        %v432 = vadd.f32 %v430, %v431
        %v433 = vadd.f32 %v363, %v432
        %434 = vst [vmem:[#allocation2 + $0x1] sm:$0x1] %v433
      $region44: #{preact_bottleneck_forward.9} parent=35 // pred_fallthru
        _
      %p435 = scmp.eq.s32.totalorder %s21, 1
      %p436 = pnand %p435, %p250
      %p437 = pneg %p436
      // Predicated region
      $region45: #{preact_bottleneck_forward.9} parent=35 // pred_check
        _
      $region46: #{preact_bottleneck_forward.9} parent=35 // pred_check_branch
        %439 = sbr.rel (%p436) target = $region48
      $region47: #{preact_bottleneck_forward.9} parent=35 // pred_region
        %v440 = vld [vmem:[#allocation2] sm:$0xff]
        %v441 = vld [vmem:[%s3] sm:$0xff]
        %v442 = vld [vmem:[%s3 + $0x8] sm:$0xff]
        %v443 = vld [vmem:[%s3 + $0x10] sm:$0xff]
        %v444 = vld [vmem:[%s3 + $0x18] sm:$0xff]
        %v445 = vld [vmem:[%s3 + $0x20] sm:$0xff]
        %v446 = vld [vmem:[%s3 + $0x28] sm:$0xff]
        %v447 = vld [vmem:[%s3 + $0x30] sm:$0xff]
        %v448 = vld [vmem:[%s3 + $0x38] sm:$0xff]
        %v449 = vld [vmem:[%s3 + $0x40] sm:$0xff]
        %v450 = vld [vmem:[%s3 + $0x48] sm:$0xff]
        %v451 = vld [vmem:[%s3 + $0x50] sm:$0xff]
        %v452 = vld [vmem:[%s3 + $0x58] sm:$0xff]
        %v453 = vld [vmem:[%s3 + $0x60] sm:$0xff]
        %v454 = vld [vmem:[%s3 + $0x68] sm:$0xff]
        %v455 = vld [vmem:[%s3 + $0x70] sm:$0xff]
        %v456 = vld [vmem:[%s3 + $0x78] sm:$0xff]
        %457 = vmatpush.msra.mxu0 %v456
        %458 = vmatpush.msra.mxu0 %v455
        %459 = vmatpush.msra.mxu0 %v454
        %460 = vmatpush.msra.mxu0 %v453
        %461 = vmatpush.msra.mxu0 %v452
        %462 = vmatpush.msra.mxu0 %v451
        %463 = vmatpush.msra.mxu0 %v450
        %464 = vmatpush.msra.mxu0 %v449
        %465 = vmatpush.msra.mxu0 %v448
        %466 = vmatpush.msra.mxu0 %v447
        %467 = vmatpush.msra.mxu0 %v446
        %468 = vmatpush.msra.mxu0 %v445
        %469 = vmatpush.msra.mxu0 %v444
        %470 = vmatpush.msra.mxu0 %v443
        %471 = vmatpush.msra.mxu0 %v442
        %472 = vmatpush.msra.mxu0 %v441
        %473 = vmatmul.f32.gmra.mxu0 %v440
        %v474 = vpop.f32.mrf.mxu0
        %v475 = vadd.f32 0.0, %v474
        %476 = vdwg.mxu0
        %v477 = vmul.f32 %v475, %v475
        %v479 = vrot.slane %v477, 7
        %v481 = vsub.f32 %v475, %v479
        %v482 = vmax.f32 %v481, 0.0
        %v483 = vadd.f32 %v482, 1e-06
        %v484 = vrsqrt.pop %v483
        %v485 = vmul.f32 %v484, %v483
        %v486 = vmul.f32 %v485, %v484
        %v487 = vmul.f32 0.5, %v486
        %v488 = vsub.f32 1.5, %v487
        %v489 = vmul.f32 %v484, %v488
        %vm490 = vweird.f32 %v483
        %vm491 = vweird.f32 %v484
        %vm492 = vmor %vm490, %vm491
        %v493 = vsel %vm492, %v484, %v489
        %v494 = vld [vmem:[%s1] sm:$0x1]
        %v496 = vperm.slane %v494, 0
        %v498 = vmul.f32 %v493, %v496
        %499 = vst [vmem:[#allocation3 - $0x1] sm:$0x2] %v498
        %v500 = vld [vmem:[%s2] sm:$0x1]
        %v502 = vrot.slane %v498, 1
        %v504 = vmul.f32 %v475, %v502
        %v505 = vsub.f32 %v500, %v504
        %506 = vst [vmem:[#allocation3 + $0x1] sm:$0x1] %v505
      $region48: #{preact_bottleneck_forward.9} parent=35 // pred_fallthru
        _
      // Predicated region
      $region49: #{preact_bottleneck_forward.9} parent=35 // pred_check
        %p507 = pneg %p435
      $region50: #{preact_bottleneck_forward.9} parent=35 // pred_check_branch
        %509 = sbr.rel (%p507) target = $region52
      $region51: #{preact_bottleneck_forward.9} parent=35 // pred_region
        %v510 = vld [vmem:[#allocation3] sm:$0x1]
        %v511 = vperm.slane %v510, 0
        %v512 = vmul.f32 %v288, %v511
        %v513 = vmul.f32 %v289, %v511
        %v514 = vmul.f32 %v290, %v511
        %v515 = vmul.f32 %v291, %v511
        %v516 = vmul.f32 %v292, %v511
        %v517 = vmul.f32 %v293, %v511
        %v518 = vmul.f32 %v294, %v511
        %v519 = vmul.f32 %v295, %v511
        %v520 = vmul.f32 %v296, %v511
        %v521 = vmul.f32 %v297, %v511
        %v522 = vmul.f32 %v298, %v511
        %v523 = vmul.f32 %v299, %v511
        %v524 = vmul.f32 %v300, %v511
        %v525 = vmul.f32 %v301, %v511
        %v526 = vmul.f32 %v302, %v511
        %v527 = vmul.f32 %v303, %v511
        %v528 = vmul.f32 %v304, %v511
        %v529 = vmul.f32 %v305, %v511
        %v530 = vmul.f32 %v306, %v511
        %v531 = vmul.f32 %v307, %v511
        %v532 = vmul.f32 %v308, %v511
        %v533 = vmul.f32 %v309, %v511
        %v534 = vmul.f32 %v310, %v511
        %v535 = vmul.f32 %v311, %v511
        %v536 = vmul.f32 %v312, %v511
        %v537 = vmul.f32 %v313, %v511
        %v538 = vmul.f32 %v314, %v511
        %v539 = vmul.f32 %v315, %v511
        %v540 = vmul.f32 %v316, %v511
        %v541 = vmul.f32 %v317, %v511
        %v542 = vmul.f32 %v318, %v511
        %v543 = vmul.f32 %v319, %v511
        %v544 = vld [vmem:[#allocation3 + $0x1] sm:$0x1]
        %v545 = vperm.slane %v544, 0
        %v546 = vadd.f32 %v512, %v545
        %v547 = vadd.f32 %v513, %v545
        %v548 = vadd.f32 %v514, %v545
        %v549 = vadd.f32 %v515, %v545
        %v550 = vadd.f32 %v516, %v545
        %v551 = vadd.f32 %v517, %v545
        %v552 = vadd.f32 %v518, %v545
        %v553 = vadd.f32 %v519, %v545
        %v554 = vadd.f32 %v520, %v545
        %v555 = vadd.f32 %v521, %v545
        %v556 = vadd.f32 %v522, %v545
        %v557 = vadd.f32 %v523, %v545
        %v558 = vadd.f32 %v524, %v545
        %v559 = vadd.f32 %v525, %v545
        %v560 = vadd.f32 %v526, %v545
        %v561 = vadd.f32 %v527, %v545
        %v562 = vadd.f32 %v528, %v545
        %v563 = vadd.f32 %v529, %v545
        %v564 = vadd.f32 %v530, %v545
        %v565 = vadd.f32 %v531, %v545
        %v566 = vadd.f32 %v532, %v545
        %v567 = vadd.f32 %v533, %v545
        %v568 = vadd.f32 %v534, %v545
        %v569 = vadd.f32 %v535, %v545
        %v570 = vadd.f32 %v536, %v545
        %v571 = vadd.f32 %v537, %v545
        %v572 = vadd.f32 %v538, %v545
        %v573 = vadd.f32 %v539, %v545
        %v574 = vadd.f32 %v540, %v545
        %v575 = vadd.f32 %v541, %v545
        %v576 = vadd.f32 %v542, %v545
        %v577 = vadd.f32 %v543, %v545
        %v578 = vmax.f32 %v546, 0.0
        %v579 = vmax.f32 %v547, 0.0
        %v580 = vmax.f32 %v548, 0.0
        %v581 = vmax.f32 %v549, 0.0
        %v582 = vmax.f32 %v550, 0.0
        %v583 = vmax.f32 %v551, 0.0
        %v584 = vmax.f32 %v552, 0.0
        %v585 = vmax.f32 %v553, 0.0
        %v586 = vmax.f32 %v554, 0.0
        %v587 = vmax.f32 %v555, 0.0
        %v588 = vmax.f32 %v556, 0.0
        %v589 = vmax.f32 %v557, 0.0
        %v590 = vmax.f32 %v558, 0.0
        %v591 = vmax.f32 %v559, 0.0
        %v592 = vmax.f32 %v560, 0.0
        %v593 = vmax.f32 %v561, 0.0
        %v594 = vmax.f32 %v562, 0.0
        %v595 = vmax.f32 %v563, 0.0
        %v596 = vmax.f32 %v564, 0.0
        %v597 = vmax.f32 %v565, 0.0
        %v598 = vmax.f32 %v566, 0.0
        %v599 = vmax.f32 %v567, 0.0
        %v600 = vmax.f32 %v568, 0.0
        %v601 = vmax.f32 %v569, 0.0
        %v602 = vmax.f32 %v570, 0.0
        %v603 = vmax.f32 %v571, 0.0
        %v604 = vmax.f32 %v572, 0.0
        %v605 = vmax.f32 %v573, 0.0
        %v606 = vmax.f32 %v574, 0.0
        %v607 = vmax.f32 %v575, 0.0
        %v608 = vmax.f32 %v576, 0.0
        %v609 = vmax.f32 %v577, 0.0
        %v610 = vpack.c.bf16 %v578, %v578
        %v611 = vpack.c.bf16 %v579, %v579
        %v612 = vpack.c.bf16 %v580, %v580
        %v613 = vpack.c.bf16 %v581, %v581
        %v614 = vpack.c.bf16 %v582, %v582
        %v615 = vpack.c.bf16 %v583, %v583
        %v616 = vpack.c.bf16 %v584, %v584
        %v617 = vpack.c.bf16 %v585, %v585
        %v618 = vpack.c.bf16 %v586, %v586
        %v619 = vpack.c.bf16 %v587, %v587
        %v620 = vpack.c.bf16 %v588, %v588
        %v621 = vpack.c.bf16 %v589, %v589
        %v622 = vpack.c.bf16 %v590, %v590
        %v623 = vpack.c.bf16 %v591, %v591
        %v624 = vpack.c.bf16 %v592, %v592
        %v625 = vpack.c.bf16 %v593, %v593
        %v626 = vpack.c.bf16 %v594, %v594
        %v627 = vpack.c.bf16 %v595, %v595
        %v628 = vpack.c.bf16 %v596, %v596
        %v629 = vpack.c.bf16 %v597, %v597
        %v630 = vpack.c.bf16 %v598, %v598
        %v631 = vpack.c.bf16 %v599, %v599
        %v632 = vpack.c.bf16 %v600, %v600
        %v633 = vpack.c.bf16 %v601, %v601
        %v634 = vpack.c.bf16 %v602, %v602
        %v635 = vpack.c.bf16 %v603, %v603
        %v636 = vpack.c.bf16 %v604, %v604
        %v637 = vpack.c.bf16 %v605, %v605
        %v638 = vpack.c.bf16 %v606, %v606
        %v639 = vpack.c.bf16 %v607, %v607
        %v640 = vpack.c.bf16 %v608, %v608
        %v641 = vpack.c.bf16 %v609, %v609
        %642 = vst [vmem:[%s246] sm:$0xf] %v610
        %643 = vst [vmem:[%s246 + $0x4] sm:$0xf] %v611
        %644 = vst [vmem:[%s246 + $0x8] sm:$0xf] %v612
        %645 = vst [vmem:[%s246 + $0xc] sm:$0xf] %v613
        %646 = vst [vmem:[%s246 + $0x10] sm:$0xf] %v614
        %647 = vst [vmem:[%s246 + $0x14] sm:$0xf] %v615
        %648 = vst [vmem:[%s246 + $0x18] sm:$0xf] %v616
        %649 = vst [vmem:[%s246 + $0x1c] sm:$0xf] %v617
        %650 = vst [vmem:[%s246 + $0x20] sm:$0xf] %v618
        %651 = vst [vmem:[%s246 + $0x24] sm:$0xf] %v619
        %652 = vst [vmem:[%s246 + $0x28] sm:$0xf] %v620
        %653 = vst [vmem:[%s246 + $0x2c] sm:$0xf] %v621
        %654 = vst [vmem:[%s246 + $0x30] sm:$0xf] %v622
        %655 = vst [vmem:[%s246 + $0x34] sm:$0xf] %v623
        %656 = vst [vmem:[%s246 + $0x38] sm:$0xf] %v624
        %657 = vst [vmem:[%s246 + $0x3c] sm:$0xf] %v625
        %658 = vst [vmem:[%s246 + $0x40] sm:$0xf] %v626
        %659 = vst [vmem:[%s246 + $0x44] sm:$0xf] %v627
        %660 = vst [vmem:[%s246 + $0x48] sm:$0xf] %v628
        %661 = vst [vmem:[%s246 + $0x4c] sm:$0xf] %v629
        %662 = vst [vmem:[%s246 + $0x50] sm:$0xf] %v630
        %663 = vst [vmem:[%s246 + $0x54] sm:$0xf] %v631
        %664 = vst [vmem:[%s246 + $0x58] sm:$0xf] %v632
        %665 = vst [vmem:[%s246 + $0x5c] sm:$0xf] %v633
        %666 = vst [vmem:[%s246 + $0x60] sm:$0xf] %v634
        %667 = vst [vmem:[%s246 + $0x64] sm:$0xf] %v635
        %668 = vst [vmem:[%s246 + $0x68] sm:$0xf] %v636
        %669 = vst [vmem:[%s246 + $0x6c] sm:$0xf] %v637
        %670 = vst [vmem:[%s246 + $0x70] sm:$0xf] %v638
        %671 = vst [vmem:[%s246 + $0x74] sm:$0xf] %v639
        %672 = vst [vmem:[%s246 + $0x78] sm:$0xf] %v640
        %673 = vst [vmem:[%s246 + $0x7c] sm:$0xf] %v641
      $region52: #{preact_bottleneck_forward.9} parent=35 // pred_fallthru
        _
      %s674 = smul.u32 %s22, %s21
      %s675 = smul.u32 32, %s674
      %p676 = scmp.lt.s32.totalorder %s20, 1
      %s677 = scalar_select %p676, %s20, 1
      %p678 = scmp.lt.s32.totalorder %s675, 31
      %s679 = scalar_select %p678, %s675, 31
      %s680 = smul.addr %s677, 32
      %s681 = sadd.s32 %s679, %s680
      %s682 = smul.addr %s681, 4
      %s683 = scalar_lea.vmem %s4, %s682
      // Predicated region
      $region53: #{preact_bottleneck_forward.9} parent=35 // pred_check
        %p684 = pneg %p147
      $region54: #{preact_bottleneck_forward.9} parent=35 // pred_check_branch
        %686 = sbr.rel (%p684) target = $region56
      $region55: #{preact_bottleneck_forward.9} parent=35 // pred_region
        %s687 = smul.u32 %s22, %s21
        %s688 = smul.u32 32, %s687
      $region56: #{preact_bottleneck_forward.9} parent=35 // pred_fallthru
        _
    $region36: #{preact_bottleneck_forward.9} parent=5 // pred_fallthru
      _
    %p689 = scmp.le.s32.totalorder 2, %s10
    // Predicated region
    $region57: #{preact_bottleneck_forward.9} parent=5 // pred_check
      %p690 = pneg %p689
    $region58: #{preact_bottleneck_forward.9} parent=5 // pred_check_branch
      %692 = sbr.rel (%p690) target = $region60
    $region59: #{preact_bottleneck_forward.9} parent=5 // pred_region
      %s693 = ssub.s32 %s10, 2
      // Predicated region
      $region61: #{preact_bottleneck_forward.9} parent=59 // pred_check
        %p694 = pneg %p153
      $region62: #{preact_bottleneck_forward.9} parent=59 // pred_check_branch
        %696 = sbr.rel (%p694) target = $region64
      $region63: #{preact_bottleneck_forward.9} parent=59 // pred_region
        %s697 = smul.u32 %s25, %s24
        %s698 = smul.u32 32, %s697
        %p699 = scmp.lt.s32.totalorder %s23, 1
        %s700 = scalar_select %p699, %s23, 1
        %p701 = scmp.lt.s32.totalorder %s698, 31
        %s702 = scalar_select %p701, %s698, 31
        %s703 = smul.addr %s700, 32
        %s704 = sadd.s32 %s702, %s703
        %s705 = smul.addr %s704, 4
        %s706 = scalar_lea.vmem %s4, %s705
      $region64: #{preact_bottleneck_forward.9} parent=59 // pred_fallthru
        _
    $region60: #{preact_bottleneck_forward.9} parent=5 // pred_fallthru
      _
  $region6: #{preact_bottleneck_forward.9} parent=0 // loop_footer
    %s14 = sadd.s32 1, %s10
  $region7: #{preact_bottleneck_forward.9} parent=0 // loop_footer_branch
    %9 = sbr.rel target = $region3
  $region8: #{preact_bottleneck_forward.9} parent=0 // loop_exit
    _

// kernel: preact_bottleneck_forward.8
$region0: #{preact_bottleneck_forward.8}
  #allocation0 [shape = 'u32[]', space=smem, size = 0x4, offset = 0x4, fixed_abs, tag = 'smem constant byte address 0x4 - core index']
  #allocation1 [shape = 'u32[72,128]{1,0:T(1,128)}', space=vmem, size = 0x9000, scoped, tag = 'internal scratch']
  #allocation2 [shape = 'f32[256,128]{1,0:T(8,128)}', space=vmem, size = 0x20000, scoped, tag = 'scratch operand']
  %s0 = inlined_call_operand.vmem [shape: bf16[512,64], index: 0, kind: input, shape index: {}]
  %s1 = inlined_call_operand.vmem [shape: bf16[64,128], index: 1, kind: input, shape index: {}]
  %s2 = inlined_call_operand.vmem [shape: bf16[512,128], index: 2, kind: output, shape index: {}]
  %s3 = sld [smem:[#allocation0]]
  $region49: #{preact_bottleneck_forward.8} parent=0
    _
  %s5 = ssub.s32 1, %s3
  %s6 = scalar_select 0, %s5, %s3
  loop: start=0, step=1, limit=4
  $region2: #{preact_bottleneck_forward.8} parent=0 // loop_pre_header
    _
  $region3: #{preact_bottleneck_forward.8} parent=0 // loop_header
    %s8 = sphi 0, %s12
    %p9 = scmp.ge.s32.totalorder %s8, 4
    %s15 = sphi 0, %s34
    %s16 = sphi 0, %s30
    %s17 = sphi 0, %s26
    %s18 = sphi 0, %s15
    %s19 = sphi 0, %s16
    %s20 = sphi 0, %s17
    %s21 = sphi 0, %s18
    %s22 = sphi 0, %s19
    %s23 = sphi 0, %s20
    %s39 = sphi 0, %s41
    %s42 = sphi 0, %s39
    %s43 = sphi 0, %s42
    %s59 = sphi 0, %s43
    %s67 = sphi 0, %s69
    %s70 = sphi 0, %s67
    %s71 = sphi 0, %s70
    %s87 = sphi 0, %s71
    %s95 = sphi 0, %s97
    %s98 = sphi 0, %s95
    %s99 = sphi 0, %s98
    %s115 = sphi 0, %s99
  $region4: #{preact_bottleneck_forward.8} parent=0 // loop_header_branch
    %11 = sbr.rel (%p9) target = $region8
  $region5: #{preact_bottleneck_forward.8} parent=0 // loop_body
    %s13 = ssub.s32 %s8, 1
    %s14 = ssub.s32 %s8, 2
    %s24 = sadd.s32 1, %s17
    %p25 = scmp.ge.s32.totalorder %s24, 1
    %s26 = scalar_select %p25, 0, %s24
    %s27 = sadd.s32 1, %s16
    %s28 = scalar_select %p25, %s27, %s16
    %p29 = scmp.ge.s32.totalorder %s28, 1
    %s30 = scalar_select %p29, 0, %s28
    %s31 = sadd.s32 1, %s15
    %s32 = scalar_select %p29, %s31, %s15
    %p33 = scmp.ge.s32.totalorder %s32, 2
    %s34 = scalar_select %p33, 0, %s32
    %s35 = ssub.s32 %s15, %s34
    %s36 = ssub.s32 %s17, %s26
    %s37 = sor.u32 %s35, %s36
    %p38 = scmp.eq.s32.totalorder %s37, 0
    %s40 = sadd.s32 %s39, 1
    %s41 = scalar_select %p38, %s39, %s40
    %p44 = pneg %p38
    %p45 = scmp.eq.s32.totalorder %s8, 1
    %p46 = por %p44, %p45
    %p47 = scmp.ne.s32.totalorder %s39, %s42
    %p48 = scmp.eq.s32.totalorder %s8, 0
    %p49 = por %p47, %p48
    %p50 = scmp.ne.s32.totalorder %s39, %s42
    %p51 = scmp.eq.s32.totalorder %s13, 1
    %p52 = por %p50, %p51
    %p53 = scmp.ne.s32.totalorder %s42, %s43
    %p54 = scmp.eq.s32.totalorder %s13, 0
    %p55 = por %p53, %p54
    %p56 = scmp.ne.s32.totalorder %s42, %s43
    %p57 = scmp.eq.s32.totalorder %s14, 1
    %p58 = por %p56, %p57
    %p60 = scmp.ne.s32.totalorder %s43, %s59
    %p61 = scmp.eq.s32.totalorder %s14, 0
    %p62 = por %p60, %p61
    %s63 = ssub.s32 %s17, %s26
    %s64 = ssub.s32 %s16, %s30
    %s65 = sor.u32 %s63, %s64
    %p66 = scmp.eq.s32.totalorder %s65, 0
    %s68 = sadd.s32 %s67, 1
    %s69 = scalar_select %p66, %s67, %s68
    %p72 = pneg %p66
    %p73 = scmp.eq.s32.totalorder %s8, 1
    %p74 = por %p72, %p73
    %p75 = scmp.ne.s32.totalorder %s67, %s70
    %p76 = scmp.eq.s32.totalorder %s8, 0
    %p77 = por %p75, %p76
    %p78 = scmp.ne.s32.totalorder %s67, %s70
    %p79 = scmp.eq.s32.totalorder %s13, 1
    %p80 = por %p78, %p79
    %p81 = scmp.ne.s32.totalorder %s70, %s71
    %p82 = scmp.eq.s32.totalorder %s13, 0
    %p83 = por %p81, %p82
    %p84 = scmp.ne.s32.totalorder %s70, %s71
    %p85 = scmp.eq.s32.totalorder %s14, 1
    %p86 = por %p84, %p85
    %p88 = scmp.ne.s32.totalorder %s71, %s87
    %p89 = scmp.eq.s32.totalorder %s14, 0
    %p90 = por %p88, %p89
    %s91 = ssub.s32 %s15, %s34
    %s92 = ssub.s32 %s16, %s30
    %s93 = sor.u32 %s91, %s92
    %p94 = scmp.eq.s32.totalorder %s93, 0
    %s96 = sadd.s32 %s95, 1
    %s97 = scalar_select %p94, %s95, %s96
    %p100 = pneg %p94
    %p101 = scmp.eq.s32.totalorder %s8, 1
    %p102 = por %p100, %p101
    %p103 = scmp.ne.s32.totalorder %s95, %s98
    %p104 = scmp.eq.s32.totalorder %s8, 0
    %p105 = por %p103, %p104
    %p106 = scmp.ne.s32.totalorder %s95, %s98
    %p107 = scmp.eq.s32.totalorder %s13, 1
    %p108 = por %p106, %p107
    %p109 = scmp.ne.s32.totalorder %s98, %s99
    %p110 = scmp.eq.s32.totalorder %s13, 0
    %p111 = por %p109, %p110
    %p112 = scmp.ne.s32.totalorder %s98, %s99
    %p113 = scmp.eq.s32.totalorder %s14, 1
    %p114 = por %p112, %p113
    %p116 = scmp.ne.s32.totalorder %s99, %s115
    %p117 = scmp.eq.s32.totalorder %s14, 0
    %p118 = por %p116, %p117
    %p119 = scmp.le.s32.totalorder 1, %s8
    %p120 = scmp.lt.s32.totalorder %s8, 3
    %p121 = pnand %p119, %p120
    %p122 = pneg %p121
    // Predicated region
    $region9: #{preact_bottleneck_forward.8} parent=5 // pred_check
      _
    $region10: #{preact_bottleneck_forward.8} parent=5 // pred_check_branch
      %124 = sbr.rel (%p121) target = $region12
    $region11: #{preact_bottleneck_forward.8} parent=5 // pred_region
      %s125 = ssub.s32 %s8, 1
      // Predicated region
      $region13: #{preact_bottleneck_forward.8} parent=11 // pred_check
        %p126 = pneg %p83
      $region14: #{preact_bottleneck_forward.8} parent=11 // pred_check_branch
        %128 = sbr.rel (%p126) target = $region16
      $region15: #{preact_bottleneck_forward.8} parent=11 // pred_region
        %s129 = smul.u32 8, %s20
        %p130 = scmp.lt.s32.totalorder %s129, 7
        %s131 = scalar_select %p130, %s129, 7
        %p132 = scmp.lt.s32.totalorder %s19, 0
        %s133 = scalar_select %p132, %s19, 0
        %s134 = sadd.s32 %s133, %s131
        %s135 = smul.addr %s134, 4
        %s136 = scalar_lea.vmem %s1, %s135
        %s137 = smul.u32 8, %s20
      $region16: #{preact_bottleneck_forward.8} parent=11 // pred_fallthru
        _
    $region12: #{preact_bottleneck_forward.8} parent=5 // pred_fallthru
      _
    %p138 = scmp.lt.s32.totalorder %s8, 2
    // Predicated region
    $region17: #{preact_bottleneck_forward.8} parent=5 // pred_check
      %p139 = pneg %p138
    $region18: #{preact_bottleneck_forward.8} parent=5 // pred_check_branch
      %141 = sbr.rel (%p139) target = $region20
    $region19: #{preact_bottleneck_forward.8} parent=5 // pred_region
      // Predicated region
      $region21: #{preact_bottleneck_forward.8} parent=19 // pred_check
        %p142 = pneg %p49
      $region22: #{preact_bottleneck_forward.8} parent=19 // pred_check_branch
        %144 = sbr.rel (%p142) target = $region24
      $region23: #{preact_bottleneck_forward.8} parent=19 // pred_region
        %s145 = smul.u32 32, %s15
        %p146 = scmp.lt.s32.totalorder %s145, 63
        %s147 = scalar_select %p146, %s145, 63
        %p148 = scmp.lt.s32.totalorder %s17, 0
        %s149 = scalar_select %p148, %s17, 0
        %s150 = sadd.s32 %s149, %s147
        %s151 = smul.addr %s150, 4
        %s152 = scalar_lea.vmem %s0, %s151
        %s153 = smul.u32 32, %s15
      $region24: #{preact_bottleneck_forward.8} parent=19 // pred_fallthru
        _
    $region20: #{preact_bottleneck_forward.8} parent=5 // pred_fallthru
      _
    %p154 = scmp.le.s32.totalorder 1, %s8
    %p155 = scmp.lt.s32.totalorder %s8, 3
    %p156 = pnand %p154, %p155
    %p157 = pneg %p156
    // Predicated region
    $region25: #{preact_bottleneck_forward.8} parent=5 // pred_check
      _
    $region26: #{preact_bottleneck_forward.8} parent=5 // pred_check_branch
      %159 = sbr.rel (%p156) target = $region28
    $region27: #{preact_bottleneck_forward.8} parent=5 // pred_region
      %s160 = ssub.s32 %s8, 1
      %s161 = smul.u32 32, %s18
      %p162 = scmp.lt.s32.totalorder %s161, 63
      %s163 = scalar_select %p162, %s161, 63
      %p164 = scmp.lt.s32.totalorder %s20, 0
      %s165 = scalar_select %p164, %s20, 0
      %s166 = sadd.s32 %s165, %s163
      %s167 = smul.addr %s166, 4
      %s168 = scalar_lea.vmem %s0, %s167
      %p169 = pneg %p55
      %p170 = pneg %p52
      %s171 = smul.u32 8, %s20
      %p172 = scmp.lt.s32.totalorder %s171, 7
      %s173 = scalar_select %p172, %s171, 7
      %p174 = scmp.lt.s32.totalorder %s19, 0
      %s175 = scalar_select %p174, %s19, 0
      %s176 = sadd.s32 %s175, %s173
      %s177 = smul.addr %s176, 4
      %s178 = scalar_lea.vmem %s1, %s177
      %p179 = pneg %p83
      %p180 = pneg %p80
      %p181 = pneg %p111
      %p182 = pneg %p108
      %s183 = smul.u32 32, %s18
      %p184 = scmp.lt.s32.totalorder %s183, 63
      %s185 = scalar_select %p184, %s183, 63
      %p186 = scmp.lt.s32.totalorder %s19, 0
      %s187 = scalar_select %p186, %s19, 0
      %s188 = sadd.s32 %s187, %s185
      %s189 = smul.addr %s188, 4
      %s190 = scalar_lea.vmem %s2, %s189
      %s191 = smul.u32 32, %s18
      %p192 = scmp.lt.s32.totalorder %s191, 63
      %s193 = scalar_select %p192, %s191, 63
      %p194 = scmp.lt.s32.totalorder %s20, 0
      %s195 = scalar_select %p194, %s20, 0
      %s196 = sadd.s32 %s195, %s193
      %s197 = smul.addr %s196, 4
      %s198 = scalar_lea.vmem %s0, %s197
      %s199 = smul.u32 32, %s18
      %s200 = smul.u32 8, %s20
      %p201 = scmp.lt.s32.totalorder %s200, 7
      %s202 = scalar_select %p201, %s200, 7
      %p203 = scmp.lt.s32.totalorder %s19, 0
      %s204 = scalar_select %p203, %s19, 0
      %s205 = sadd.s32 %s204, %s202
      %s206 = smul.addr %s205, 4
      %s207 = scalar_lea.vmem %s1, %s206
      %s208 = smul.u32 8, %s20
      %s209 = smul.u32 32, %s18
      %p210 = scmp.lt.s32.totalorder %s209, 63
      %s211 = scalar_select %p210, %s209, 63
      %p212 = scmp.lt.s32.totalorder %s19, 0
      %s213 = scalar_select %p212, %s19, 0
      %s214 = sadd.s32 %s213, %s211
      %s215 = smul.addr %s214, 4
      %s216 = scalar_lea.vmem %s2, %s215
      %s217 = smul.u32 32, %s18
      %p219 = scmp.eq.s32.totalorder %s20, 0
      // Predicated region
      $region29: #{preact_bottleneck_forward.8} parent=27 // pred_check
        %p220 = pneg %p219
      $region30: #{preact_bottleneck_forward.8} parent=27 // pred_check_branch
        %222 = sbr.rel (%p220) target = $region32
      $region31: #{preact_bottleneck_forward.8} parent=27 // pred_region
        %223 = vst [vmem:[#allocation2] sm:$0xff] 0.0
        %224 = vst [vmem:[#allocation2 + $0x8] sm:$0xff] 0.0
        %225 = vst [vmem:[#allocation2 + $0x10] sm:$0xff] 0.0
        %226 = vst [vmem:[#allocation2 + $0x18] sm:$0xff] 0.0
        %227 = vst [vmem:[#allocation2 + $0x20] sm:$0xff] 0.0
        %228 = vst [vmem:[#allocation2 + $0x28] sm:$0xff] 0.0
        %229 = vst [vmem:[#allocation2 + $0x30] sm:$0xff] 0.0
        %230 = vst [vmem:[#allocation2 + $0x38] sm:$0xff] 0.0
        %231 = vst [vmem:[#allocation2 + $0x40] sm:$0xff] 0.0
        %232 = vst [vmem:[#allocation2 + $0x48] sm:$0xff] 0.0
        %233 = vst [vmem:[#allocation2 + $0x50] sm:$0xff] 0.0
        %234 = vst [vmem:[#allocation2 + $0x58] sm:$0xff] 0.0
        %235 = vst [vmem:[#allocation2 + $0x60] sm:$0xff] 0.0
        %236 = vst [vmem:[#allocation2 + $0x68] sm:$0xff] 0.0
        %237 = vst [vmem:[#allocation2 + $0x70] sm:$0xff] 0.0
        %238 = vst [vmem:[#allocation2 + $0x78] sm:$0xff] 0.0
        %239 = vst [vmem:[#allocation2 + $0x80] sm:$0xff] 0.0
        %240 = vst [vmem:[#allocation2 + $0x88] sm:$0xff] 0.0
        %241 = vst [vmem:[#allocation2 + $0x90] sm:$0xff] 0.0
        %242 = vst [vmem:[#allocation2 + $0x98] sm:$0xff] 0.0
        %243 = vst [vmem:[#allocation2 + $0xa0] sm:$0xff] 0.0
        %244 = vst [vmem:[#allocation2 + $0xa8] sm:$0xff] 0.0
        %245 = vst [vmem:[#allocation2 + $0xb0] sm:$0xff] 0.0
        %246 = vst [vmem:[#allocation2 + $0xb8] sm:$0xff] 0.0
        %247 = vst [vmem:[#allocation2 + $0xc0] sm:$0xff] 0.0
        %248 = vst [vmem:[#allocation2 + $0xc8] sm:$0xff] 0.0
        %249 = vst [vmem:[#allocation2 + $0xd0] sm:$0xff] 0.0
        %250 = vst [vmem:[#allocation2 + $0xd8] sm:$0xff] 0.0
        %251 = vst [vmem:[#allocation2 + $0xe0] sm:$0xff] 0.0
        %252 = vst [vmem:[#allocation2 + $0xe8] sm:$0xff] 0.0
        %253 = vst [vmem:[#allocation2 + $0xf0] sm:$0xff] 0.0
        %254 = vst [vmem:[#allocation2 + $0xf8] sm:$0xff] 0.0
      $region32: #{preact_bottleneck_forward.8} parent=27 // pred_fallthru
        _
      %v255 = vld [vmem:[#allocation2] sm:$0xff]
      %v256 = vld [vmem:[#allocation2 + $0x8] sm:$0xff]
      %v257 = vld [vmem:[#allocation2 + $0x10] sm:$0xff]
      %v258 = vld [vmem:[#allocation2 + $0x18] sm:$0xff]
      %v259 = vld [vmem:[#allocation2 + $0x20] sm:$0xff]
      %v260 = vld [vmem:[#allocation2 + $0x28] sm:$0xff]
      %v261 = vld [vmem:[#allocation2 + $0x30] sm:$0xff]
      %v262 = vld [vmem:[#allocation2 + $0x38] sm:$0xff]
      %v263 = vld [vmem:[#allocation2 + $0x40] sm:$0xff]
      %v264 = vld [vmem:[#allocation2 + $0x48] sm:$0xff]
      %v265 = vld [vmem:[#allocation2 + $0x50] sm:$0xff]
      %v266 = vld [vmem:[#allocation2 + $0x58] sm:$0xff]
      %v267 = vld [vmem:[#allocation2 + $0x60] sm:$0xff]
      %v268 = vld [vmem:[#allocation2 + $0x68] sm:$0xff]
      %v269 = vld [vmem:[#allocation2 + $0x70] sm:$0xff]
      %v270 = vld [vmem:[#allocation2 + $0x78] sm:$0xff]
      %v271 = vld [vmem:[#allocation2 + $0x80] sm:$0xff]
      %v272 = vld [vmem:[#allocation2 + $0x88] sm:$0xff]
      %v273 = vld [vmem:[#allocation2 + $0x90] sm:$0xff]
      %v274 = vld [vmem:[#allocation2 + $0x98] sm:$0xff]
      %v275 = vld [vmem:[#allocation2 + $0xa0] sm:$0xff]
      %v276 = vld [vmem:[#allocation2 + $0xa8] sm:$0xff]
      %v277 = vld [vmem:[#allocation2 + $0xb0] sm:$0xff]
      %v278 = vld [vmem:[#allocation2 + $0xb8] sm:$0xff]
      %v279 = vld [vmem:[#allocation2 + $0xc0] sm:$0xff]
      %v280 = vld [vmem:[#allocation2 + $0xc8] sm:$0xff]
      %v281 = vld [vmem:[#allocation2 + $0xd0] sm:$0xff]
      %v282 = vld [vmem:[#allocation2 + $0xd8] sm:$0xff]
      %v283 = vld [vmem:[#allocation2 + $0xe0] sm:$0xff]
      %v284 = vld [vmem:[#allocation2 + $0xe8] sm:$0xff]
      %v285 = vld [vmem:[#allocation2 + $0xf0] sm:$0xff]
      %v286 = vld [vmem:[#allocation2 + $0xf8] sm:$0xff]
      %v287 = vld [vmem:[%s198] sm:$0xf]
      %v288 = vld [vmem:[%s198 + $0x4] sm:$0xf]
      %v289 = vld [vmem:[%s198 + $0x8] sm:$0xf]
      %v290 = vld [vmem:[%s198 + $0xc] sm:$0xf]
      %v291 = vld [vmem:[%s198 + $0x10] sm:$0xf]
      %v292 = vld [vmem:[%s198 + $0x14] sm:$0xf]
      %v293 = vld [vmem:[%s198 + $0x18] sm:$0xf]
      %v294 = vld [vmem:[%s198 + $0x1c] sm:$0xf]
      %v295 = vld [vmem:[%s198 + $0x20] sm:$0xf]
      %v296 = vld [vmem:[%s198 + $0x24] sm:$0xf]
      %v297 = vld [vmem:[%s198 + $0x28] sm:$0xf]
      %v298 = vld [vmem:[%s198 + $0x2c] sm:$0xf]
      %v299 = vld [vmem:[%s198 + $0x30] sm:$0xf]
      %v300 = vld [vmem:[%s198 + $0x34] sm:$0xf]
      %v301 = vld [vmem:[%s198 + $0x38] sm:$0xf]
      %v302 = vld [vmem:[%s198 + $0x3c] sm:$0xf]
      %v303 = vld [vmem:[%s198 + $0x40] sm:$0xf]
      %v304 = vld [vmem:[%s198 + $0x44] sm:$0xf]
      %v305 = vld [vmem:[%s198 + $0x48] sm:$0xf]
      %v306 = vld [vmem:[%s198 + $0x4c] sm:$0xf]
      %v307 = vld [vmem:[%s198 + $0x50] sm:$0xf]
      %v308 = vld [vmem:[%s198 + $0x54] sm:$0xf]
      %v309 = vld [vmem:[%s198 + $0x58] sm:$0xf]
      %v310 = vld [vmem:[%s198 + $0x5c] sm:$0xf]
      %v311 = vld [vmem:[%s198 + $0x60] sm:$0xf]
      %v312 = vld [vmem:[%s198 + $0x64] sm:$0xf]
      %v313 = vld [vmem:[%s198 + $0x68] sm:$0xf]
      %v314 = vld [vmem:[%s198 + $0x6c] sm:$0xf]
      %v315 = vld [vmem:[%s198 + $0x70] sm:$0xf]
      %v316 = vld [vmem:[%s198 + $0x74] sm:$0xf]
      %v317 = vld [vmem:[%s198 + $0x78] sm:$0xf]
      %v318 = vld [vmem:[%s198 + $0x7c] sm:$0xf]
      %v319 = vld [vmem:[%s207] sm:$0xf]
      %v320 = vld [vmem:[%s207 + $0x4] sm:$0xf]
      %v321 = vld [vmem:[%s207 + $0x8] sm:$0xf]
      %v322 = vld [vmem:[%s207 + $0xc] sm:$0xf]
      %v323 = vld [vmem:[%s207 + $0x10] sm:$0xf]
      %v324 = vld [vmem:[%s207 + $0x14] sm:$0xf]
      %v325 = vld [vmem:[%s207 + $0x18] sm:$0xf]
      %v326 = vld [vmem:[%s207 + $0x1c] sm:$0xf]
      %v359 = vunpack.c.l.b16 %v287
      %v360 = vunpack.c.l.b16 %v288
      %v361 = vunpack.c.l.b16 %v289
      %v362 = vunpack.c.l.b16 %v290
      %v363 = vunpack.c.l.b16 %v291
      %v364 = vunpack.c.l.b16 %v292
      %v365 = vunpack.c.l.b16 %v293
      %v366 = vunpack.c.l.b16 %v294
      %v367 = vunpack.c.l.b16 %v295
      %v368 = vunpack.c.l.b16 %v296
      %v369 = vunpack.c.l.b16 %v297
      %v370 = vunpack.c.l.b16 %v298
      %v371 = vunpack.c.l.b16 %v299
      %v372 = vunpack.c.l.b16 %v300
      %v373 = vunpack.c.l.b16 %v301
      %v374 = vunpack.c.l.b16 %v302
      %v375 = vunpack.c.l.b16 %v303
      %v376 = vunpack.c.l.b16 %v304
      %v377 = vunpack.c.l.b16 %v305
      %v378 = vunpack.c.l.b16 %v306
      %v379 = vunpack.c.l.b16 %v307
      %v380 = vunpack.c.l.b16 %v308
      %v381 = vunpack.c.l.b16 %v309
      %v382 = vunpack.c.l.b16 %v310
      %v383 = vunpack.c.l.b16 %v311
      %v384 = vunpack.c.l.b16 %v312
      %v385 = vunpack.c.l.b16 %v313
      %v386 = vunpack.c.l.b16 %v314
      %v387 = vunpack.c.l.b16 %v315
      %v388 = vunpack.c.l.b16 %v316
      %v389 = vunpack.c.l.b16 %v317
      %v390 = vunpack.c.l.b16 %v318
      %v391 = vpack.c.b16 %v360, %v359
      %v392 = vpack.c.b16 %v362, %v361
      %v393 = vpack.c.b16 %v364, %v363
      %v394 = vpack.c.b16 %v366, %v365
      %v395 = vpack.c.b16 %v368, %v367
      %v396 = vpack.c.b16 %v370, %v369
      %v397 = vpack.c.b16 %v372, %v371
      %v398 = vpack.c.b16 %v374, %v373
      %v399 = vpack.c.b16 %v376, %v375
      %v400 = vpack.c.b16 %v378, %v377
      %v401 = vpack.c.b16 %v380, %v379
      %v402 = vpack.c.b16 %v382, %v381
      %v403 = vpack.c.b16 %v384, %v383
      %v404 = vpack.c.b16 %v386, %v385
      %v405 = vpack.c.b16 %v388, %v387
      %v406 = vpack.c.b16 %v390, %v389
      %v415 = vunpack.c.l.b16 %v319
      %v416 = vunpack.c.l.b16 %v320
      %v417 = vunpack.c.l.b16 %v321
      %v418 = vunpack.c.l.b16 %v322
      %v419 = vunpack.c.l.b16 %v323
      %v420 = vunpack.c.l.b16 %v324
      %v421 = vunpack.c.l.b16 %v325
      %v422 = vunpack.c.l.b16 %v326
      %v423 = vpack.c.b16 %v416, %v415
      %v424 = vpack.c.b16 %v418, %v417
      %v425 = vpack.c.b16 %v420, %v419
      %v426 = vpack.c.b16 %v422, %v421
      %vm431 = vcmask 523264
      %v433 = vsel %vm431, %v391, 0
      %v436 = vsel %vm431, %v392, 0
      %v439 = vsel %vm431, %v393, 0
      %v442 = vsel %vm431, %v394, 0
      %v445 = vsel %vm431, %v395, 0
      %v448 = vsel %vm431, %v396, 0
      %v451 = vsel %vm431, %v397, 0
      %v454 = vsel %vm431, %v398, 0
      %v457 = vsel %vm431, %v399, 0
      %v460 = vsel %vm431, %v400, 0
      %v463 = vsel %vm431, %v401, 0
      %v466 = vsel %vm431, %v402, 0
      %v469 = vsel %vm431, %v403, 0
      %v472 = vsel %vm431, %v404, 0
      %v475 = vsel %vm431, %v405, 0
      %v478 = vsel %vm431, %v406, 0
      %480 = vmatpush.bf16.msra.mxu0 0
      %481 = vmatpush.bf16.msra.mxu0 0
      %482 = vmatpush.bf16.msra.mxu0 0
      %483 = vmatpush.bf16.msra.mxu0 0
      %484 = vmatpush.bf16.msra.mxu0 %v426
      %485 = vmatpush.bf16.msra.mxu0 %v425
      %486 = vmatpush.bf16.msra.mxu0 %v424
      %487 = vmatpush.bf16.msra.mxu0 %v423
      %488 = vmatmul.bf16.gmra.mxu0 %v433
      %v489 = vpop.f32.mrf.mxu0
      %v490 = vadd.f32 0.0, %v489
      %v491 = vpop.f32.mrf.mxu0
      %v492 = vadd.f32 0.0, %v491
      %493 = vmatmul.bf16.gmra.mxu0 %v436
      %v494 = vpop.f32.mrf.mxu0
      %v495 = vadd.f32 0.0, %v494
      %v496 = vpop.f32.mrf.mxu0
      %v497 = vadd.f32 0.0, %v496
      %498 = vmatmul.bf16.gmra.mxu0 %v439
      %v499 = vpop.f32.mrf.mxu0
      %v500 = vadd.f32 0.0, %v499
      %v501 = vpop.f32.mrf.mxu0
      %v502 = vadd.f32 0.0, %v501
      %503 = vmatmul.bf16.gmra.mxu0 %v442
      %v504 = vpop.f32.mrf.mxu0
      %v505 = vadd.f32 0.0, %v504
      %v506 = vpop.f32.mrf.mxu0
      %v507 = vadd.f32 0.0, %v506
      %508 = vmatmul.bf16.gmra.mxu0 %v445
      %v509 = vpop.f32.mrf.mxu0
      %v510 = vadd.f32 0.0, %v509
      %v511 = vpop.f32.mrf.mxu0
      %v512 = vadd.f32 0.0, %v511
      %513 = vmatmul.bf16.gmra.mxu0 %v448
      %v514 = vpop.f32.mrf.mxu0
      %v515 = vadd.f32 0.0, %v514
      %v516 = vpop.f32.mrf.mxu0
      %v517 = vadd.f32 0.0, %v516
      %518 = vmatmul.bf16.gmra.mxu0 %v451
      %v519 = vpop.f32.mrf.mxu0
      %v520 = vadd.f32 0.0, %v519
      %v521 = vpop.f32.mrf.mxu0
      %v522 = vadd.f32 0.0, %v521
      %523 = vmatmul.bf16.gmra.mxu0 %v454
      %v524 = vpop.f32.mrf.mxu0
      %v525 = vadd.f32 0.0, %v524
      %v526 = vpop.f32.mrf.mxu0
      %v527 = vadd.f32 0.0, %v526
      %528 = vmatmul.bf16.gmra.mxu0 %v457
      %v529 = vpop.f32.mrf.mxu0
      %v530 = vadd.f32 0.0, %v529
      %v531 = vpop.f32.mrf.mxu0
      %v532 = vadd.f32 0.0, %v531
      %533 = vmatmul.bf16.gmra.mxu0 %v460
      %v534 = vpop.f32.mrf.mxu0
      %v535 = vadd.f32 0.0, %v534
      %v536 = vpop.f32.mrf.mxu0
      %v537 = vadd.f32 0.0, %v536
      %538 = vmatmul.bf16.gmra.mxu0 %v463
      %v539 = vpop.f32.mrf.mxu0
      %v540 = vadd.f32 0.0, %v539
      %v541 = vpop.f32.mrf.mxu0
      %v542 = vadd.f32 0.0, %v541
      %543 = vmatmul.bf16.gmra.mxu0 %v466
      %v544 = vpop.f32.mrf.mxu0
      %v545 = vadd.f32 0.0, %v544
      %v546 = vpop.f32.mrf.mxu0
      %v547 = vadd.f32 0.0, %v546
      %548 = vmatmul.bf16.gmra.mxu0 %v469
      %v549 = vpop.f32.mrf.mxu0
      %v550 = vadd.f32 0.0, %v549
      %v551 = vpop.f32.mrf.mxu0
      %v552 = vadd.f32 0.0, %v551
      %553 = vmatmul.bf16.gmra.mxu0 %v472
      %v554 = vpop.f32.mrf.mxu0
      %v555 = vadd.f32 0.0, %v554
      %v556 = vpop.f32.mrf.mxu0
      %v557 = vadd.f32 0.0, %v556
      %558 = vmatmul.bf16.gmra.mxu0 %v475
      %v559 = vpop.f32.mrf.mxu0
      %v560 = vadd.f32 0.0, %v559
      %v561 = vpop.f32.mrf.mxu0
      %v562 = vadd.f32 0.0, %v561
      %563 = vmatmul.bf16.gmra.mxu0 %v478
      %v564 = vpop.f32.mrf.mxu0
      %v565 = vadd.f32 0.0, %v564
      %v566 = vpop.f32.mrf.mxu0
      %v567 = vadd.f32 0.0, %v566
      %568 = vdwg.mxu0
      %v569 = vadd.f32 %v255, %v490
      %v570 = vadd.f32 %v256, %v492
      %v571 = vadd.f32 %v257, %v495
      %v572 = vadd.f32 %v258, %v497
      %v573 = vadd.f32 %v259, %v500
      %v574 = vadd.f32 %v260, %v502
      %v575 = vadd.f32 %v261, %v505
      %v576 = vadd.f32 %v262, %v507
      %v577 = vadd.f32 %v263, %v510
      %v578 = vadd.f32 %v264, %v512
      %v579 = vadd.f32 %v265, %v515
      %v580 = vadd.f32 %v266, %v517
      %v581 = vadd.f32 %v267, %v520
      %v582 = vadd.f32 %v268, %v522
      %v583 = vadd.f32 %v269, %v525
      %v584 = vadd.f32 %v270, %v527
      %v585 = vadd.f32 %v271, %v530
      %v586 = vadd.f32 %v272, %v532
      %v587 = vadd.f32 %v273, %v535
      %v588 = vadd.f32 %v274, %v537
      %v589 = vadd.f32 %v275, %v540
      %v590 = vadd.f32 %v276, %v542
      %v591 = vadd.f32 %v277, %v545
      %v592 = vadd.f32 %v278, %v547
      %v593 = vadd.f32 %v279, %v550
      %v594 = vadd.f32 %v280, %v552
      %v595 = vadd.f32 %v281, %v555
      %v596 = vadd.f32 %v282, %v557
      %v597 = vadd.f32 %v283, %v560
      %v598 = vadd.f32 %v284, %v562
      %v599 = vadd.f32 %v285, %v565
      %v600 = vadd.f32 %v286, %v567
      %601 = vst [vmem:[#allocation2] sm:$0xff] %v569
      %602 = vst [vmem:[#allocation2 + $0x8] sm:$0xff] %v570
      %603 = vst [vmem:[#allocation2 + $0x10] sm:$0xff] %v571
      %604 = vst [vmem:[#allocation2 + $0x18] sm:$0xff] %v572
      %605 = vst [vmem:[#allocation2 + $0x20] sm:$0xff] %v573
      %606 = vst [vmem:[#allocation2 + $0x28] sm:$0xff] %v574
      %607 = vst [vmem:[#allocation2 + $0x30] sm:$0xff] %v575
      %608 = vst [vmem:[#allocation2 + $0x38] sm:$0xff] %v576
      %609 = vst [vmem:[#allocation2 + $0x40] sm:$0xff] %v577
      %610 = vst [vmem:[#allocation2 + $0x48] sm:$0xff] %v578
      %611 = vst [vmem:[#allocation2 + $0x50] sm:$0xff] %v579
      %612 = vst [vmem:[#allocation2 + $0x58] sm:$0xff] %v580
      %613 = vst [vmem:[#allocation2 + $0x60] sm:$0xff] %v581
      %614 = vst [vmem:[#allocation2 + $0x68] sm:$0xff] %v582
      %615 = vst [vmem:[#allocation2 + $0x70] sm:$0xff] %v583
      %616 = vst [vmem:[#allocation2 + $0x78] sm:$0xff] %v584
      %617 = vst [vmem:[#allocation2 + $0x80] sm:$0xff] %v585
      %618 = vst [vmem:[#allocation2 + $0x88] sm:$0xff] %v586
      %619 = vst [vmem:[#allocation2 + $0x90] sm:$0xff] %v587
      %620 = vst [vmem:[#allocation2 + $0x98] sm:$0xff] %v588
      %621 = vst [vmem:[#allocation2 + $0xa0] sm:$0xff] %v589
      %622 = vst [vmem:[#allocation2 + $0xa8] sm:$0xff] %v590
      %623 = vst [vmem:[#allocation2 + $0xb0] sm:$0xff] %v591
      %624 = vst [vmem:[#allocation2 + $0xb8] sm:$0xff] %v592
      %625 = vst [vmem:[#allocation2 + $0xc0] sm:$0xff] %v593
      %626 = vst [vmem:[#allocation2 + $0xc8] sm:$0xff] %v594
      %627 = vst [vmem:[#allocation2 + $0xd0] sm:$0xff] %v595
      %628 = vst [vmem:[#allocation2 + $0xd8] sm:$0xff] %v596
      %629 = vst [vmem:[#allocation2 + $0xe0] sm:$0xff] %v597
      %630 = vst [vmem:[#allocation2 + $0xe8] sm:$0xff] %v598
      %631 = vst [vmem:[#allocation2 + $0xf0] sm:$0xff] %v599
      %632 = vst [vmem:[#allocation2 + $0xf8] sm:$0xff] %v600
      // Predicated region
      $region33: #{preact_bottleneck_forward.8} parent=27 // pred_check
        %p633 = pneg %p219
      $region34: #{preact_bottleneck_forward.8} parent=27 // pred_check_branch
        %635 = sbr.rel (%p633) target = $region36
      $region35: #{preact_bottleneck_forward.8} parent=27 // pred_region
        %v636 = vld [vmem:[#allocation2] sm:$0xff]
        %v637 = vld [vmem:[#allocation2 + $0x8] sm:$0xff]
        %v638 = vld [vmem:[#allocation2 + $0x10] sm:$0xff]
        %v639 = vld [vmem:[#allocation2 + $0x18] sm:$0xff]
        %v640 = vld [vmem:[#allocation2 + $0x20] sm:$0xff]
        %v641 = vld [vmem:[#allocation2 + $0x28] sm:$0xff]
        %v642 = vld [vmem:[#allocation2 + $0x30] sm:$0xff]
        %v643 = vld [vmem:[#allocation2 + $0x38] sm:$0xff]
        %v644 = vld [vmem:[#allocation2 + $0x40] sm:$0xff]
        %v645 = vld [vmem:[#allocation2 + $0x48] sm:$0xff]
        %v646 = vld [vmem:[#allocation2 + $0x50] sm:$0xff]
        %v647 = vld [vmem:[#allocation2 + $0x58] sm:$0xff]
        %v648 = vld [vmem:[#allocation2 + $0x60] sm:$0xff]
        %v649 = vld [vmem:[#allocation2 + $0x68] sm:$0xff]
        %v650 = vld [vmem:[#allocation2 + $0x70] sm:$0xff]
        %v651 = vld [vmem:[#allocation2 + $0x78] sm:$0xff]
        %v652 = vld [vmem:[#allocation2 + $0x80] sm:$0xff]
        %v653 = vld [vmem:[#allocation2 + $0x88] sm:$0xff]
        %v654 = vld [vmem:[#allocation2 + $0x90] sm:$0xff]
        %v655 = vld [vmem:[#allocation2 + $0x98] sm:$0xff]
        %v656 = vld [vmem:[#allocation2 + $0xa0] sm:$0xff]
        %v657 = vld [vmem:[#allocation2 + $0xa8] sm:$0xff]
        %v658 = vld [vmem:[#allocation2 + $0xb0] sm:$0xff]
        %v659 = vld [vmem:[#allocation2 + $0xb8] sm:$0xff]
        %v660 = vld [vmem:[#allocation2 + $0xc0] sm:$0xff]
        %v661 = vld [vmem:[#allocation2 + $0xc8] sm:$0xff]
        %v662 = vld [vmem:[#allocation2 + $0xd0] sm:$0xff]
        %v663 = vld [vmem:[#allocation2 + $0xd8] sm:$0xff]
        %v664 = vld [vmem:[#allocation2 + $0xe0] sm:$0xff]
        %v665 = vld [vmem:[#allocation2 + $0xe8] sm:$0xff]
        %v666 = vld [vmem:[#allocation2 + $0xf0] sm:$0xff]
        %v667 = vld [vmem:[#allocation2 + $0xf8] sm:$0xff]
        %v668 = vpack.c.bf16 %v636, %v636
        %v669 = vpack.c.bf16 %v637, %v637
        %v670 = vpack.c.bf16 %v638, %v638
        %v671 = vpack.c.bf16 %v639, %v639
        %v672 = vpack.c.bf16 %v640, %v640
        %v673 = vpack.c.bf16 %v641, %v641
        %v674 = vpack.c.bf16 %v642, %v642
        %v675 = vpack.c.bf16 %v643, %v643
        %v676 = vpack.c.bf16 %v644, %v644
        %v677 = vpack.c.bf16 %v645, %v645
        %v678 = vpack.c.bf16 %v646, %v646
        %v679 = vpack.c.bf16 %v647, %v647
        %v680 = vpack.c.bf16 %v648, %v648
        %v681 = vpack.c.bf16 %v649, %v649
        %v682 = vpack.c.bf16 %v650, %v650
        %v683 = vpack.c.bf16 %v651, %v651
        %v684 = vpack.c.bf16 %v652, %v652
        %v685 = vpack.c.bf16 %v653, %v653
        %v686 = vpack.c.bf16 %v654, %v654
        %v687 = vpack.c.bf16 %v655, %v655
        %v688 = vpack.c.bf16 %v656, %v656
        %v689 = vpack.c.bf16 %v657, %v657
        %v690 = vpack.c.bf16 %v658, %v658
        %v691 = vpack.c.bf16 %v659, %v659
        %v692 = vpack.c.bf16 %v660, %v660
        %v693 = vpack.c.bf16 %v661, %v661
        %v694 = vpack.c.bf16 %v662, %v662
        %v695 = vpack.c.bf16 %v663, %v663
        %v696 = vpack.c.bf16 %v664, %v664
        %v697 = vpack.c.bf16 %v665, %v665
        %v698 = vpack.c.bf16 %v666, %v666
        %v699 = vpack.c.bf16 %v667, %v667
        %700 = vst [vmem:[%s216] sm:$0xf] %v668
        %701 = vst [vmem:[%s216 + $0x4] sm:$0xf] %v669
        %702 = vst [vmem:[%s216 + $0x8] sm:$0xf] %v670
        %703 = vst [vmem:[%s216 + $0xc] sm:$0xf] %v671
        %704 = vst [vmem:[%s216 + $0x10] sm:$0xf] %v672
        %705 = vst [vmem:[%s216 + $0x14] sm:$0xf] %v673
        %706 = vst [vmem:[%s216 + $0x18] sm:$0xf] %v674
        %707 = vst [vmem:[%s216 + $0x1c] sm:$0xf] %v675
        %708 = vst [vmem:[%s216 + $0x20] sm:$0xf] %v676
        %709 = vst [vmem:[%s216 + $0x24] sm:$0xf] %v677
        %710 = vst [vmem:[%s216 + $0x28] sm:$0xf] %v678
        %711 = vst [vmem:[%s216 + $0x2c] sm:$0xf] %v679
        %712 = vst [vmem:[%s216 + $0x30] sm:$0xf] %v680
        %713 = vst [vmem:[%s216 + $0x34] sm:$0xf] %v681
        %714 = vst [vmem:[%s216 + $0x38] sm:$0xf] %v682
        %715 = vst [vmem:[%s216 + $0x3c] sm:$0xf] %v683
        %716 = vst [vmem:[%s216 + $0x40] sm:$0xf] %v684
        %717 = vst [vmem:[%s216 + $0x44] sm:$0xf] %v685
        %718 = vst [vmem:[%s216 + $0x48] sm:$0xf] %v686
        %719 = vst [vmem:[%s216 + $0x4c] sm:$0xf] %v687
        %720 = vst [vmem:[%s216 + $0x50] sm:$0xf] %v688
        %721 = vst [vmem:[%s216 + $0x54] sm:$0xf] %v689
        %722 = vst [vmem:[%s216 + $0x58] sm:$0xf] %v690
        %723 = vst [vmem:[%s216 + $0x5c] sm:$0xf] %v691
        %724 = vst [vmem:[%s216 + $0x60] sm:$0xf] %v692
        %725 = vst [vmem:[%s216 + $0x64] sm:$0xf] %v693
        %726 = vst [vmem:[%s216 + $0x68] sm:$0xf] %v694
        %727 = vst [vmem:[%s216 + $0x6c] sm:$0xf] %v695
        %728 = vst [vmem:[%s216 + $0x70] sm:$0xf] %v696
        %729 = vst [vmem:[%s216 + $0x74] sm:$0xf] %v697
        %730 = vst [vmem:[%s216 + $0x78] sm:$0xf] %v698
        %731 = vst [vmem:[%s216 + $0x7c] sm:$0xf] %v699
      $region36: #{preact_bottleneck_forward.8} parent=27 // pred_fallthru
        _
      %s732 = smul.u32 32, %s18
      %p733 = scmp.lt.s32.totalorder %s732, 63
      %s734 = scalar_select %p733, %s732, 63
      %p735 = scmp.lt.s32.totalorder %s19, 0
      %s736 = scalar_select %p735, %s19, 0
      %s737 = sadd.s32 %s736, %s734
      %s738 = smul.addr %s737, 4
      %s739 = scalar_lea.vmem %s2, %s738
      // Predicated region
      $region37: #{preact_bottleneck_forward.8} parent=27 // pred_check
        %p740 = pneg %p108
      $region38: #{preact_bottleneck_forward.8} parent=27 // pred_check_branch
        %742 = sbr.rel (%p740) target = $region40
      $region39: #{preact_bottleneck_forward.8} parent=27 // pred_region
        %s743 = smul.u32 32, %s18
      $region40: #{preact_bottleneck_forward.8} parent=27 // pred_fallthru
        _
    $region28: #{preact_bottleneck_forward.8} parent=5 // pred_fallthru
      _
    %p744 = scmp.le.s32.totalorder 2, %s8
    // Predicated region
    $region41: #{preact_bottleneck_forward.8} parent=5 // pred_check
      %p745 = pneg %p744
    $region42: #{preact_bottleneck_forward.8} parent=5 // pred_check_branch
      %747 = sbr.rel (%p745) target = $region44
    $region43: #{preact_bottleneck_forward.8} parent=5 // pred_region
      %s748 = ssub.s32 %s8, 2
      // Predicated region
      $region45: #{preact_bottleneck_forward.8} parent=43 // pred_check
        %p749 = pneg %p114
      $region46: #{preact_bottleneck_forward.8} parent=43 // pred_check_branch
        %751 = sbr.rel (%p749) target = $region48
      $region47: #{preact_bottleneck_forward.8} parent=43 // pred_region
        %s752 = smul.u32 32, %s21
        %p753 = scmp.lt.s32.totalorder %s752, 63
        %s754 = scalar_select %p753, %s752, 63
        %p755 = scmp.lt.s32.totalorder %s22, 0
        %s756 = scalar_select %p755, %s22, 0
        %s757 = sadd.s32 %s756, %s754
        %s758 = smul.addr %s757, 4
        %s759 = scalar_lea.vmem %s2, %s758
      $region48: #{preact_bottleneck_forward.8} parent=43 // pred_fallthru
        _
    $region44: #{preact_bottleneck_forward.8} parent=5 // pred_fallthru
      _
  $region6: #{preact_bottleneck_forward.8} parent=0 // loop_footer
    %s12 = sadd.s32 1, %s8
  $region7: #{preact_bottleneck_forward.8} parent=0 // loop_footer_branch
    %7 = sbr.rel target = $region3
  $region8: #{preact_bottleneck_forward.8} parent=0 // loop_exit
    _

// kernel: preact_bottleneck_forward.11
$region0: #{preact_bottleneck_forward.11}
  #allocation0 [shape = 'u32[]', space=smem, size = 0x4, offset = 0x4, fixed_abs, tag = 'smem constant byte address 0x4 - core index']
  #allocation1 [shape = 'u32[72,128]{1,0:T(1,128)}', space=vmem, size = 0x9000, scoped, tag = 'internal scratch']
  #allocation2 [shape = 'f32[8,128]{1,0:T(8,128)}', space=vmem, size = 0x1000, scoped, tag = 'scratch operand']
  #allocation3 [shape = 'f32[2,128]{1,0:T(2,128)}', space=vmem, size = 0x400, scoped, tag = 'scratch operand']
  %s0 = inlined_call_operand.vmem [shape: bf16[2,64,128], index: 0, kind: input, shape index: {}]
  %s1 = inlined_call_operand.vmem [shape: f32[1,128], index: 1, kind: input, shape index: {}]
  %s2 = inlined_call_operand.vmem [shape: f32[1,128], index: 2, kind: input, shape index: {}]
  %s3 = inlined_call_operand.vmem [shape: f32[128,128], index: 3, kind: input, shape index: {}]
  %s4 = inlined_call_operand.vmem [shape: bf16[2,64,128], index: 4, kind: output, shape index: {}]
  %s5 = sld [smem:[#allocation0]]
  $region65: #{preact_bottleneck_forward.11} parent=0
    _
  %s7 = ssub.s32 1, %s5
  %s8 = scalar_select 0, %s7, %s5
  loop: start=0, step=1, limit=6
  $region2: #{preact_bottleneck_forward.11} parent=0 // loop_pre_header
    _
  $region3: #{preact_bottleneck_forward.11} parent=0 // loop_header
    %s10 = sphi 0, %s14
    %p11 = scmp.ge.s32.totalorder %s10, 6
    %s17 = sphi 0, %s36
    %s18 = sphi 0, %s32
    %s19 = sphi 0, %s28
    %s20 = sphi 0, %s17
    %s21 = sphi 0, %s18
    %s22 = sphi 0, %s19
    %s23 = sphi 0, %s20
    %s24 = sphi 0, %s21
    %s25 = sphi 0, %s22
    %s41 = sphi 0, %s43
    %s44 = sphi 0, %s41
    %s45 = sphi 0, %s44
    %s61 = sphi 0, %s45
    %s65 = sphi 0, %s65
    %s67 = sphi 0, %s65
    %s68 = sphi 0, %s67
    %s82 = sphi 0, %s68
    %s86 = sphi 0, %s86
    %s88 = sphi 0, %s86
    %s89 = sphi 0, %s88
    %s103 = sphi 0, %s89
    %s107 = sphi 0, %s107
    %s109 = sphi 0, %s107
    %s110 = sphi 0, %s109
    %s124 = sphi 0, %s110
    %s134 = sphi 0, %s136
    %s137 = sphi 0, %s134
    %s138 = sphi 0, %s137
    %s154 = sphi 0, %s138
  $region4: #{preact_bottleneck_forward.11} parent=0 // loop_header_branch
    %13 = sbr.rel (%p11) target = $region8
  $region5: #{preact_bottleneck_forward.11} parent=0 // loop_body
    %s15 = ssub.s32 %s10, 1
    %s16 = ssub.s32 %s10, 2
    %s26 = sadd.s32 1, %s19
    %p27 = scmp.ge.s32.totalorder %s26, 1
    %s28 = scalar_select %p27, 0, %s26
    %s29 = sadd.s32 1, %s18
    %s30 = scalar_select %p27, %s29, %s18
    %p31 = scmp.ge.s32.totalorder %s30, 2
    %s32 = scalar_select %p31, 0, %s30
    %s33 = sadd.s32 1, %s17
    %s34 = scalar_select %p31, %s33, %s17
    %p35 = scmp.ge.s32.totalorder %s34, 2
    %s36 = scalar_select %p35, 0, %s34
    %s37 = ssub.s32 %s17, %s36
    %s38 = ssub.s32 %s19, %s28
    %s39 = sor.u32 %s37, %s38
    %p40 = scmp.eq.s32.totalorder %s39, 0
    %s42 = sadd.s32 %s41, 1
    %s43 = scalar_select %p40, %s41, %s42
    %p46 = pneg %p40
    %p47 = scmp.eq.s32.totalorder %s10, 3
    %p48 = por %p46, %p47
    %p49 = scmp.ne.s32.totalorder %s41, %s44
    %p50 = scmp.eq.s32.totalorder %s10, 0
    %p51 = por %p49, %p50
    %p52 = scmp.ne.s32.totalorder %s41, %s44
    %p53 = scmp.eq.s32.totalorder %s15, 3
    %p54 = por %p52, %p53
    %p55 = scmp.ne.s32.totalorder %s44, %s45
    %p56 = scmp.eq.s32.totalorder %s15, 0
    %p57 = por %p55, %p56
    %p58 = scmp.ne.s32.totalorder %s44, %s45
    %p59 = scmp.eq.s32.totalorder %s16, 3
    %p60 = por %p58, %p59
    %p62 = scmp.ne.s32.totalorder %s45, %s61
    %p63 = scmp.eq.s32.totalorder %s16, 0
    %p64 = por %p62, %p63
    %s66 = sadd.s32 %s65, 1
    %p69 = scmp.eq.s32.totalorder %s10, 3
    %p70 = scmp.ne.s32.totalorder %s65, %s67
    %p71 = scmp.eq.s32.totalorder %s10, 0
    %p72 = por %p70, %p71
    %p73 = scmp.ne.s32.totalorder %s65, %s67
    %p74 = scmp.eq.s32.totalorder %s15, 3
    %p75 = por %p73, %p74
    %p76 = scmp.ne.s32.totalorder %s67, %s68
    %p77 = scmp.eq.s32.totalorder %s15, 0
    %p78 = por %p76, %p77
    %p79 = scmp.ne.s32.totalorder %s67, %s68
    %p80 = scmp.eq.s32.totalorder %s16, 3
    %p81 = por %p79, %p80
    %p83 = scmp.ne.s32.totalorder %s68, %s82
    %p84 = scmp.eq.s32.totalorder %s16, 0
    %p85 = por %p83, %p84
    %s87 = sadd.s32 %s86, 1
    %p90 = scmp.eq.s32.totalorder %s10, 3
    %p91 = scmp.ne.s32.totalorder %s86, %s88
    %p92 = scmp.eq.s32.totalorder %s10, 0
    %p93 = por %p91, %p92
    %p94 = scmp.ne.s32.totalorder %s86, %s88
    %p95 = scmp.eq.s32.totalorder %s15, 3
    %p96 = por %p94, %p95
    %p97 = scmp.ne.s32.totalorder %s88, %s89
    %p98 = scmp.eq.s32.totalorder %s15, 0
    %p99 = por %p97, %p98
    %p100 = scmp.ne.s32.totalorder %s88, %s89
    %p101 = scmp.eq.s32.totalorder %s16, 3
    %p102 = por %p100, %p101
    %p104 = scmp.ne.s32.totalorder %s89, %s103
    %p105 = scmp.eq.s32.totalorder %s16, 0
    %p106 = por %p104, %p105
    %s108 = sadd.s32 %s107, 1
    %p111 = scmp.eq.s32.totalorder %s10, 3
    %p112 = scmp.ne.s32.totalorder %s107, %s109
    %p113 = scmp.eq.s32.totalorder %s10, 0
    %p114 = por %p112, %p113
    %p115 = scmp.ne.s32.totalorder %s107, %s109
    %p116 = scmp.eq.s32.totalorder %s15, 3
    %p117 = por %p115, %p116
    %p118 = scmp.ne.s32.totalorder %s109, %s110
    %p119 = scmp.eq.s32.totalorder %s15, 0
    %p120 = por %p118, %p119
    %p121 = scmp.ne.s32.totalorder %s109, %s110
    %p122 = scmp.eq.s32.totalorder %s16, 3
    %p123 = por %p121, %p122
    %p125 = scmp.ne.s32.totalorder %s110, %s124
    %p126 = scmp.eq.s32.totalorder %s16, 0
    %p127 = por %p125, %p126
    %s128 = smul.u32 %s19, %s18
    %s129 = smul.u32 %s28, %s32
    %s130 = ssub.s32 %s17, %s36
    %s131 = ssub.s32 %s128, %s129
    %s132 = sor.u32 %s130, %s131
    %p133 = scmp.eq.s32.totalorder %s132, 0
    %s135 = sadd.s32 %s134, 1
    %s136 = scalar_select %p133, %s134, %s135
    %p139 = pneg %p133
    %p140 = scmp.eq.s32.totalorder %s10, 3
    %p141 = por %p139, %p140
    %p142 = scmp.ne.s32.totalorder %s134, %s137
    %p143 = scmp.eq.s32.totalorder %s10, 0
    %p144 = por %p142, %p143
    %p145 = scmp.ne.s32.totalorder %s134, %s137
    %p146 = scmp.eq.s32.totalorder %s15, 3
    %p147 = por %p145, %p146
    %p148 = scmp.ne.s32.totalorder %s137, %s138
    %p149 = scmp.eq.s32.totalorder %s15, 0
    %p150 = por %p148, %p149
    %p151 = scmp.ne.s32.totalorder %s137, %s138
    %p152 = scmp.eq.s32.totalorder %s16, 3
    %p153 = por %p151, %p152
    %p155 = scmp.ne.s32.totalorder %s138, %s154
    %p156 = scmp.eq.s32.totalorder %s16, 0
    %p157 = por %p155, %p156
    %p158 = scmp.le.s32.totalorder 1, %s10
    %p159 = scmp.lt.s32.totalorder %s10, 5
    %p160 = pnand %p158, %p159
    %p161 = pneg %p160
    // Predicated region
    $region9: #{preact_bottleneck_forward.11} parent=5 // pred_check
      _
    $region10: #{preact_bottleneck_forward.11} parent=5 // pred_check_branch
      %163 = sbr.rel (%p160) target = $region12
    $region11: #{preact_bottleneck_forward.11} parent=5 // pred_region
      %s164 = ssub.s32 %s10, 1
      // Predicated region
      $region13: #{preact_bottleneck_forward.11} parent=11 // pred_check
        %p165 = pneg %p78
      $region14: #{preact_bottleneck_forward.11} parent=11 // pred_check_branch
        %167 = sbr.rel (%p165) target = $region16
      $region15: #{preact_bottleneck_forward.11} parent=11 // pred_region
        _
      $region16: #{preact_bottleneck_forward.11} parent=11 // pred_fallthru
        _
      // Predicated region
      $region17: #{preact_bottleneck_forward.11} parent=11 // pred_check
        %p168 = pneg %p99
      $region18: #{preact_bottleneck_forward.11} parent=11 // pred_check_branch
        %170 = sbr.rel (%p168) target = $region20
      $region19: #{preact_bottleneck_forward.11} parent=11 // pred_region
        _
      $region20: #{preact_bottleneck_forward.11} parent=11 // pred_fallthru
        _
      // Predicated region
      $region21: #{preact_bottleneck_forward.11} parent=11 // pred_check
        %p171 = pneg %p120
      $region22: #{preact_bottleneck_forward.11} parent=11 // pred_check_branch
        %173 = sbr.rel (%p171) target = $region24
      $region23: #{preact_bottleneck_forward.11} parent=11 // pred_region
        _
      $region24: #{preact_bottleneck_forward.11} parent=11 // pred_fallthru
        _
    $region12: #{preact_bottleneck_forward.11} parent=5 // pred_fallthru
      _
    %p174 = scmp.lt.s32.totalorder %s10, 4
    // Predicated region
    $region25: #{preact_bottleneck_forward.11} parent=5 // pred_check
      %p175 = pneg %p174
    $region26: #{preact_bottleneck_forward.11} parent=5 // pred_check_branch
      %177 = sbr.rel (%p175) target = $region28
    $region27: #{preact_bottleneck_forward.11} parent=5 // pred_region
      // Predicated region
      $region29: #{preact_bottleneck_forward.11} parent=27 // pred_check
        %p178 = pneg %p51
      $region30: #{preact_bottleneck_forward.11} parent=27 // pred_check_branch
        %180 = sbr.rel (%p178) target = $region32
      $region31: #{preact_bottleneck_forward.11} parent=27 // pred_region
        %s181 = smul.u32 8, %s19
        %p182 = scmp.lt.s32.totalorder %s17, 1
        %s183 = scalar_select %p182, %s17, 1
        %p184 = scmp.lt.s32.totalorder %s181, 7
        %s185 = scalar_select %p184, %s181, 7
        %s186 = smul.addr %s183, 8
        %s187 = sadd.s32 %s185, %s186
        %s188 = smul.addr %s187, 4
        %s189 = scalar_lea.vmem %s0, %s188
        %s190 = smul.u32 8, %s19
      $region32: #{preact_bottleneck_forward.11} parent=27 // pred_fallthru
        _
    $region28: #{preact_bottleneck_forward.11} parent=5 // pred_fallthru
      _
    %p191 = scmp.le.s32.totalorder 1, %s10
    %p192 = scmp.lt.s32.totalorder %s10, 5
    %p193 = pnand %p191, %p192
    %p194 = pneg %p193
    // Predicated region
    $region33: #{preact_bottleneck_forward.11} parent=5 // pred_check
      _
    $region34: #{preact_bottleneck_forward.11} parent=5 // pred_check_branch
      %196 = sbr.rel (%p193) target = $region36
    $region35: #{preact_bottleneck_forward.11} parent=5 // pred_region
      %s197 = ssub.s32 %s10, 1
      %s198 = smul.u32 8, %s22
      %p199 = scmp.lt.s32.totalorder %s20, 1
      %s200 = scalar_select %p199, %s20, 1
      %p201 = scmp.lt.s32.totalorder %s198, 7
      %s202 = scalar_select %p201, %s198, 7
      %s203 = smul.addr %s200, 8
      %s204 = sadd.s32 %s202, %s203
      %s205 = smul.addr %s204, 4
      %s206 = scalar_lea.vmem %s0, %s205
      %p207 = pneg %p57
      %p208 = pneg %p54
      %p209 = pneg %p78
      %p210 = pneg %p75
      %p211 = pneg %p99
      %p212 = pneg %p96
      %p213 = pneg %p120
      %p214 = pneg %p117
      %p215 = pneg %p150
      %p216 = pneg %p147
      %s217 = smul.u32 %s22, %s21
      %s218 = smul.u32 8, %s217
      %p219 = scmp.lt.s32.totalorder %s20, 1
      %s220 = scalar_select %p219, %s20, 1
      %p221 = scmp.lt.s32.totalorder %s218, 7
      %s222 = scalar_select %p221, %s218, 7
      %s223 = smul.addr %s220, 8
      %s224 = sadd.s32 %s222, %s223
      %s225 = smul.addr %s224, 4
      %s226 = scalar_lea.vmem %s4, %s225
      %s227 = smul.u32 8, %s22
      %p228 = scmp.lt.s32.totalorder %s20, 1
      %s229 = scalar_select %p228, %s20, 1
      %p230 = scmp.lt.s32.totalorder %s227, 7
      %s231 = scalar_select %p230, %s227, 7
      %s232 = smul.addr %s229, 8
      %s233 = sadd.s32 %s231, %s232
      %s234 = smul.addr %s233, 4
      %s235 = scalar_lea.vmem %s0, %s234
      %s236 = smul.u32 8, %s22
      %s237 = smul.u32 %s22, %s21
      %s238 = smul.u32 8, %s237
      %p239 = scmp.lt.s32.totalorder %s20, 1
      %s240 = scalar_select %p239, %s20, 1
      %p241 = scmp.lt.s32.totalorder %s238, 7
      %s242 = scalar_select %p241, %s238, 7
      %s243 = smul.addr %s240, 8
      %s244 = sadd.s32 %s242, %s243
      %s245 = smul.addr %s244, 4
      %s246 = scalar_lea.vmem %s4, %s245
      %s247 = smul.u32 %s22, %s21
      %s248 = smul.u32 8, %s247
      %p249 = scmp.eq.s32.totalorder %s21, 0
      %p250 = scmp.eq.s32.totalorder %s22, 0
      %p251 = pnand %p249, %p250
      %p252 = pneg %p251
      // Predicated region
      $region37: #{preact_bottleneck_forward.11} parent=35 // pred_check
        _
      $region38: #{preact_bottleneck_forward.11} parent=35 // pred_check_branch
        %254 = sbr.rel (%p251) target = $region40
      $region39: #{preact_bottleneck_forward.11} parent=35 // pred_region
        %255 = vst [vmem:[#allocation2] sm:$0xff] 0.0
      $region40: #{preact_bottleneck_forward.11} parent=35 // pred_fallthru
        _
      %v256 = vld [vmem:[%s235] sm:$0xf]
      %v257 = vld [vmem:[%s235 + $0x4] sm:$0xf]
      %v258 = vld [vmem:[%s235 + $0x8] sm:$0xf]
      %v259 = vld [vmem:[%s235 + $0xc] sm:$0xf]
      %v260 = vld [vmem:[%s235 + $0x10] sm:$0xf]
      %v261 = vld [vmem:[%s235 + $0x14] sm:$0xf]
      %v262 = vld [vmem:[%s235 + $0x18] sm:$0xf]
      %v263 = vld [vmem:[%s235 + $0x1c] sm:$0xf]
      %v264 = vunpack.c.l.bf16 %v256
      %v265 = vunpack.c.l.bf16 %v257
      %v266 = vunpack.c.l.bf16 %v258
      %v267 = vunpack.c.l.bf16 %v259
      %v268 = vunpack.c.l.bf16 %v260
      %v269 = vunpack.c.l.bf16 %v261
      %v270 = vunpack.c.l.bf16 %v262
      %v271 = vunpack.c.l.bf16 %v263
      // Predicated region
      $region41: #{preact_bottleneck_forward.11} parent=35 // pred_check
        %p272 = pneg %p249
      $region42: #{preact_bottleneck_forward.11} parent=35 // pred_check_branch
        %274 = sbr.rel (%p272) target = $region44
      $region43: #{preact_bottleneck_forward.11} parent=35 // pred_region
        %v275 = vld [vmem:[#allocation2] sm:$0x1]
        %v276 = vadd.f32 %v264, %v265
        %v277 = vadd.f32 %v276, %v266
        %v278 = vadd.f32 %v277, %v267
        %v279 = vadd.f32 %v278, %v268
        %v280 = vadd.f32 %v279, %v269
        %v281 = vadd.f32 %v280, %v270
        %v282 = vadd.f32 %v281, %v271
        %v283 = vrot.slane %v282, 4
        %v284 = vadd.f32 %v282, %v283
        %v285 = vrot.slane %v284, 2
        %v286 = vadd.f32 %v284, %v285
        %v287 = vrot.slane %v286, 1
        %v288 = vadd.f32 %v286, %v287
        %v289 = vadd.f32 %v275, %v288
        %290 = vst [vmem:[#allocation2] sm:$0x1] %v289
        %v291 = vld [vmem:[#allocation2 + $0x1] sm:$0x1]
        %v292 = vmul.f32 %v264, %v264
        %v293 = vmul.f32 %v265, %v265
        %v294 = vmul.f32 %v266, %v266
        %v295 = vmul.f32 %v267, %v267
        %v296 = vmul.f32 %v268, %v268
        %v297 = vmul.f32 %v269, %v269
        %v298 = vmul.f32 %v270, %v270
        %v299 = vmul.f32 %v271, %v271
        %v300 = vadd.f32 %v292, %v293
        %v301 = vadd.f32 %v300, %v294
        %v302 = vadd.f32 %v301, %v295
        %v303 = vadd.f32 %v302, %v296
        %v304 = vadd.f32 %v303, %v297
        %v305 = vadd.f32 %v304, %v298
        %v306 = vadd.f32 %v305, %v299
        %v307 = vrot.slane %v306, 4
        %v308 = vadd.f32 %v306, %v307
        %v309 = vrot.slane %v308, 2
        %v310 = vadd.f32 %v308, %v309
        %v311 = vrot.slane %v310, 1
        %v312 = vadd.f32 %v310, %v311
        %v313 = vadd.f32 %v291, %v312
        %314 = vst [vmem:[#allocation2 + $0x1] sm:$0x1] %v313
      $region44: #{preact_bottleneck_forward.11} parent=35 // pred_fallthru
        _
      %p315 = scmp.eq.s32.totalorder %s21, 1
      %p316 = pnand %p315, %p250
      %p317 = pneg %p316
      // Predicated region
      $region45: #{preact_bottleneck_forward.11} parent=35 // pred_check
        _
      $region46: #{preact_bottleneck_forward.11} parent=35 // pred_check_branch
        %319 = sbr.rel (%p316) target = $region48
      $region47: #{preact_bottleneck_forward.11} parent=35 // pred_region
        %v320 = vld [vmem:[#allocation2] sm:$0xff]
        %v321 = vld [vmem:[%s3] sm:$0xff]
        %v322 = vld [vmem:[%s3 + $0x8] sm:$0xff]
        %v323 = vld [vmem:[%s3 + $0x10] sm:$0xff]
        %v324 = vld [vmem:[%s3 + $0x18] sm:$0xff]
        %v325 = vld [vmem:[%s3 + $0x20] sm:$0xff]
        %v326 = vld [vmem:[%s3 + $0x28] sm:$0xff]
        %v327 = vld [vmem:[%s3 + $0x30] sm:$0xff]
        %v328 = vld [vmem:[%s3 + $0x38] sm:$0xff]
        %v329 = vld [vmem:[%s3 + $0x40] sm:$0xff]
        %v330 = vld [vmem:[%s3 + $0x48] sm:$0xff]
        %v331 = vld [vmem:[%s3 + $0x50] sm:$0xff]
        %v332 = vld [vmem:[%s3 + $0x58] sm:$0xff]
        %v333 = vld [vmem:[%s3 + $0x60] sm:$0xff]
        %v334 = vld [vmem:[%s3 + $0x68] sm:$0xff]
        %v335 = vld [vmem:[%s3 + $0x70] sm:$0xff]
        %v336 = vld [vmem:[%s3 + $0x78] sm:$0xff]
        %337 = vmatpush.msra.mxu0 %v336
        %338 = vmatpush.msra.mxu0 %v335
        %339 = vmatpush.msra.mxu0 %v334
        %340 = vmatpush.msra.mxu0 %v333
        %341 = vmatpush.msra.mxu0 %v332
        %342 = vmatpush.msra.mxu0 %v331
        %343 = vmatpush.msra.mxu0 %v330
        %344 = vmatpush.msra.mxu0 %v329
        %345 = vmatpush.msra.mxu0 %v328
        %346 = vmatpush.msra.mxu0 %v327
        %347 = vmatpush.msra.mxu0 %v326
        %348 = vmatpush.msra.mxu0 %v325
        %349 = vmatpush.msra.mxu0 %v324
        %350 = vmatpush.msra.mxu0 %v323
        %351 = vmatpush.msra.mxu0 %v322
        %352 = vmatpush.msra.mxu0 %v321
        %353 = vmatmul.f32.gmra.mxu0 %v320
        %v354 = vpop.f32.mrf.mxu0
        %v355 = vadd.f32 0.0, %v354
        %356 = vdwg.mxu0
        %v357 = vmul.f32 %v355, %v355
        %v359 = vrot.slane %v357, 7
        %v361 = vsub.f32 %v355, %v359
        %v362 = vmax.f32 %v361, 0.0
        %v363 = vadd.f32 %v362, 1e-06
        %v364 = vrsqrt.pop %v363
        %v365 = vmul.f32 %v364, %v363
        %v366 = vmul.f32 %v365, %v364
        %v367 = vmul.f32 0.5, %v366
        %v368 = vsub.f32 1.5, %v367
        %v369 = vmul.f32 %v364, %v368
        %vm370 = vweird.f32 %v363
        %vm371 = vweird.f32 %v364
        %vm372 = vmor %vm370, %vm371
        %v373 = vsel %vm372, %v364, %v369
        %v374 = vld [vmem:[%s1] sm:$0x1]
        %v376 = vperm.slane %v374, 0
        %v378 = vmul.f32 %v373, %v376
        %379 = vst [vmem:[#allocation3 - $0x1] sm:$0x2] %v378
        %v380 = vld [vmem:[%s2] sm:$0x1]
        %v382 = vrot.slane %v378, 1
        %v384 = vmul.f32 %v355, %v382
        %v385 = vsub.f32 %v380, %v384
        %386 = vst [vmem:[#allocation3 + $0x1] sm:$0x1] %v385
      $region48: #{preact_bottleneck_forward.11} parent=35 // pred_fallthru
        _
      // Predicated region
      $region49: #{preact_bottleneck_forward.11} parent=35 // pred_check
        %p387 = pneg %p315
      $region50: #{preact_bottleneck_forward.11} parent=35 // pred_check_branch
        %389 = sbr.rel (%p387) target = $region52
      $region51: #{preact_bottleneck_forward.11} parent=35 // pred_region
        %v390 = vld [vmem:[#allocation3] sm:$0x1]
        %v391 = vperm.slane %v390, 0
        %v392 = vmul.f32 %v264, %v391
        %v393 = vmul.f32 %v265, %v391
        %v394 = vmul.f32 %v266, %v391
        %v395 = vmul.f32 %v267, %v391
        %v396 = vmul.f32 %v268, %v391
        %v397 = vmul.f32 %v269, %v391
        %v398 = vmul.f32 %v270, %v391
        %v399 = vmul.f32 %v271, %v391
        %v400 = vld [vmem:[#allocation3 + $0x1] sm:$0x1]
        %v401 = vperm.slane %v400, 0
        %v402 = vadd.f32 %v392, %v401
        %v403 = vadd.f32 %v393, %v401
        %v404 = vadd.f32 %v394, %v401
        %v405 = vadd.f32 %v395, %v401
        %v406 = vadd.f32 %v396, %v401
        %v407 = vadd.f32 %v397, %v401
        %v408 = vadd.f32 %v398, %v401
        %v409 = vadd.f32 %v399, %v401
        %v410 = vmax.f32 %v402, 0.0
        %v411 = vmax.f32 %v403, 0.0
        %v412 = vmax.f32 %v404, 0.0
        %v413 = vmax.f32 %v405, 0.0
        %v414 = vmax.f32 %v406, 0.0
        %v415 = vmax.f32 %v407, 0.0
        %v416 = vmax.f32 %v408, 0.0
        %v417 = vmax.f32 %v409, 0.0
        %v418 = vpack.c.bf16 %v410, %v410
        %v419 = vpack.c.bf16 %v411, %v411
        %v420 = vpack.c.bf16 %v412, %v412
        %v421 = vpack.c.bf16 %v413, %v413
        %v422 = vpack.c.bf16 %v414, %v414
        %v423 = vpack.c.bf16 %v415, %v415
        %v424 = vpack.c.bf16 %v416, %v416
        %v425 = vpack.c.bf16 %v417, %v417
        %426 = vst [vmem:[%s246] sm:$0xf] %v418
        %427 = vst [vmem:[%s246 + $0x4] sm:$0xf] %v419
        %428 = vst [vmem:[%s246 + $0x8] sm:$0xf] %v420
        %429 = vst [vmem:[%s246 + $0xc] sm:$0xf] %v421
        %430 = vst [vmem:[%s246 + $0x10] sm:$0xf] %v422
        %431 = vst [vmem:[%s246 + $0x14] sm:$0xf] %v423
        %432 = vst [vmem:[%s246 + $0x18] sm:$0xf] %v424
        %433 = vst [vmem:[%s246 + $0x1c] sm:$0xf] %v425
      $region52: #{preact_bottleneck_forward.11} parent=35 // pred_fallthru
        _
      %s434 = smul.u32 %s22, %s21
      %s435 = smul.u32 8, %s434
      %p436 = scmp.lt.s32.totalorder %s20, 1
      %s437 = scalar_select %p436, %s20, 1
      %p438 = scmp.lt.s32.totalorder %s435, 7
      %s439 = scalar_select %p438, %s435, 7
      %s440 = smul.addr %s437, 8
      %s441 = sadd.s32 %s439, %s440
      %s442 = smul.addr %s441, 4
      %s443 = scalar_lea.vmem %s4, %s442
      // Predicated region
      $region53: #{preact_bottleneck_forward.11} parent=35 // pred_check
        %p444 = pneg %p147
      $region54: #{preact_bottleneck_forward.11} parent=35 // pred_check_branch
        %446 = sbr.rel (%p444) target = $region56
      $region55: #{preact_bottleneck_forward.11} parent=35 // pred_region
        %s447 = smul.u32 %s22, %s21
        %s448 = smul.u32 8, %s447
      $region56: #{preact_bottleneck_forward.11} parent=35 // pred_fallthru
        _
    $region36: #{preact_bottleneck_forward.11} parent=5 // pred_fallthru
      _
    %p449 = scmp.le.s32.totalorder 2, %s10
    // Predicated region
    $region57: #{preact_bottleneck_forward.11} parent=5 // pred_check
      %p450 = pneg %p449
    $region58: #{preact_bottleneck_forward.11} parent=5 // pred_check_branch
      %452 = sbr.rel (%p450) target = $region60
    $region59: #{preact_bottleneck_forward.11} parent=5 // pred_region
      %s453 = ssub.s32 %s10, 2
      // Predicated region
      $region61: #{preact_bottleneck_forward.11} parent=59 // pred_check
        %p454 = pneg %p153
      $region62: #{preact_bottleneck_forward.11} parent=59 // pred_check_branch
        %456 = sbr.rel (%p454) target = $region64
      $region63: #{preact_bottleneck_forward.11} parent=59 // pred_region
        %s457 = smul.u32 %s25, %s24
        %s458 = smul.u32 8, %s457
        %p459 = scmp.lt.s32.totalorder %s23, 1
        %s460 = scalar_select %p459, %s23, 1
        %p461 = scmp.lt.s32.totalorder %s458, 7
        %s462 = scalar_select %p461, %s458, 7
        %s463 = smul.addr %s460, 8
        %s464 = sadd.s32 %s462, %s463
        %s465 = smul.addr %s464, 4
        %s466 = scalar_lea.vmem %s4, %s465
      $region64: #{preact_bottleneck_forward.11} parent=59 // pred_fallthru
        _
    $region60: #{preact_bottleneck_forward.11} parent=5 // pred_fallthru
      _
  $region6: #{preact_bottleneck_forward.11} parent=0 // loop_footer
    %s14 = sadd.s32 1, %s10
  $region7: #{preact_bottleneck_forward.11} parent=0 // loop_footer_branch
    %9 = sbr.rel target = $region3
  $region8: #{preact_bottleneck_forward.11} parent=0 // loop_exit
    _

// kernel: preact_bottleneck_forward.12
$region0: #{preact_bottleneck_forward.12}
  #allocation0 [shape = 'u32[]', space=smem, size = 0x4, offset = 0x4, fixed_abs, tag = 'smem constant byte address 0x4 - core index']
  #allocation1 [shape = 'u32[72,128]{1,0:T(1,128)}', space=vmem, size = 0x9000, scoped, tag = 'internal scratch']
  #allocation2 [shape = 'f32[128,128]{1,0:T(8,128)}', space=vmem, size = 0x10000, scoped, tag = 'scratch operand']
  %s0 = inlined_call_operand.vmem [shape: bf16[128,128], index: 0, kind: input, shape index: {}]
  %s1 = inlined_call_operand.vmem [shape: bf16[128,128], index: 1, kind: input, shape index: {}]
  %s2 = inlined_call_operand.vmem [shape: bf16[128,128], index: 2, kind: output, shape index: {}]
  %s3 = sld [smem:[#allocation0]]
  $region26: #{preact_bottleneck_forward.12} parent=0
    _
  %s5 = ssub.s32 1, %s3
  %s6 = scalar_select 0, %s5, %s3
  // Predicated region
  $region2: #{preact_bottleneck_forward.12} parent=0 // pred_check
    _
  $region3: #{preact_bottleneck_forward.12} parent=0 // pred_check_branch
    %8 = sbr.rel (0) target = $region5
  $region4: #{preact_bottleneck_forward.12} parent=0 // pred_region
    _
  $region5: #{preact_bottleneck_forward.12} parent=0 // pred_fallthru
    _
  // Predicated region
  $region6: #{preact_bottleneck_forward.12} parent=0 // pred_check
    _
  $region7: #{preact_bottleneck_forward.12} parent=0 // pred_check_branch
    %10 = sbr.rel (0) target = $region9
  $region8: #{preact_bottleneck_forward.12} parent=0 // pred_region
    _
  $region9: #{preact_bottleneck_forward.12} parent=0 // pred_fallthru
    _
  %p11 = scmp.eq.s32.totalorder 0, 0
  // Predicated region
  $region10: #{preact_bottleneck_forward.12} parent=0 // pred_check
    %p12 = pneg %p11
  $region11: #{preact_bottleneck_forward.12} parent=0 // pred_check_branch
    %14 = sbr.rel (%p12) target = $region13
  $region12: #{preact_bottleneck_forward.12} parent=0 // pred_region
    %15 = vst [vmem:[#allocation2] sm:$0xff] 0.0
    %16 = vst [vmem:[#allocation2 + $0x8] sm:$0xff] 0.0
    %17 = vst [vmem:[#allocation2 + $0x10] sm:$0xff] 0.0
    %18 = vst [vmem:[#allocation2 + $0x18] sm:$0xff] 0.0
    %19 = vst [vmem:[#allocation2 + $0x20] sm:$0xff] 0.0
    %20 = vst [vmem:[#allocation2 + $0x28] sm:$0xff] 0.0
    %21 = vst [vmem:[#allocation2 + $0x30] sm:$0xff] 0.0
    %22 = vst [vmem:[#allocation2 + $0x38] sm:$0xff] 0.0
    %23 = vst [vmem:[#allocation2 + $0x40] sm:$0xff] 0.0
    %24 = vst [vmem:[#allocation2 + $0x48] sm:$0xff] 0.0
    %25 = vst [vmem:[#allocation2 + $0x50] sm:$0xff] 0.0
    %26 = vst [vmem:[#allocation2 + $0x58] sm:$0xff] 0.0
    %27 = vst [vmem:[#allocation2 + $0x60] sm:$0xff] 0.0
    %28 = vst [vmem:[#allocation2 + $0x68] sm:$0xff] 0.0
    %29 = vst [vmem:[#allocation2 + $0x70] sm:$0xff] 0.0
    %30 = vst [vmem:[#allocation2 + $0x78] sm:$0xff] 0.0
  $region13: #{preact_bottleneck_forward.12} parent=0 // pred_fallthru
    _
  %v31 = vld [vmem:[#allocation2] sm:$0xff]
  %v32 = vld [vmem:[#allocation2 + $0x8] sm:$0xff]
  %v33 = vld [vmem:[#allocation2 + $0x10] sm:$0xff]
  %v34 = vld [vmem:[#allocation2 + $0x18] sm:$0xff]
  %v35 = vld [vmem:[#allocation2 + $0x20] sm:$0xff]
  %v36 = vld [vmem:[#allocation2 + $0x28] sm:$0xff]
  %v37 = vld [vmem:[#allocation2 + $0x30] sm:$0xff]
  %v38 = vld [vmem:[#allocation2 + $0x38] sm:$0xff]
  %v39 = vld [vmem:[#allocation2 + $0x40] sm:$0xff]
  %v40 = vld [vmem:[#allocation2 + $0x48] sm:$0xff]
  %v41 = vld [vmem:[#allocation2 + $0x50] sm:$0xff]
  %v42 = vld [vmem:[#allocation2 + $0x58] sm:$0xff]
  %v43 = vld [vmem:[#allocation2 + $0x60] sm:$0xff]
  %v44 = vld [vmem:[#allocation2 + $0x68] sm:$0xff]
  %v45 = vld [vmem:[#allocation2 + $0x70] sm:$0xff]
  %v46 = vld [vmem:[#allocation2 + $0x78] sm:$0xff]
  %v47 = vld [vmem:[%s0] sm:$0xf]
  %v48 = vld [vmem:[%s0 + $0x4] sm:$0xf]
  %v49 = vld [vmem:[%s0 + $0x8] sm:$0xf]
  %v50 = vld [vmem:[%s0 + $0xc] sm:$0xf]
  %v51 = vld [vmem:[%s0 + $0x10] sm:$0xf]
  %v52 = vld [vmem:[%s0 + $0x14] sm:$0xf]
  %v53 = vld [vmem:[%s0 + $0x18] sm:$0xf]
  %v54 = vld [vmem:[%s0 + $0x1c] sm:$0xf]
  %v55 = vld [vmem:[%s0 + $0x20] sm:$0xf]
  %v56 = vld [vmem:[%s0 + $0x24] sm:$0xf]
  %v57 = vld [vmem:[%s0 + $0x28] sm:$0xf]
  %v58 = vld [vmem:[%s0 + $0x2c] sm:$0xf]
  %v59 = vld [vmem:[%s0 + $0x30] sm:$0xf]
  %v60 = vld [vmem:[%s0 + $0x34] sm:$0xf]
  %v61 = vld [vmem:[%s0 + $0x38] sm:$0xf]
  %v62 = vld [vmem:[%s0 + $0x3c] sm:$0xf]
  %v63 = vld [vmem:[%s1] sm:$0xf]
  %v64 = vld [vmem:[%s1 + $0x4] sm:$0xf]
  %v65 = vld [vmem:[%s1 + $0x8] sm:$0xf]
  %v66 = vld [vmem:[%s1 + $0xc] sm:$0xf]
  %v67 = vld [vmem:[%s1 + $0x10] sm:$0xf]
  %v68 = vld [vmem:[%s1 + $0x14] sm:$0xf]
  %v69 = vld [vmem:[%s1 + $0x18] sm:$0xf]
  %v70 = vld [vmem:[%s1 + $0x1c] sm:$0xf]
  %v71 = vld [vmem:[%s1 + $0x20] sm:$0xf]
  %v72 = vld [vmem:[%s1 + $0x24] sm:$0xf]
  %v73 = vld [vmem:[%s1 + $0x28] sm:$0xf]
  %v74 = vld [vmem:[%s1 + $0x2c] sm:$0xf]
  %v75 = vld [vmem:[%s1 + $0x30] sm:$0xf]
  %v76 = vld [vmem:[%s1 + $0x34] sm:$0xf]
  %v77 = vld [vmem:[%s1 + $0x38] sm:$0xf]
  %v78 = vld [vmem:[%s1 + $0x3c] sm:$0xf]
  %v95 = vunpack.c.l.b16 %v47
  %v96 = vunpack.c.l.b16 %v48
  %v97 = vunpack.c.l.b16 %v49
  %v98 = vunpack.c.l.b16 %v50
  %v99 = vunpack.c.l.b16 %v51
  %v100 = vunpack.c.l.b16 %v52
  %v101 = vunpack.c.l.b16 %v53
  %v102 = vunpack.c.l.b16 %v54
  %v103 = vunpack.c.l.b16 %v55
  %v104 = vunpack.c.l.b16 %v56
  %v105 = vunpack.c.l.b16 %v57
  %v106 = vunpack.c.l.b16 %v58
  %v107 = vunpack.c.l.b16 %v59
  %v108 = vunpack.c.l.b16 %v60
  %v109 = vunpack.c.l.b16 %v61
  %v110 = vunpack.c.l.b16 %v62
  %v111 = vpack.c.b16 %v96, %v95
  %v112 = vpack.c.b16 %v98, %v97
  %v113 = vpack.c.b16 %v100, %v99
  %v114 = vpack.c.b16 %v102, %v101
  %v115 = vpack.c.b16 %v104, %v103
  %v116 = vpack.c.b16 %v106, %v105
  %v117 = vpack.c.b16 %v108, %v107
  %v118 = vpack.c.b16 %v110, %v109
  %v143 = vunpack.c.l.b16 %v63
  %v144 = vunpack.c.l.b16 %v64
  %v145 = vunpack.c.l.b16 %v65
  %v146 = vunpack.c.l.b16 %v66
  %v147 = vunpack.c.l.b16 %v67
  %v148 = vunpack.c.l.b16 %v68
  %v149 = vunpack.c.l.b16 %v69
  %v150 = vunpack.c.l.b16 %v70
  %v151 = vunpack.c.l.b16 %v71
  %v152 = vunpack.c.l.b16 %v72
  %v153 = vunpack.c.l.b16 %v73
  %v154 = vunpack.c.l.b16 %v74
  %v155 = vunpack.c.l.b16 %v75
  %v156 = vunpack.c.l.b16 %v76
  %v157 = vunpack.c.l.b16 %v77
  %v158 = vunpack.c.l.b16 %v78
  %v159 = vpack.c.b16 %v144, %v143
  %v160 = vpack.c.b16 %v146, %v145
  %v161 = vpack.c.b16 %v148, %v147
  %v162 = vpack.c.b16 %v150, %v149
  %v163 = vpack.c.b16 %v152, %v151
  %v164 = vpack.c.b16 %v154, %v153
  %v165 = vpack.c.b16 %v156, %v155
  %v166 = vpack.c.b16 %v158, %v157
  %175 = vmatpush.bf16.msra.mxu0 %v166
  %176 = vmatpush.bf16.msra.mxu0 %v165
  %177 = vmatpush.bf16.msra.mxu0 %v164
  %178 = vmatpush.bf16.msra.mxu0 %v163
  %179 = vmatpush.bf16.msra.mxu0 %v162
  %180 = vmatpush.bf16.msra.mxu0 %v161
  %181 = vmatpush.bf16.msra.mxu0 %v160
  %182 = vmatpush.bf16.msra.mxu0 %v159
  %183 = vmatmul.bf16.gmra.mxu0 %v111
  %v184 = vpop.f32.mrf.mxu0
  %v185 = vadd.f32 0.0, %v184
  %v186 = vpop.f32.mrf.mxu0
  %v187 = vadd.f32 0.0, %v186
  %188 = vmatmul.bf16.gmra.mxu0 %v112
  %v189 = vpop.f32.mrf.mxu0
  %v190 = vadd.f32 0.0, %v189
  %v191 = vpop.f32.mrf.mxu0
  %v192 = vadd.f32 0.0, %v191
  %193 = vmatmul.bf16.gmra.mxu0 %v113
  %v194 = vpop.f32.mrf.mxu0
  %v195 = vadd.f32 0.0, %v194
  %v196 = vpop.f32.mrf.mxu0
  %v197 = vadd.f32 0.0, %v196
  %198 = vmatmul.bf16.gmra.mxu0 %v114
  %v199 = vpop.f32.mrf.mxu0
  %v200 = vadd.f32 0.0, %v199
  %v201 = vpop.f32.mrf.mxu0
  %v202 = vadd.f32 0.0, %v201
  %203 = vmatmul.bf16.gmra.mxu0 %v115
  %v204 = vpop.f32.mrf.mxu0
  %v205 = vadd.f32 0.0, %v204
  %v206 = vpop.f32.mrf.mxu0
  %v207 = vadd.f32 0.0, %v206
  %208 = vmatmul.bf16.gmra.mxu0 %v116
  %v209 = vpop.f32.mrf.mxu0
  %v210 = vadd.f32 0.0, %v209
  %v211 = vpop.f32.mrf.mxu0
  %v212 = vadd.f32 0.0, %v211
  %213 = vmatmul.bf16.gmra.mxu0 %v117
  %v214 = vpop.f32.mrf.mxu0
  %v215 = vadd.f32 0.0, %v214
  %v216 = vpop.f32.mrf.mxu0
  %v217 = vadd.f32 0.0, %v216
  %218 = vmatmul.bf16.gmra.mxu0 %v118
  %v219 = vpop.f32.mrf.mxu0
  %v220 = vadd.f32 0.0, %v219
  %v221 = vpop.f32.mrf.mxu0
  %v222 = vadd.f32 0.0, %v221
  %223 = vdwg.mxu0
  %v224 = vadd.f32 %v31, %v185
  %v225 = vadd.f32 %v32, %v187
  %v226 = vadd.f32 %v33, %v190
  %v227 = vadd.f32 %v34, %v192
  %v228 = vadd.f32 %v35, %v195
  %v229 = vadd.f32 %v36, %v197
  %v230 = vadd.f32 %v37, %v200
  %v231 = vadd.f32 %v38, %v202
  %v232 = vadd.f32 %v39, %v205
  %v233 = vadd.f32 %v40, %v207
  %v234 = vadd.f32 %v41, %v210
  %v235 = vadd.f32 %v42, %v212
  %v236 = vadd.f32 %v43, %v215
  %v237 = vadd.f32 %v44, %v217
  %v238 = vadd.f32 %v45, %v220
  %v239 = vadd.f32 %v46, %v222
  %240 = vst [vmem:[#allocation2] sm:$0xff] %v224
  %241 = vst [vmem:[#allocation2 + $0x8] sm:$0xff] %v225
  %242 = vst [vmem:[#allocation2 + $0x10] sm:$0xff] %v226
  %243 = vst [vmem:[#allocation2 + $0x18] sm:$0xff] %v227
  %244 = vst [vmem:[#allocation2 + $0x20] sm:$0xff] %v228
  %245 = vst [vmem:[#allocation2 + $0x28] sm:$0xff] %v229
  %246 = vst [vmem:[#allocation2 + $0x30] sm:$0xff] %v230
  %247 = vst [vmem:[#allocation2 + $0x38] sm:$0xff] %v231
  %248 = vst [vmem:[#allocation2 + $0x40] sm:$0xff] %v232
  %249 = vst [vmem:[#allocation2 + $0x48] sm:$0xff] %v233
  %250 = vst [vmem:[#allocation2 + $0x50] sm:$0xff] %v234
  %251 = vst [vmem:[#allocation2 + $0x58] sm:$0xff] %v235
  %252 = vst [vmem:[#allocation2 + $0x60] sm:$0xff] %v236
  %253 = vst [vmem:[#allocation2 + $0x68] sm:$0xff] %v237
  %254 = vst [vmem:[#allocation2 + $0x70] sm:$0xff] %v238
  %255 = vst [vmem:[#allocation2 + $0x78] sm:$0xff] %v239
  // Predicated region
  $region14: #{preact_bottleneck_forward.12} parent=0 // pred_check
    %p256 = pneg %p11
  $region15: #{preact_bottleneck_forward.12} parent=0 // pred_check_branch
    %258 = sbr.rel (%p256) target = $region17
  $region16: #{preact_bottleneck_forward.12} parent=0 // pred_region
    %v259 = vld [vmem:[#allocation2] sm:$0xff]
    %v260 = vld [vmem:[#allocation2 + $0x8] sm:$0xff]
    %v261 = vld [vmem:[#allocation2 + $0x10] sm:$0xff]
    %v262 = vld [vmem:[#allocation2 + $0x18] sm:$0xff]
    %v263 = vld [vmem:[#allocation2 + $0x20] sm:$0xff]
    %v264 = vld [vmem:[#allocation2 + $0x28] sm:$0xff]
    %v265 = vld [vmem:[#allocation2 + $0x30] sm:$0xff]
    %v266 = vld [vmem:[#allocation2 + $0x38] sm:$0xff]
    %v267 = vld [vmem:[#allocation2 + $0x40] sm:$0xff]
    %v268 = vld [vmem:[#allocation2 + $0x48] sm:$0xff]
    %v269 = vld [vmem:[#allocation2 + $0x50] sm:$0xff]
    %v270 = vld [vmem:[#allocation2 + $0x58] sm:$0xff]
    %v271 = vld [vmem:[#allocation2 + $0x60] sm:$0xff]
    %v272 = vld [vmem:[#allocation2 + $0x68] sm:$0xff]
    %v273 = vld [vmem:[#allocation2 + $0x70] sm:$0xff]
    %v274 = vld [vmem:[#allocation2 + $0x78] sm:$0xff]
    %v275 = vpack.c.bf16 %v259, %v259
    %v276 = vpack.c.bf16 %v260, %v260
    %v277 = vpack.c.bf16 %v261, %v261
    %v278 = vpack.c.bf16 %v262, %v262
    %v279 = vpack.c.bf16 %v263, %v263
    %v280 = vpack.c.bf16 %v264, %v264
    %v281 = vpack.c.bf16 %v265, %v265
    %v282 = vpack.c.bf16 %v266, %v266
    %v283 = vpack.c.bf16 %v267, %v267
    %v284 = vpack.c.bf16 %v268, %v268
    %v285 = vpack.c.bf16 %v269, %v269
    %v286 = vpack.c.bf16 %v270, %v270
    %v287 = vpack.c.bf16 %v271, %v271
    %v288 = vpack.c.bf16 %v272, %v272
    %v289 = vpack.c.bf16 %v273, %v273
    %v290 = vpack.c.bf16 %v274, %v274
    %291 = vst [vmem:[%s2] sm:$0xf] %v275
    %292 = vst [vmem:[%s2 + $0x4] sm:$0xf] %v276
    %293 = vst [vmem:[%s2 + $0x8] sm:$0xf] %v277
    %294 = vst [vmem:[%s2 + $0xc] sm:$0xf] %v278
    %295 = vst [vmem:[%s2 + $0x10] sm:$0xf] %v279
    %296 = vst [vmem:[%s2 + $0x14] sm:$0xf] %v280
    %297 = vst [vmem:[%s2 + $0x18] sm:$0xf] %v281
    %298 = vst [vmem:[%s2 + $0x1c] sm:$0xf] %v282
    %299 = vst [vmem:[%s2 + $0x20] sm:$0xf] %v283
    %300 = vst [vmem:[%s2 + $0x24] sm:$0xf] %v284
    %301 = vst [vmem:[%s2 + $0x28] sm:$0xf] %v285
    %302 = vst [vmem:[%s2 + $0x2c] sm:$0xf] %v286
    %303 = vst [vmem:[%s2 + $0x30] sm:$0xf] %v287
    %304 = vst [vmem:[%s2 + $0x34] sm:$0xf] %v288
    %305 = vst [vmem:[%s2 + $0x38] sm:$0xf] %v289
    %306 = vst [vmem:[%s2 + $0x3c] sm:$0xf] %v290
  $region17: #{preact_bottleneck_forward.12} parent=0 // pred_fallthru
    _
  // Predicated region
  $region18: #{preact_bottleneck_forward.12} parent=0 // pred_check
    _
  $region19: #{preact_bottleneck_forward.12} parent=0 // pred_check_branch
    %308 = sbr.rel (0) target = $region21
  $region20: #{preact_bottleneck_forward.12} parent=0 // pred_region
    _
  $region21: #{preact_bottleneck_forward.12} parent=0 // pred_fallthru
    _
  // Predicated region
  $region22: #{preact_bottleneck_forward.12} parent=0 // pred_check
    _
  $region23: #{preact_bottleneck_forward.12} parent=0 // pred_check_branch
    %310 = sbr.rel (0) target = $region25
  $region24: #{preact_bottleneck_forward.12} parent=0 // pred_region
    _
  $region25: #{preact_bottleneck_forward.12} parent=0 // pred_fallthru
    _

// kernel: preact_bottleneck_forward.10
$region0: #{preact_bottleneck_forward.10}
  #allocation0 [shape = 'u32[]', space=smem, size = 0x4, offset = 0x4, fixed_abs, tag = 'smem constant byte address 0x4 - core index']
  #allocation1 [shape = 'u32[72,128]{1,0:T(1,128)}', space=vmem, size = 0x9000, scoped, tag = 'internal scratch']
  #allocation2 [shape = 'f32[128,128]{1,0:T(8,128)}', space=vmem, size = 0x10000, scoped, tag = 'scratch operand']
  %s0 = inlined_call_operand.vmem [shape: bf16[128,1152], index: 0, kind: input, shape index: {}]
  %s1 = inlined_call_operand.vmem [shape: bf16[1152,128], index: 1, kind: input, shape index: {}]
  %s2 = inlined_call_operand.vmem [shape: bf16[128,128], index: 2, kind: output, shape index: {}]
  %s3 = sld [smem:[#allocation0]]
  $region26: #{preact_bottleneck_forward.10} parent=0
    _
  %s5 = ssub.s32 1, %s3
  %s6 = scalar_select 0, %s5, %s3
  // Predicated region
  $region2: #{preact_bottleneck_forward.10} parent=0 // pred_check
    _
  $region3: #{preact_bottleneck_forward.10} parent=0 // pred_check_branch
    %8 = sbr.rel (0) target = $region5
  $region4: #{preact_bottleneck_forward.10} parent=0 // pred_region
    _
  $region5: #{preact_bottleneck_forward.10} parent=0 // pred_fallthru
    _
  // Predicated region
  $region6: #{preact_bottleneck_forward.10} parent=0 // pred_check
    _
  $region7: #{preact_bottleneck_forward.10} parent=0 // pred_check_branch
    %10 = sbr.rel (0) target = $region9
  $region8: #{preact_bottleneck_forward.10} parent=0 // pred_region
    _
  $region9: #{preact_bottleneck_forward.10} parent=0 // pred_fallthru
    _
  %p11 = scmp.eq.s32.totalorder 0, 0
  // Predicated region
  $region10: #{preact_bottleneck_forward.10} parent=0 // pred_check
    %p12 = pneg %p11
  $region11: #{preact_bottleneck_forward.10} parent=0 // pred_check_branch
    %14 = sbr.rel (%p12) target = $region13
  $region12: #{preact_bottleneck_forward.10} parent=0 // pred_region
    %15 = vst [vmem:[#allocation2] sm:$0xff] 0.0
    %16 = vst [vmem:[#allocation2 + $0x8] sm:$0xff] 0.0
    %17 = vst [vmem:[#allocation2 + $0x10] sm:$0xff] 0.0
    %18 = vst [vmem:[#allocation2 + $0x18] sm:$0xff] 0.0
    %19 = vst [vmem:[#allocation2 + $0x20] sm:$0xff] 0.0
    %20 = vst [vmem:[#allocation2 + $0x28] sm:$0xff] 0.0
    %21 = vst [vmem:[#allocation2 + $0x30] sm:$0xff] 0.0
    %22 = vst [vmem:[#allocation2 + $0x38] sm:$0xff] 0.0
    %23 = vst [vmem:[#allocation2 + $0x40] sm:$0xff] 0.0
    %24 = vst [vmem:[#allocation2 + $0x48] sm:$0xff] 0.0
    %25 = vst [vmem:[#allocation2 + $0x50] sm:$0xff] 0.0
    %26 = vst [vmem:[#allocation2 + $0x58] sm:$0xff] 0.0
    %27 = vst [vmem:[#allocation2 + $0x60] sm:$0xff] 0.0
    %28 = vst [vmem:[#allocation2 + $0x68] sm:$0xff] 0.0
    %29 = vst [vmem:[#allocation2 + $0x70] sm:$0xff] 0.0
    %30 = vst [vmem:[#allocation2 + $0x78] sm:$0xff] 0.0
  $region13: #{preact_bottleneck_forward.10} parent=0 // pred_fallthru
    _
  %v31 = vld [vmem:[#allocation2] sm:$0xff]
  %v32 = vld [vmem:[#allocation2 + $0x8] sm:$0xff]
  %v33 = vld [vmem:[#allocation2 + $0x10] sm:$0xff]
  %v34 = vld [vmem:[#allocation2 + $0x18] sm:$0xff]
  %v35 = vld [vmem:[#allocation2 + $0x20] sm:$0xff]
  %v36 = vld [vmem:[#allocation2 + $0x28] sm:$0xff]
  %v37 = vld [vmem:[#allocation2 + $0x30] sm:$0xff]
  %v38 = vld [vmem:[#allocation2 + $0x38] sm:$0xff]
  %v39 = vld [vmem:[#allocation2 + $0x40] sm:$0xff]
  %v40 = vld [vmem:[#allocation2 + $0x48] sm:$0xff]
  %v41 = vld [vmem:[#allocation2 + $0x50] sm:$0xff]
  %v42 = vld [vmem:[#allocation2 + $0x58] sm:$0xff]
  %v43 = vld [vmem:[#allocation2 + $0x60] sm:$0xff]
  %v44 = vld [vmem:[#allocation2 + $0x68] sm:$0xff]
  %v45 = vld [vmem:[#allocation2 + $0x70] sm:$0xff]
  %v46 = vld [vmem:[#allocation2 + $0x78] sm:$0xff]
  %v47 = vld [vmem:[%s0] sm:$0xff]
  %v48 = vld [vmem:[%s0 + $0x8] sm:$0xff]
  %v49 = vld [vmem:[%s0 + $0x10] sm:$0xff]
  %v50 = vld [vmem:[%s0 + $0x18] sm:$0xff]
  %v51 = vld [vmem:[%s0 + $0x20] sm:$0xf]
  %v52 = vld [vmem:[%s0 + $0x24] sm:$0xff]
  %v53 = vld [vmem:[%s0 + $0x2c] sm:$0xff]
  %v54 = vld [vmem:[%s0 + $0x34] sm:$0xff]
  %v55 = vld [vmem:[%s0 + $0x3c] sm:$0xff]
  %v56 = vld [vmem:[%s0 + $0x44] sm:$0xf]
  %v57 = vld [vmem:[%s0 + $0x48] sm:$0xff]
  %v58 = vld [vmem:[%s0 + $0x50] sm:$0xff]
  %v59 = vld [vmem:[%s0 + $0x58] sm:$0xff]
  %v60 = vld [vmem:[%s0 + $0x60] sm:$0xff]
  %v61 = vld [vmem:[%s0 + $0x68] sm:$0xf]
  %v62 = vld [vmem:[%s0 + $0x6c] sm:$0xff]
  %v63 = vld [vmem:[%s0 + $0x74] sm:$0xff]
  %v64 = vld [vmem:[%s0 + $0x7c] sm:$0xff]
  %v65 = vld [vmem:[%s0 + $0x84] sm:$0xff]
  %v66 = vld [vmem:[%s0 + $0x8c] sm:$0xf]
  %v67 = vld [vmem:[%s0 + $0x90] sm:$0xff]
  %v68 = vld [vmem:[%s0 + $0x98] sm:$0xff]
  %v69 = vld [vmem:[%s0 + $0xa0] sm:$0xff]
  %v70 = vld [vmem:[%s0 + $0xa8] sm:$0xff]
  %v71 = vld [vmem:[%s0 + $0xb0] sm:$0xf]
  %v72 = vld [vmem:[%s0 + $0xb4] sm:$0xff]
  %v73 = vld [vmem:[%s0 + $0xbc] sm:$0xff]
  %v74 = vld [vmem:[%s0 + $0xc4] sm:$0xff]
  %v75 = vld [vmem:[%s0 + $0xcc] sm:$0xff]
  %v76 = vld [vmem:[%s0 + $0xd4] sm:$0xf]
  %v77 = vld [vmem:[%s0 + $0xd8] sm:$0xff]
  %v78 = vld [vmem:[%s0 + $0xe0] sm:$0xff]
  %v79 = vld [vmem:[%s0 + $0xe8] sm:$0xff]
  %v80 = vld [vmem:[%s0 + $0xf0] sm:$0xff]
  %v81 = vld [vmem:[%s0 + $0xf8] sm:$0xf]
  %v82 = vld [vmem:[%s0 + $0xfc] sm:$0xff]
  %v83 = vld [vmem:[%s0 + $0x104] sm:$0xff]
  %v84 = vld [vmem:[%s0 + $0x10c] sm:$0xff]
  %v85 = vld [vmem:[%s0 + $0x114] sm:$0xff]
  %v86 = vld [vmem:[%s0 + $0x11c] sm:$0xf]
  %v87 = vld [vmem:[%s0 + $0x120] sm:$0xff]
  %v88 = vld [vmem:[%s0 + $0x128] sm:$0xff]
  %v89 = vld [vmem:[%s0 + $0x130] sm:$0xff]
  %v90 = vld [vmem:[%s0 + $0x138] sm:$0xff]
  %v91 = vld [vmem:[%s0 + $0x140] sm:$0xf]
  %v92 = vld [vmem:[%s0 + $0x144] sm:$0xff]
  %v93 = vld [vmem:[%s0 + $0x14c] sm:$0xff]
  %v94 = vld [vmem:[%s0 + $0x154] sm:$0xff]
  %v95 = vld [vmem:[%s0 + $0x15c] sm:$0xff]
  %v96 = vld [vmem:[%s0 + $0x164] sm:$0xf]
  %v97 = vld [vmem:[%s0 + $0x168] sm:$0xff]
  %v98 = vld [vmem:[%s0 + $0x170] sm:$0xff]
  %v99 = vld [vmem:[%s0 + $0x178] sm:$0xff]
  %v100 = vld [vmem:[%s0 + $0x180] sm:$0xff]
  %v101 = vld [vmem:[%s0 + $0x188] sm:$0xf]
  %v102 = vld [vmem:[%s0 + $0x18c] sm:$0xff]
  %v103 = vld [vmem:[%s0 + $0x194] sm:$0xff]
  %v104 = vld [vmem:[%s0 + $0x19c] sm:$0xff]
  %v105 = vld [vmem:[%s0 + $0x1a4] sm:$0xff]
  %v106 = vld [vmem:[%s0 + $0x1ac] sm:$0xf]
  %v107 = vld [vmem:[%s0 + $0x1b0] sm:$0xff]
  %v108 = vld [vmem:[%s0 + $0x1b8] sm:$0xff]
  %v109 = vld [vmem:[%s0 + $0x1c0] sm:$0xff]
  %v110 = vld [vmem:[%s0 + $0x1c8] sm:$0xff]
  %v111 = vld [vmem:[%s0 + $0x1d0] sm:$0xf]
  %v112 = vld [vmem:[%s0 + $0x1d4] sm:$0xff]
  %v113 = vld [vmem:[%s0 + $0x1dc] sm:$0xff]
  %v114 = vld [vmem:[%s0 + $0x1e4] sm:$0xff]
  %v115 = vld [vmem:[%s0 + $0x1ec] sm:$0xff]
  %v116 = vld [vmem:[%s0 + $0x1f4] sm:$0xf]
  %v117 = vld [vmem:[%s0 + $0x1f8] sm:$0xff]
  %v118 = vld [vmem:[%s0 + $0x200] sm:$0xff]
  %v119 = vld [vmem:[%s0 + $0x208] sm:$0xff]
  %v120 = vld [vmem:[%s0 + $0x210] sm:$0xff]
  %v121 = vld [vmem:[%s0 + $0x218] sm:$0xf]
  %v122 = vld [vmem:[%s0 + $0x21c] sm:$0xff]
  %v123 = vld [vmem:[%s0 + $0x224] sm:$0xff]
  %v124 = vld [vmem:[%s0 + $0x22c] sm:$0xff]
  %v125 = vld [vmem:[%s0 + $0x234] sm:$0xff]
  %v126 = vld [vmem:[%s0 + $0x23c] sm:$0xf]
  %v127 = vld [vmem:[%s1] sm:$0xf]
  %v128 = vld [vmem:[%s1 + $0x4] sm:$0xf]
  %v129 = vld [vmem:[%s1 + $0x8] sm:$0xf]
  %v130 = vld [vmem:[%s1 + $0xc] sm:$0xf]
  %v131 = vld [vmem:[%s1 + $0x10] sm:$0xf]
  %v132 = vld [vmem:[%s1 + $0x14] sm:$0xf]
  %v133 = vld [vmem:[%s1 + $0x18] sm:$0xf]
  %v134 = vld [vmem:[%s1 + $0x1c] sm:$0xf]
  %v135 = vld [vmem:[%s1 + $0x20] sm:$0xf]
  %v136 = vld [vmem:[%s1 + $0x24] sm:$0xf]
  %v137 = vld [vmem:[%s1 + $0x28] sm:$0xf]
  %v138 = vld [vmem:[%s1 + $0x2c] sm:$0xf]
  %v139 = vld [vmem:[%s1 + $0x30] sm:$0xf]
  %v140 = vld [vmem:[%s1 + $0x34] sm:$0xf]
  %v141 = vld [vmem:[%s1 + $0x38] sm:$0xf]
  %v142 = vld [vmem:[%s1 + $0x3c] sm:$0xf]
  %v143 = vld [vmem:[%s1 + $0x40] sm:$0xf]
  %v144 = vld [vmem:[%s1 + $0x44] sm:$0xf]
  %v145 = vld [vmem:[%s1 + $0x48] sm:$0xf]
  %v146 = vld [vmem:[%s1 + $0x4c] sm:$0xf]
  %v147 = vld [vmem:[%s1 + $0x50] sm:$0xf]
  %v148 = vld [vmem:[%s1 + $0x54] sm:$0xf]
  %v149 = vld [vmem:[%s1 + $0x58] sm:$0xf]
  %v150 = vld [vmem:[%s1 + $0x5c] sm:$0xf]
  %v151 = vld [vmem:[%s1 + $0x60] sm:$0xf]
  %v152 = vld [vmem:[%s1 + $0x64] sm:$0xf]
  %v153 = vld [vmem:[%s1 + $0x68] sm:$0xf]
  %v154 = vld [vmem:[%s1 + $0x6c] sm:$0xf]
  %v155 = vld [vmem:[%s1 + $0x70] sm:$0xf]
  %v156 = vld [vmem:[%s1 + $0x74] sm:$0xf]
  %v157 = vld [vmem:[%s1 + $0x78] sm:$0xf]
  %v158 = vld [vmem:[%s1 + $0x7c] sm:$0xf]
  %v159 = vld [vmem:[%s1 + $0x80] sm:$0xf]
  %v160 = vld [vmem:[%s1 + $0x84] sm:$0xf]
  %v161 = vld [vmem:[%s1 + $0x88] sm:$0xf]
  %v162 = vld [vmem:[%s1 + $0x8c] sm:$0xf]
  %v163 = vld [vmem:[%s1 + $0x90] sm:$0xf]
  %v164 = vld [vmem:[%s1 + $0x94] sm:$0xf]
  %v165 = vld [vmem:[%s1 + $0x98] sm:$0xf]
  %v166 = vld [vmem:[%s1 + $0x9c] sm:$0xf]
  %v167 = vld [vmem:[%s1 + $0xa0] sm:$0xf]
  %v168 = vld [vmem:[%s1 + $0xa4] sm:$0xf]
  %v169 = vld [vmem:[%s1 + $0xa8] sm:$0xf]
  %v170 = vld [vmem:[%s1 + $0xac] sm:$0xf]
  %v171 = vld [vmem:[%s1 + $0xb0] sm:$0xf]
  %v172 = vld [vmem:[%s1 + $0xb4] sm:$0xf]
  %v173 = vld [vmem:[%s1 + $0xb8] sm:$0xf]
  %v174 = vld [vmem:[%s1 + $0xbc] sm:$0xf]
  %v175 = vld [vmem:[%s1 + $0xc0] sm:$0xf]
  %v176 = vld [vmem:[%s1 + $0xc4] sm:$0xf]
  %v177 = vld [vmem:[%s1 + $0xc8] sm:$0xf]
  %v178 = vld [vmem:[%s1 + $0xcc] sm:$0xf]
  %v179 = vld [vmem:[%s1 + $0xd0] sm:$0xf]
  %v180 = vld [vmem:[%s1 + $0xd4] sm:$0xf]
  %v181 = vld [vmem:[%s1 + $0xd8] sm:$0xf]
  %v182 = vld [vmem:[%s1 + $0xdc] sm:$0xf]
  %v183 = vld [vmem:[%s1 + $0xe0] sm:$0xf]
  %v184 = vld [vmem:[%s1 + $0xe4] sm:$0xf]
  %v185 = vld [vmem:[%s1 + $0xe8] sm:$0xf]
  %v186 = vld [vmem:[%s1 + $0xec] sm:$0xf]
  %v187 = vld [vmem:[%s1 + $0xf0] sm:$0xf]
  %v188 = vld [vmem:[%s1 + $0xf4] sm:$0xf]
  %v189 = vld [vmem:[%s1 + $0xf8] sm:$0xf]
  %v190 = vld [vmem:[%s1 + $0xfc] sm:$0xf]
  %v191 = vld [vmem:[%s1 + $0x100] sm:$0xf]
  %v192 = vld [vmem:[%s1 + $0x104] sm:$0xf]
  %v193 = vld [vmem:[%s1 + $0x108] sm:$0xf]
  %v194 = vld [vmem:[%s1 + $0x10c] sm:$0xf]
  %v195 = vld [vmem:[%s1 + $0x110] sm:$0xf]
  %v196 = vld [vmem:[%s1 + $0x114] sm:$0xf]
  %v197 = vld [vmem:[%s1 + $0x118] sm:$0xf]
  %v198 = vld [vmem:[%s1 + $0x11c] sm:$0xf]
  %v199 = vld [vmem:[%s1 + $0x120] sm:$0xf]
  %v200 = vld [vmem:[%s1 + $0x124] sm:$0xf]
  %v201 = vld [vmem:[%s1 + $0x128] sm:$0xf]
  %v202 = vld [vmem:[%s1 + $0x12c] sm:$0xf]
  %v203 = vld [vmem:[%s1 + $0x130] sm:$0xf]
  %v204 = vld [vmem:[%s1 + $0x134] sm:$0xf]
  %v205 = vld [vmem:[%s1 + $0x138] sm:$0xf]
  %v206 = vld [vmem:[%s1 + $0x13c] sm:$0xf]
  %v207 = vld [vmem:[%s1 + $0x140] sm:$0xf]
  %v208 = vld [vmem:[%s1 + $0x144] sm:$0xf]
  %v209 = vld [vmem:[%s1 + $0x148] sm:$0xf]
  %v210 = vld [vmem:[%s1 + $0x14c] sm:$0xf]
  %v211 = vld [vmem:[%s1 + $0x150] sm:$0xf]
  %v212 = vld [vmem:[%s1 + $0x154] sm:$0xf]
  %v213 = vld [vmem:[%s1 + $0x158] sm:$0xf]
  %v214 = vld [vmem:[%s1 + $0x15c] sm:$0xf]
  %v215 = vld [vmem:[%s1 + $0x160] sm:$0xf]
  %v216 = vld [vmem:[%s1 + $0x164] sm:$0xf]
  %v217 = vld [vmem:[%s1 + $0x168] sm:$0xf]
  %v218 = vld [vmem:[%s1 + $0x16c] sm:$0xf]
  %v219 = vld [vmem:[%s1 + $0x170] sm:$0xf]
  %v220 = vld [vmem:[%s1 + $0x174] sm:$0xf]
  %v221 = vld [vmem:[%s1 + $0x178] sm:$0xf]
  %v222 = vld [vmem:[%s1 + $0x17c] sm:$0xf]
  %v223 = vld [vmem:[%s1 + $0x180] sm:$0xf]
  %v224 = vld [vmem:[%s1 + $0x184] sm:$0xf]
  %v225 = vld [vmem:[%s1 + $0x188] sm:$0xf]
  %v226 = vld [vmem:[%s1 + $0x18c] sm:$0xf]
  %v227 = vld [vmem:[%s1 + $0x190] sm:$0xf]
  %v228 = vld [vmem:[%s1 + $0x194] sm:$0xf]
  %v229 = vld [vmem:[%s1 + $0x198] sm:$0xf]
  %v230 = vld [vmem:[%s1 + $0x19c] sm:$0xf]
  %v231 = vld [vmem:[%s1 + $0x1a0] sm:$0xf]
  %v232 = vld [vmem:[%s1 + $0x1a4] sm:$0xf]
  %v233 = vld [vmem:[%s1 + $0x1a8] sm:$0xf]
  %v234 = vld [vmem:[%s1 + $0x1ac] sm:$0xf]
  %v235 = vld [vmem:[%s1 + $0x1b0] sm:$0xf]
  %v236 = vld [vmem:[%s1 + $0x1b4] sm:$0xf]
  %v237 = vld [vmem:[%s1 + $0x1b8] sm:$0xf]
  %v238 = vld [vmem:[%s1 + $0x1bc] sm:$0xf]
  %v239 = vld [vmem:[%s1 + $0x1c0] sm:$0xf]
  %v240 = vld [vmem:[%s1 + $0x1c4] sm:$0xf]
  %v241 = vld [vmem:[%s1 + $0x1c8] sm:$0xf]
  %v242 = vld [vmem:[%s1 + $0x1cc] sm:$0xf]
  %v243 = vld [vmem:[%s1 + $0x1d0] sm:$0xf]
  %v244 = vld [vmem:[%s1 + $0x1d4] sm:$0xf]
  %v245 = vld [vmem:[%s1 + $0x1d8] sm:$0xf]
  %v246 = vld [vmem:[%s1 + $0x1dc] sm:$0xf]
  %v247 = vld [vmem:[%s1 + $0x1e0] sm:$0xf]
  %v248 = vld [vmem:[%s1 + $0x1e4] sm:$0xf]
  %v249 = vld [vmem:[%s1 + $0x1e8] sm:$0xf]
  %v250 = vld [vmem:[%s1 + $0x1ec] sm:$0xf]
  %v251 = vld [vmem:[%s1 + $0x1f0] sm:$0xf]
  %v252 = vld [vmem:[%s1 + $0x1f4] sm:$0xf]
  %v253 = vld [vmem:[%s1 + $0x1f8] sm:$0xf]
  %v254 = vld [vmem:[%s1 + $0x1fc] sm:$0xf]
  %v255 = vld [vmem:[%s1 + $0x200] sm:$0xf]
  %v256 = vld [vmem:[%s1 + $0x204] sm:$0xf]
  %v257 = vld [vmem:[%s1 + $0x208] sm:$0xf]
  %v258 = vld [vmem:[%s1 + $0x20c] sm:$0xf]
  %v259 = vld [vmem:[%s1 + $0x210] sm:$0xf]
  %v260 = vld [vmem:[%s1 + $0x214] sm:$0xf]
  %v261 = vld [vmem:[%s1 + $0x218] sm:$0xf]
  %v262 = vld [vmem:[%s1 + $0x21c] sm:$0xf]
  %v263 = vld [vmem:[%s1 + $0x220] sm:$0xf]
  %v264 = vld [vmem:[%s1 + $0x224] sm:$0xf]
  %v265 = vld [vmem:[%s1 + $0x228] sm:$0xf]
  %v266 = vld [vmem:[%s1 + $0x22c] sm:$0xf]
  %v267 = vld [vmem:[%s1 + $0x230] sm:$0xf]
  %v268 = vld [vmem:[%s1 + $0x234] sm:$0xf]
  %v269 = vld [vmem:[%s1 + $0x238] sm:$0xf]
  %v270 = vld [vmem:[%s1 + $0x23c] sm:$0xf]
  %v351 = vunpack.c.l.b16 %v47
  %v352 = vunpack.c.h.b16 %v47
  %v353 = vunpack.c.l.b16 %v48
  %v354 = vunpack.c.h.b16 %v48
  %v355 = vunpack.c.l.b16 %v49
  %v356 = vunpack.c.h.b16 %v49
  %v357 = vunpack.c.l.b16 %v50
  %v358 = vunpack.c.h.b16 %v50
  %v359 = vunpack.c.l.b16 %v51
  %v360 = vunpack.c.l.b16 %v52
  %v361 = vunpack.c.h.b16 %v52
  %v362 = vunpack.c.l.b16 %v53
  %v363 = vunpack.c.h.b16 %v53
  %v364 = vunpack.c.l.b16 %v54
  %v365 = vunpack.c.h.b16 %v54
  %v366 = vunpack.c.l.b16 %v55
  %v367 = vunpack.c.h.b16 %v55
  %v368 = vunpack.c.l.b16 %v56
  %v369 = vunpack.c.l.b16 %v57
  %v370 = vunpack.c.h.b16 %v57
  %v371 = vunpack.c.l.b16 %v58
  %v372 = vunpack.c.h.b16 %v58
  %v373 = vunpack.c.l.b16 %v59
  %v374 = vunpack.c.h.b16 %v59
  %v375 = vunpack.c.l.b16 %v60
  %v376 = vunpack.c.h.b16 %v60
  %v377 = vunpack.c.l.b16 %v61
  %v378 = vunpack.c.l.b16 %v62
  %v379 = vunpack.c.h.b16 %v62
  %v380 = vunpack.c.l.b16 %v63
  %v381 = vunpack.c.h.b16 %v63
  %v382 = vunpack.c.l.b16 %v64
  %v383 = vunpack.c.h.b16 %v64
  %v384 = vunpack.c.l.b16 %v65
  %v385 = vunpack.c.h.b16 %v65
  %v386 = vunpack.c.l.b16 %v66
  %v387 = vunpack.c.l.b16 %v67
  %v388 = vunpack.c.h.b16 %v67
  %v389 = vunpack.c.l.b16 %v68
  %v390 = vunpack.c.h.b16 %v68
  %v391 = vunpack.c.l.b16 %v69
  %v392 = vunpack.c.h.b16 %v69
  %v393 = vunpack.c.l.b16 %v70
  %v394 = vunpack.c.h.b16 %v70
  %v395 = vunpack.c.l.b16 %v71
  %v396 = vunpack.c.l.b16 %v72
  %v397 = vunpack.c.h.b16 %v72
  %v398 = vunpack.c.l.b16 %v73
  %v399 = vunpack.c.h.b16 %v73
  %v400 = vunpack.c.l.b16 %v74
  %v401 = vunpack.c.h.b16 %v74
  %v402 = vunpack.c.l.b16 %v75
  %v403 = vunpack.c.h.b16 %v75
  %v404 = vunpack.c.l.b16 %v76
  %v405 = vunpack.c.l.b16 %v77
  %v406 = vunpack.c.h.b16 %v77
  %v407 = vunpack.c.l.b16 %v78
  %v408 = vunpack.c.h.b16 %v78
  %v409 = vunpack.c.l.b16 %v79
  %v410 = vunpack.c.h.b16 %v79
  %v411 = vunpack.c.l.b16 %v80
  %v412 = vunpack.c.h.b16 %v80
  %v413 = vunpack.c.l.b16 %v81
  %v414 = vunpack.c.l.b16 %v82
  %v415 = vunpack.c.h.b16 %v82
  %v416 = vunpack.c.l.b16 %v83
  %v417 = vunpack.c.h.b16 %v83
  %v418 = vunpack.c.l.b16 %v84
  %v419 = vunpack.c.h.b16 %v84
  %v420 = vunpack.c.l.b16 %v85
  %v421 = vunpack.c.h.b16 %v85
  %v422 = vunpack.c.l.b16 %v86
  %v423 = vunpack.c.l.b16 %v87
  %v424 = vunpack.c.h.b16 %v87
  %v425 = vunpack.c.l.b16 %v88
  %v426 = vunpack.c.h.b16 %v88
  %v427 = vunpack.c.l.b16 %v89
  %v428 = vunpack.c.h.b16 %v89
  %v429 = vunpack.c.l.b16 %v90
  %v430 = vunpack.c.h.b16 %v90
  %v431 = vunpack.c.l.b16 %v91
  %v432 = vunpack.c.l.b16 %v92
  %v433 = vunpack.c.h.b16 %v92
  %v434 = vunpack.c.l.b16 %v93
  %v435 = vunpack.c.h.b16 %v93
  %v436 = vunpack.c.l.b16 %v94
  %v437 = vunpack.c.h.b16 %v94
  %v438 = vunpack.c.l.b16 %v95
  %v439 = vunpack.c.h.b16 %v95
  %v440 = vunpack.c.l.b16 %v96
  %v441 = vunpack.c.l.b16 %v97
  %v442 = vunpack.c.h.b16 %v97
  %v443 = vunpack.c.l.b16 %v98
  %v444 = vunpack.c.h.b16 %v98
  %v445 = vunpack.c.l.b16 %v99
  %v446 = vunpack.c.h.b16 %v99
  %v447 = vunpack.c.l.b16 %v100
  %v448 = vunpack.c.h.b16 %v100
  %v449 = vunpack.c.l.b16 %v101
  %v450 = vunpack.c.l.b16 %v102
  %v451 = vunpack.c.h.b16 %v102
  %v452 = vunpack.c.l.b16 %v103
  %v453 = vunpack.c.h.b16 %v103
  %v454 = vunpack.c.l.b16 %v104
  %v455 = vunpack.c.h.b16 %v104
  %v456 = vunpack.c.l.b16 %v105
  %v457 = vunpack.c.h.b16 %v105
  %v458 = vunpack.c.l.b16 %v106
  %v459 = vunpack.c.l.b16 %v107
  %v460 = vunpack.c.h.b16 %v107
  %v461 = vunpack.c.l.b16 %v108
  %v462 = vunpack.c.h.b16 %v108
  %v463 = vunpack.c.l.b16 %v109
  %v464 = vunpack.c.h.b16 %v109
  %v465 = vunpack.c.l.b16 %v110
  %v466 = vunpack.c.h.b16 %v110
  %v467 = vunpack.c.l.b16 %v111
  %v468 = vunpack.c.l.b16 %v112
  %v469 = vunpack.c.h.b16 %v112
  %v470 = vunpack.c.l.b16 %v113
  %v471 = vunpack.c.h.b16 %v113
  %v472 = vunpack.c.l.b16 %v114
  %v473 = vunpack.c.h.b16 %v114
  %v474 = vunpack.c.l.b16 %v115
  %v475 = vunpack.c.h.b16 %v115
  %v476 = vunpack.c.l.b16 %v116
  %v477 = vunpack.c.l.b16 %v117
  %v478 = vunpack.c.h.b16 %v117
  %v479 = vunpack.c.l.b16 %v118
  %v480 = vunpack.c.h.b16 %v118
  %v481 = vunpack.c.l.b16 %v119
  %v482 = vunpack.c.h.b16 %v119
  %v483 = vunpack.c.l.b16 %v120
  %v484 = vunpack.c.h.b16 %v120
  %v485 = vunpack.c.l.b16 %v121
  %v486 = vunpack.c.l.b16 %v122
  %v487 = vunpack.c.h.b16 %v122
  %v488 = vunpack.c.l.b16 %v123
  %v489 = vunpack.c.h.b16 %v123
  %v490 = vunpack.c.l.b16 %v124
  %v491 = vunpack.c.h.b16 %v124
  %v492 = vunpack.c.l.b16 %v125
  %v493 = vunpack.c.h.b16 %v125
  %v494 = vunpack.c.l.b16 %v126
  %v495 = vpack.c.b16 %v360, %v351
  %v496 = vpack.c.b16 %v361, %v352
  %v497 = vpack.c.b16 %v362, %v353
  %v498 = vpack.c.b16 %v363, %v354
  %v499 = vpack.c.b16 %v364, %v355
  %v500 = vpack.c.b16 %v365, %v356
  %v501 = vpack.c.b16 %v366, %v357
  %v502 = vpack.c.b16 %v367, %v358
  %v503 = vpack.c.b16 %v368, %v359
  %v504 = vpack.c.b16 %v378, %v369
  %v505 = vpack.c.b16 %v379, %v370
  %v506 = vpack.c.b16 %v380, %v371
  %v507 = vpack.c.b16 %v381, %v372
  %v508 = vpack.c.b16 %v382, %v373
  %v509 = vpack.c.b16 %v383, %v374
  %v510 = vpack.c.b16 %v384, %v375
  %v511 = vpack.c.b16 %v385, %v376
  %v512 = vpack.c.b16 %v386, %v377
  %v513 = vpack.c.b16 %v396, %v387
  %v514 = vpack.c.b16 %v397, %v388
  %v515 = vpack.c.b16 %v398, %v389
  %v516 = vpack.c.b16 %v399, %v390
  %v517 = vpack.c.b16 %v400, %v391
  %v518 = vpack.c.b16 %v401, %v392
  %v519 = vpack.c.b16 %v402, %v393
  %v520 = vpack.c.b16 %v403, %v394
  %v521 = vpack.c.b16 %v404, %v395
  %v522 = vpack.c.b16 %v414, %v405
  %v523 = vpack.c.b16 %v415, %v406
  %v524 = vpack.c.b16 %v416, %v407
  %v525 = vpack.c.b16 %v417, %v408
  %v526 = vpack.c.b16 %v418, %v409
  %v527 = vpack.c.b16 %v419, %v410
  %v528 = vpack.c.b16 %v420, %v411
  %v529 = vpack.c.b16 %v421, %v412
  %v530 = vpack.c.b16 %v422, %v413
  %v531 = vpack.c.b16 %v432, %v423
  %v532 = vpack.c.b16 %v433, %v424
  %v533 = vpack.c.b16 %v434, %v425
  %v534 = vpack.c.b16 %v435, %v426
  %v535 = vpack.c.b16 %v436, %v427
  %v536 = vpack.c.b16 %v437, %v428
  %v537 = vpack.c.b16 %v438, %v429
  %v538 = vpack.c.b16 %v439, %v430
  %v539 = vpack.c.b16 %v440, %v431
  %v540 = vpack.c.b16 %v450, %v441
  %v541 = vpack.c.b16 %v451, %v442
  %v542 = vpack.c.b16 %v452, %v443
  %v543 = vpack.c.b16 %v453, %v444
  %v544 = vpack.c.b16 %v454, %v445
  %v545 = vpack.c.b16 %v455, %v446
  %v546 = vpack.c.b16 %v456, %v447
  %v547 = vpack.c.b16 %v457, %v448
  %v548 = vpack.c.b16 %v458, %v449
  %v549 = vpack.c.b16 %v468, %v459
  %v550 = vpack.c.b16 %v469, %v460
  %v551 = vpack.c.b16 %v470, %v461
  %v552 = vpack.c.b16 %v471, %v462
  %v553 = vpack.c.b16 %v472, %v463
  %v554 = vpack.c.b16 %v473, %v464
  %v555 = vpack.c.b16 %v474, %v465
  %v556 = vpack.c.b16 %v475, %v466
  %v557 = vpack.c.b16 %v476, %v467
  %v558 = vpack.c.b16 %v486, %v477
  %v559 = vpack.c.b16 %v487, %v478
  %v560 = vpack.c.b16 %v488, %v479
  %v561 = vpack.c.b16 %v489, %v480
  %v562 = vpack.c.b16 %v490, %v481
  %v563 = vpack.c.b16 %v491, %v482
  %v564 = vpack.c.b16 %v492, %v483
  %v565 = vpack.c.b16 %v493, %v484
  %v566 = vpack.c.b16 %v494, %v485
  %v783 = vunpack.c.l.b16 %v127
  %v784 = vunpack.c.l.b16 %v128
  %v785 = vunpack.c.l.b16 %v129
  %v786 = vunpack.c.l.b16 %v130
  %v787 = vunpack.c.l.b16 %v131
  %v788 = vunpack.c.l.b16 %v132
  %v789 = vunpack.c.l.b16 %v133
  %v790 = vunpack.c.l.b16 %v134
  %v791 = vunpack.c.l.b16 %v135
  %v792 = vunpack.c.l.b16 %v136
  %v793 = vunpack.c.l.b16 %v137
  %v794 = vunpack.c.l.b16 %v138
  %v795 = vunpack.c.l.b16 %v139
  %v796 = vunpack.c.l.b16 %v140
  %v797 = vunpack.c.l.b16 %v141
  %v798 = vunpack.c.l.b16 %v142
  %v799 = vunpack.c.l.b16 %v143
  %v800 = vunpack.c.l.b16 %v144
  %v801 = vunpack.c.l.b16 %v145
  %v802 = vunpack.c.l.b16 %v146
  %v803 = vunpack.c.l.b16 %v147
  %v804 = vunpack.c.l.b16 %v148
  %v805 = vunpack.c.l.b16 %v149
  %v806 = vunpack.c.l.b16 %v150
  %v807 = vunpack.c.l.b16 %v151
  %v808 = vunpack.c.l.b16 %v152
  %v809 = vunpack.c.l.b16 %v153
  %v810 = vunpack.c.l.b16 %v154
  %v811 = vunpack.c.l.b16 %v155
  %v812 = vunpack.c.l.b16 %v156
  %v813 = vunpack.c.l.b16 %v157
  %v814 = vunpack.c.l.b16 %v158
  %v815 = vunpack.c.l.b16 %v159
  %v816 = vunpack.c.l.b16 %v160
  %v817 = vunpack.c.l.b16 %v161
  %v818 = vunpack.c.l.b16 %v162
  %v819 = vunpack.c.l.b16 %v163
  %v820 = vunpack.c.l.b16 %v164
  %v821 = vunpack.c.l.b16 %v165
  %v822 = vunpack.c.l.b16 %v166
  %v823 = vunpack.c.l.b16 %v167
  %v824 = vunpack.c.l.b16 %v168
  %v825 = vunpack.c.l.b16 %v169
  %v826 = vunpack.c.l.b16 %v170
  %v827 = vunpack.c.l.b16 %v171
  %v828 = vunpack.c.l.b16 %v172
  %v829 = vunpack.c.l.b16 %v173
  %v830 = vunpack.c.l.b16 %v174
  %v831 = vunpack.c.l.b16 %v175
  %v832 = vunpack.c.l.b16 %v176
  %v833 = vunpack.c.l.b16 %v177
  %v834 = vunpack.c.l.b16 %v178
  %v835 = vunpack.c.l.b16 %v179
  %v836 = vunpack.c.l.b16 %v180
  %v837 = vunpack.c.l.b16 %v181
  %v838 = vunpack.c.l.b16 %v182
  %v839 = vunpack.c.l.b16 %v183
  %v840 = vunpack.c.l.b16 %v184
  %v841 = vunpack.c.l.b16 %v185
  %v842 = vunpack.c.l.b16 %v186
  %v843 = vunpack.c.l.b16 %v187
  %v844 = vunpack.c.l.b16 %v188
  %v845 = vunpack.c.l.b16 %v189
  %v846 = vunpack.c.l.b16 %v190
  %v847 = vunpack.c.l.b16 %v191
  %v848 = vunpack.c.l.b16 %v192
  %v849 = vunpack.c.l.b16 %v193
  %v850 = vunpack.c.l.b16 %v194
  %v851 = vunpack.c.l.b16 %v195
  %v852 = vunpack.c.l.b16 %v196
  %v853 = vunpack.c.l.b16 %v197
  %v854 = vunpack.c.l.b16 %v198
  %v855 = vunpack.c.l.b16 %v199
  %v856 = vunpack.c.l.b16 %v200
  %v857 = vunpack.c.l.b16 %v201
  %v858 = vunpack.c.l.b16 %v202
  %v859 = vunpack.c.l.b16 %v203
  %v860 = vunpack.c.l.b16 %v204
  %v861 = vunpack.c.l.b16 %v205
  %v862 = vunpack.c.l.b16 %v206
  %v863 = vunpack.c.l.b16 %v207
  %v864 = vunpack.c.l.b16 %v208
  %v865 = vunpack.c.l.b16 %v209
  %v866 = vunpack.c.l.b16 %v210
  %v867 = vunpack.c.l.b16 %v211
  %v868 = vunpack.c.l.b16 %v212
  %v869 = vunpack.c.l.b16 %v213
  %v870 = vunpack.c.l.b16 %v214
  %v871 = vunpack.c.l.b16 %v215
  %v872 = vunpack.c.l.b16 %v216
  %v873 = vunpack.c.l.b16 %v217
  %v874 = vunpack.c.l.b16 %v218
  %v875 = vunpack.c.l.b16 %v219
  %v876 = vunpack.c.l.b16 %v220
  %v877 = vunpack.c.l.b16 %v221
  %v878 = vunpack.c.l.b16 %v222
  %v879 = vunpack.c.l.b16 %v223
  %v880 = vunpack.c.l.b16 %v224
  %v881 = vunpack.c.l.b16 %v225
  %v882 = vunpack.c.l.b16 %v226
  %v883 = vunpack.c.l.b16 %v227
  %v884 = vunpack.c.l.b16 %v228
  %v885 = vunpack.c.l.b16 %v229
  %v886 = vunpack.c.l.b16 %v230
  %v887 = vunpack.c.l.b16 %v231
  %v888 = vunpack.c.l.b16 %v232
  %v889 = vunpack.c.l.b16 %v233
  %v890 = vunpack.c.l.b16 %v234
  %v891 = vunpack.c.l.b16 %v235
  %v892 = vunpack.c.l.b16 %v236
  %v893 = vunpack.c.l.b16 %v237
  %v894 = vunpack.c.l.b16 %v238
  %v895 = vunpack.c.l.b16 %v239
  %v896 = vunpack.c.l.b16 %v240
  %v897 = vunpack.c.l.b16 %v241
  %v898 = vunpack.c.l.b16 %v242
  %v899 = vunpack.c.l.b16 %v243
  %v900 = vunpack.c.l.b16 %v244
  %v901 = vunpack.c.l.b16 %v245
  %v902 = vunpack.c.l.b16 %v246
  %v903 = vunpack.c.l.b16 %v247
  %v904 = vunpack.c.l.b16 %v248
  %v905 = vunpack.c.l.b16 %v249
  %v906 = vunpack.c.l.b16 %v250
  %v907 = vunpack.c.l.b16 %v251
  %v908 = vunpack.c.l.b16 %v252
  %v909 = vunpack.c.l.b16 %v253
  %v910 = vunpack.c.l.b16 %v254
  %v911 = vunpack.c.l.b16 %v255
  %v912 = vunpack.c.l.b16 %v256
  %v913 = vunpack.c.l.b16 %v257
  %v914 = vunpack.c.l.b16 %v258
  %v915 = vunpack.c.l.b16 %v259
  %v916 = vunpack.c.l.b16 %v260
  %v917 = vunpack.c.l.b16 %v261
  %v918 = vunpack.c.l.b16 %v262
  %v919 = vunpack.c.l.b16 %v263
  %v920 = vunpack.c.l.b16 %v264
  %v921 = vunpack.c.l.b16 %v265
  %v922 = vunpack.c.l.b16 %v266
  %v923 = vunpack.c.l.b16 %v267
  %v924 = vunpack.c.l.b16 %v268
  %v925 = vunpack.c.l.b16 %v269
  %v926 = vunpack.c.l.b16 %v270
  %v927 = vpack.c.b16 %v784, %v783
  %v928 = vpack.c.b16 %v786, %v785
  %v929 = vpack.c.b16 %v788, %v787
  %v930 = vpack.c.b16 %v790, %v789
  %v931 = vpack.c.b16 %v792, %v791
  %v932 = vpack.c.b16 %v794, %v793
  %v933 = vpack.c.b16 %v796, %v795
  %v934 = vpack.c.b16 %v798, %v797
  %v935 = vpack.c.b16 %v800, %v799
  %v936 = vpack.c.b16 %v802, %v801
  %v937 = vpack.c.b16 %v804, %v803
  %v938 = vpack.c.b16 %v806, %v805
  %v939 = vpack.c.b16 %v808, %v807
  %v940 = vpack.c.b16 %v810, %v809
  %v941 = vpack.c.b16 %v812, %v811
  %v942 = vpack.c.b16 %v814, %v813
  %v943 = vpack.c.b16 %v816, %v815
  %v944 = vpack.c.b16 %v818, %v817
  %v945 = vpack.c.b16 %v820, %v819
  %v946 = vpack.c.b16 %v822, %v821
  %v947 = vpack.c.b16 %v824, %v823
  %v948 = vpack.c.b16 %v826, %v825
  %v949 = vpack.c.b16 %v828, %v827
  %v950 = vpack.c.b16 %v830, %v829
  %v951 = vpack.c.b16 %v832, %v831
  %v952 = vpack.c.b16 %v834, %v833
  %v953 = vpack.c.b16 %v836, %v835
  %v954 = vpack.c.b16 %v838, %v837
  %v955 = vpack.c.b16 %v840, %v839
  %v956 = vpack.c.b16 %v842, %v841
  %v957 = vpack.c.b16 %v844, %v843
  %v958 = vpack.c.b16 %v846, %v845
  %v959 = vpack.c.b16 %v848, %v847
  %v960 = vpack.c.b16 %v850, %v849
  %v961 = vpack.c.b16 %v852, %v851
  %v962 = vpack.c.b16 %v854, %v853
  %v963 = vpack.c.b16 %v856, %v855
  %v964 = vpack.c.b16 %v858, %v857
  %v965 = vpack.c.b16 %v860, %v859
  %v966 = vpack.c.b16 %v862, %v861
  %v967 = vpack.c.b16 %v864, %v863
  %v968 = vpack.c.b16 %v866, %v865
  %v969 = vpack.c.b16 %v868, %v867
  %v970 = vpack.c.b16 %v870, %v869
  %v971 = vpack.c.b16 %v872, %v871
  %v972 = vpack.c.b16 %v874, %v873
  %v973 = vpack.c.b16 %v876, %v875
  %v974 = vpack.c.b16 %v878, %v877
  %v975 = vpack.c.b16 %v880, %v879
  %v976 = vpack.c.b16 %v882, %v881
  %v977 = vpack.c.b16 %v884, %v883
  %v978 = vpack.c.b16 %v886, %v885
  %v979 = vpack.c.b16 %v888, %v887
  %v980 = vpack.c.b16 %v890, %v889
  %v981 = vpack.c.b16 %v892, %v891
  %v982 = vpack.c.b16 %v894, %v893
  %v983 = vpack.c.b16 %v896, %v895
  %v984 = vpack.c.b16 %v898, %v897
  %v985 = vpack.c.b16 %v900, %v899
  %v986 = vpack.c.b16 %v902, %v901
  %v987 = vpack.c.b16 %v904, %v903
  %v988 = vpack.c.b16 %v906, %v905
  %v989 = vpack.c.b16 %v908, %v907
  %v990 = vpack.c.b16 %v910, %v909
  %v991 = vpack.c.b16 %v912, %v911
  %v992 = vpack.c.b16 %v914, %v913
  %v993 = vpack.c.b16 %v916, %v915
  %v994 = vpack.c.b16 %v918, %v917
  %v995 = vpack.c.b16 %v920, %v919
  %v996 = vpack.c.b16 %v922, %v921
  %v997 = vpack.c.b16 %v924, %v923
  %v998 = vpack.c.b16 %v926, %v925
  %1071 = vmatpush.bf16.msra.mxu0 %v934
  %1072 = vmatpush.bf16.msra.mxu0 %v933
  %1073 = vmatpush.bf16.msra.mxu0 %v932
  %1074 = vmatpush.bf16.msra.mxu0 %v931
  %1075 = vmatpush.bf16.msra.mxu0 %v930
  %1076 = vmatpush.bf16.msra.mxu0 %v929
  %1077 = vmatpush.bf16.msra.mxu0 %v928
  %1078 = vmatpush.bf16.msra.mxu0 %v927
  %1079 = vmatmul.bf16.gmra.mxu0 %v495
  %v1080 = vpop.f32.mrf.mxu0
  %v1081 = vadd.f32 0.0, %v1080
  %v1082 = vpop.f32.mrf.mxu0
  %v1083 = vadd.f32 0.0, %v1082
  %1084 = vmatmul.bf16.gmra.mxu0 %v504
  %v1085 = vpop.f32.mrf.mxu0
  %v1086 = vadd.f32 0.0, %v1085
  %v1087 = vpop.f32.mrf.mxu0
  %v1088 = vadd.f32 0.0, %v1087
  %1089 = vmatmul.bf16.gmra.mxu0 %v513
  %v1090 = vpop.f32.mrf.mxu0
  %v1091 = vadd.f32 0.0, %v1090
  %v1092 = vpop.f32.mrf.mxu0
  %v1093 = vadd.f32 0.0, %v1092
  %1094 = vmatmul.bf16.gmra.mxu0 %v522
  %v1095 = vpop.f32.mrf.mxu0
  %v1096 = vadd.f32 0.0, %v1095
  %v1097 = vpop.f32.mrf.mxu0
  %v1098 = vadd.f32 0.0, %v1097
  %1099 = vmatmul.bf16.gmra.mxu0 %v531
  %v1100 = vpop.f32.mrf.mxu0
  %v1101 = vadd.f32 0.0, %v1100
  %v1102 = vpop.f32.mrf.mxu0
  %v1103 = vadd.f32 0.0, %v1102
  %1104 = vmatmul.bf16.gmra.mxu0 %v540
  %v1105 = vpop.f32.mrf.mxu0
  %v1106 = vadd.f32 0.0, %v1105
  %v1107 = vpop.f32.mrf.mxu0
  %v1108 = vadd.f32 0.0, %v1107
  %1109 = vmatmul.bf16.gmra.mxu0 %v549
  %v1110 = vpop.f32.mrf.mxu0
  %v1111 = vadd.f32 0.0, %v1110
  %v1112 = vpop.f32.mrf.mxu0
  %v1113 = vadd.f32 0.0, %v1112
  %1114 = vmatmul.bf16.gmra.mxu0 %v558
  %v1115 = vpop.f32.mrf.mxu0
  %v1116 = vadd.f32 0.0, %v1115
  %v1117 = vpop.f32.mrf.mxu0
  %v1118 = vadd.f32 0.0, %v1117
  %1119 = vdwg.mxu0
  %1120 = vmatpush.bf16.msra.mxu0 %v942
  %1121 = vmatpush.bf16.msra.mxu0 %v941
  %1122 = vmatpush.bf16.msra.mxu0 %v940
  %1123 = vmatpush.bf16.msra.mxu0 %v939
  %1124 = vmatpush.bf16.msra.mxu0 %v938
  %1125 = vmatpush.bf16.msra.mxu0 %v937
  %1126 = vmatpush.bf16.msra.mxu0 %v936
  %1127 = vmatpush.bf16.msra.mxu0 %v935
  %1128 = vmatmul.bf16.gmra.mxu0 %v496
  %v1129 = vpop.f32.mrf.mxu0
  %v1130 = vadd.f32 %v1081, %v1129
  %v1131 = vpop.f32.mrf.mxu0
  %v1132 = vadd.f32 %v1083, %v1131
  %1133 = vmatmul.bf16.gmra.mxu0 %v505
  %v1134 = vpop.f32.mrf.mxu0
  %v1135 = vadd.f32 %v1086, %v1134
  %v1136 = vpop.f32.mrf.mxu0
  %v1137 = vadd.f32 %v1088, %v1136
  %1138 = vmatmul.bf16.gmra.mxu0 %v514
  %v1139 = vpop.f32.mrf.mxu0
  %v1140 = vadd.f32 %v1091, %v1139
  %v1141 = vpop.f32.mrf.mxu0
  %v1142 = vadd.f32 %v1093, %v1141
  %1143 = vmatmul.bf16.gmra.mxu0 %v523
  %v1144 = vpop.f32.mrf.mxu0
  %v1145 = vadd.f32 %v1096, %v1144
  %v1146 = vpop.f32.mrf.mxu0
  %v1147 = vadd.f32 %v1098, %v1146
  %1148 = vmatmul.bf16.gmra.mxu0 %v532
  %v1149 = vpop.f32.mrf.mxu0
  %v1150 = vadd.f32 %v1101, %v1149
  %v1151 = vpop.f32.mrf.mxu0
  %v1152 = vadd.f32 %v1103, %v1151
  %1153 = vmatmul.bf16.gmra.mxu0 %v541
  %v1154 = vpop.f32.mrf.mxu0
  %v1155 = vadd.f32 %v1106, %v1154
  %v1156 = vpop.f32.mrf.mxu0
  %v1157 = vadd.f32 %v1108, %v1156
  %1158 = vmatmul.bf16.gmra.mxu0 %v550
  %v1159 = vpop.f32.mrf.mxu0
  %v1160 = vadd.f32 %v1111, %v1159
  %v1161 = vpop.f32.mrf.mxu0
  %v1162 = vadd.f32 %v1113, %v1161
  %1163 = vmatmul.bf16.gmra.mxu0 %v559
  %v1164 = vpop.f32.mrf.mxu0
  %v1165 = vadd.f32 %v1116, %v1164
  %v1166 = vpop.f32.mrf.mxu0
  %v1167 = vadd.f32 %v1118, %v1166
  %1168 = vdwg.mxu0
  %1169 = vmatpush.bf16.msra.mxu0 %v950
  %1170 = vmatpush.bf16.msra.mxu0 %v949
  %1171 = vmatpush.bf16.msra.mxu0 %v948
  %1172 = vmatpush.bf16.msra.mxu0 %v947
  %1173 = vmatpush.bf16.msra.mxu0 %v946
  %1174 = vmatpush.bf16.msra.mxu0 %v945
  %1175 = vmatpush.bf16.msra.mxu0 %v944
  %1176 = vmatpush.bf16.msra.mxu0 %v943
  %1177 = vmatmul.bf16.gmra.mxu0 %v497
  %v1178 = vpop.f32.mrf.mxu0
  %v1179 = vadd.f32 %v1130, %v1178
  %v1180 = vpop.f32.mrf.mxu0
  %v1181 = vadd.f32 %v1132, %v1180
  %1182 = vmatmul.bf16.gmra.mxu0 %v506
  %v1183 = vpop.f32.mrf.mxu0
  %v1184 = vadd.f32 %v1135, %v1183
  %v1185 = vpop.f32.mrf.mxu0
  %v1186 = vadd.f32 %v1137, %v1185
  %1187 = vmatmul.bf16.gmra.mxu0 %v515
  %v1188 = vpop.f32.mrf.mxu0
  %v1189 = vadd.f32 %v1140, %v1188
  %v1190 = vpop.f32.mrf.mxu0
  %v1191 = vadd.f32 %v1142, %v1190
  %1192 = vmatmul.bf16.gmra.mxu0 %v524
  %v1193 = vpop.f32.mrf.mxu0
  %v1194 = vadd.f32 %v1145, %v1193
  %v1195 = vpop.f32.mrf.mxu0
  %v1196 = vadd.f32 %v1147, %v1195
  %1197 = vmatmul.bf16.gmra.mxu0 %v533
  %v1198 = vpop.f32.mrf.mxu0
  %v1199 = vadd.f32 %v1150, %v1198
  %v1200 = vpop.f32.mrf.mxu0
  %v1201 = vadd.f32 %v1152, %v1200
  %1202 = vmatmul.bf16.gmra.mxu0 %v542
  %v1203 = vpop.f32.mrf.mxu0
  %v1204 = vadd.f32 %v1155, %v1203
  %v1205 = vpop.f32.mrf.mxu0
  %v1206 = vadd.f32 %v1157, %v1205
  %1207 = vmatmul.bf16.gmra.mxu0 %v551
  %v1208 = vpop.f32.mrf.mxu0
  %v1209 = vadd.f32 %v1160, %v1208
  %v1210 = vpop.f32.mrf.mxu0
  %v1211 = vadd.f32 %v1162, %v1210
  %1212 = vmatmul.bf16.gmra.mxu0 %v560
  %v1213 = vpop.f32.mrf.mxu0
  %v1214 = vadd.f32 %v1165, %v1213
  %v1215 = vpop.f32.mrf.mxu0
  %v1216 = vadd.f32 %v1167, %v1215
  %1217 = vdwg.mxu0
  %1218 = vmatpush.bf16.msra.mxu0 %v958
  %1219 = vmatpush.bf16.msra.mxu0 %v957
  %1220 = vmatpush.bf16.msra.mxu0 %v956
  %1221 = vmatpush.bf16.msra.mxu0 %v955
  %1222 = vmatpush.bf16.msra.mxu0 %v954
  %1223 = vmatpush.bf16.msra.mxu0 %v953
  %1224 = vmatpush.bf16.msra.mxu0 %v952
  %1225 = vmatpush.bf16.msra.mxu0 %v951
  %1226 = vmatmul.bf16.gmra.mxu0 %v498
  %v1227 = vpop.f32.mrf.mxu0
  %v1228 = vadd.f32 %v1179, %v1227
  %v1229 = vpop.f32.mrf.mxu0
  %v1230 = vadd.f32 %v1181, %v1229
  %1231 = vmatmul.bf16.gmra.mxu0 %v507
  %v1232 = vpop.f32.mrf.mxu0
  %v1233 = vadd.f32 %v1184, %v1232
  %v1234 = vpop.f32.mrf.mxu0
  %v1235 = vadd.f32 %v1186, %v1234
  %1236 = vmatmul.bf16.gmra.mxu0 %v516
  %v1237 = vpop.f32.mrf.mxu0
  %v1238 = vadd.f32 %v1189, %v1237
  %v1239 = vpop.f32.mrf.mxu0
  %v1240 = vadd.f32 %v1191, %v1239
  %1241 = vmatmul.bf16.gmra.mxu0 %v525
  %v1242 = vpop.f32.mrf.mxu0
  %v1243 = vadd.f32 %v1194, %v1242
  %v1244 = vpop.f32.mrf.mxu0
  %v1245 = vadd.f32 %v1196, %v1244
  %1246 = vmatmul.bf16.gmra.mxu0 %v534
  %v1247 = vpop.f32.mrf.mxu0
  %v1248 = vadd.f32 %v1199, %v1247
  %v1249 = vpop.f32.mrf.mxu0
  %v1250 = vadd.f32 %v1201, %v1249
  %1251 = vmatmul.bf16.gmra.mxu0 %v543
  %v1252 = vpop.f32.mrf.mxu0
  %v1253 = vadd.f32 %v1204, %v1252
  %v1254 = vpop.f32.mrf.mxu0
  %v1255 = vadd.f32 %v1206, %v1254
  %1256 = vmatmul.bf16.gmra.mxu0 %v552
  %v1257 = vpop.f32.mrf.mxu0
  %v1258 = vadd.f32 %v1209, %v1257
  %v1259 = vpop.f32.mrf.mxu0
  %v1260 = vadd.f32 %v1211, %v1259
  %1261 = vmatmul.bf16.gmra.mxu0 %v561
  %v1262 = vpop.f32.mrf.mxu0
  %v1263 = vadd.f32 %v1214, %v1262
  %v1264 = vpop.f32.mrf.mxu0
  %v1265 = vadd.f32 %v1216, %v1264
  %1266 = vdwg.mxu0
  %1267 = vmatpush.bf16.msra.mxu0 %v966
  %1268 = vmatpush.bf16.msra.mxu0 %v965
  %1269 = vmatpush.bf16.msra.mxu0 %v964
  %1270 = vmatpush.bf16.msra.mxu0 %v963
  %1271 = vmatpush.bf16.msra.mxu0 %v962
  %1272 = vmatpush.bf16.msra.mxu0 %v961
  %1273 = vmatpush.bf16.msra.mxu0 %v960
  %1274 = vmatpush.bf16.msra.mxu0 %v959
  %1275 = vmatmul.bf16.gmra.mxu0 %v499
  %v1276 = vpop.f32.mrf.mxu0
  %v1277 = vadd.f32 %v1228, %v1276
  %v1278 = vpop.f32.mrf.mxu0
  %v1279 = vadd.f32 %v1230, %v1278
  %1280 = vmatmul.bf16.gmra.mxu0 %v508
  %v1281 = vpop.f32.mrf.mxu0
  %v1282 = vadd.f32 %v1233, %v1281
  %v1283 = vpop.f32.mrf.mxu0
  %v1284 = vadd.f32 %v1235, %v1283
  %1285 = vmatmul.bf16.gmra.mxu0 %v517
  %v1286 = vpop.f32.mrf.mxu0
  %v1287 = vadd.f32 %v1238, %v1286
  %v1288 = vpop.f32.mrf.mxu0
  %v1289 = vadd.f32 %v1240, %v1288
  %1290 = vmatmul.bf16.gmra.mxu0 %v526
  %v1291 = vpop.f32.mrf.mxu0
  %v1292 = vadd.f32 %v1243, %v1291
  %v1293 = vpop.f32.mrf.mxu0
  %v1294 = vadd.f32 %v1245, %v1293
  %1295 = vmatmul.bf16.gmra.mxu0 %v535
  %v1296 = vpop.f32.mrf.mxu0
  %v1297 = vadd.f32 %v1248, %v1296
  %v1298 = vpop.f32.mrf.mxu0
  %v1299 = vadd.f32 %v1250, %v1298
  %1300 = vmatmul.bf16.gmra.mxu0 %v544
  %v1301 = vpop.f32.mrf.mxu0
  %v1302 = vadd.f32 %v1253, %v1301
  %v1303 = vpop.f32.mrf.mxu0
  %v1304 = vadd.f32 %v1255, %v1303
  %1305 = vmatmul.bf16.gmra.mxu0 %v553
  %v1306 = vpop.f32.mrf.mxu0
  %v1307 = vadd.f32 %v1258, %v1306
  %v1308 = vpop.f32.mrf.mxu0
  %v1309 = vadd.f32 %v1260, %v1308
  %1310 = vmatmul.bf16.gmra.mxu0 %v562
  %v1311 = vpop.f32.mrf.mxu0
  %v1312 = vadd.f32 %v1263, %v1311
  %v1313 = vpop.f32.mrf.mxu0
  %v1314 = vadd.f32 %v1265, %v1313
  %1315 = vdwg.mxu0
  %1316 = vmatpush.bf16.msra.mxu0 %v974
  %1317 = vmatpush.bf16.msra.mxu0 %v973
  %1318 = vmatpush.bf16.msra.mxu0 %v972
  %1319 = vmatpush.bf16.msra.mxu0 %v971
  %1320 = vmatpush.bf16.msra.mxu0 %v970
  %1321 = vmatpush.bf16.msra.mxu0 %v969
  %1322 = vmatpush.bf16.msra.mxu0 %v968
  %1323 = vmatpush.bf16.msra.mxu0 %v967
  %1324 = vmatmul.bf16.gmra.mxu0 %v500
  %v1325 = vpop.f32.mrf.mxu0
  %v1326 = vadd.f32 %v1277, %v1325
  %v1327 = vpop.f32.mrf.mxu0
  %v1328 = vadd.f32 %v1279, %v1327
  %1329 = vmatmul.bf16.gmra.mxu0 %v509
  %v1330 = vpop.f32.mrf.mxu0
  %v1331 = vadd.f32 %v1282, %v1330
  %v1332 = vpop.f32.mrf.mxu0
  %v1333 = vadd.f32 %v1284, %v1332
  %1334 = vmatmul.bf16.gmra.mxu0 %v518
  %v1335 = vpop.f32.mrf.mxu0
  %v1336 = vadd.f32 %v1287, %v1335
  %v1337 = vpop.f32.mrf.mxu0
  %v1338 = vadd.f32 %v1289, %v1337
  %1339 = vmatmul.bf16.gmra.mxu0 %v527
  %v1340 = vpop.f32.mrf.mxu0
  %v1341 = vadd.f32 %v1292, %v1340
  %v1342 = vpop.f32.mrf.mxu0
  %v1343 = vadd.f32 %v1294, %v1342
  %1344 = vmatmul.bf16.gmra.mxu0 %v536
  %v1345 = vpop.f32.mrf.mxu0
  %v1346 = vadd.f32 %v1297, %v1345
  %v1347 = vpop.f32.mrf.mxu0
  %v1348 = vadd.f32 %v1299, %v1347
  %1349 = vmatmul.bf16.gmra.mxu0 %v545
  %v1350 = vpop.f32.mrf.mxu0
  %v1351 = vadd.f32 %v1302, %v1350
  %v1352 = vpop.f32.mrf.mxu0
  %v1353 = vadd.f32 %v1304, %v1352
  %1354 = vmatmul.bf16.gmra.mxu0 %v554
  %v1355 = vpop.f32.mrf.mxu0
  %v1356 = vadd.f32 %v1307, %v1355
  %v1357 = vpop.f32.mrf.mxu0
  %v1358 = vadd.f32 %v1309, %v1357
  %1359 = vmatmul.bf16.gmra.mxu0 %v563
  %v1360 = vpop.f32.mrf.mxu0
  %v1361 = vadd.f32 %v1312, %v1360
  %v1362 = vpop.f32.mrf.mxu0
  %v1363 = vadd.f32 %v1314, %v1362
  %1364 = vdwg.mxu0
  %1365 = vmatpush.bf16.msra.mxu0 %v982
  %1366 = vmatpush.bf16.msra.mxu0 %v981
  %1367 = vmatpush.bf16.msra.mxu0 %v980
  %1368 = vmatpush.bf16.msra.mxu0 %v979
  %1369 = vmatpush.bf16.msra.mxu0 %v978
  %1370 = vmatpush.bf16.msra.mxu0 %v977
  %1371 = vmatpush.bf16.msra.mxu0 %v976
  %1372 = vmatpush.bf16.msra.mxu0 %v975
  %1373 = vmatmul.bf16.gmra.mxu0 %v501
  %v1374 = vpop.f32.mrf.mxu0
  %v1375 = vadd.f32 %v1326, %v1374
  %v1376 = vpop.f32.mrf.mxu0
  %v1377 = vadd.f32 %v1328, %v1376
  %1378 = vmatmul.bf16.gmra.mxu0 %v510
  %v1379 = vpop.f32.mrf.mxu0
  %v1380 = vadd.f32 %v1331, %v1379
  %v1381 = vpop.f32.mrf.mxu0
  %v1382 = vadd.f32 %v1333, %v1381
  %1383 = vmatmul.bf16.gmra.mxu0 %v519
  %v1384 = vpop.f32.mrf.mxu0
  %v1385 = vadd.f32 %v1336, %v1384
  %v1386 = vpop.f32.mrf.mxu0
  %v1387 = vadd.f32 %v1338, %v1386
  %1388 = vmatmul.bf16.gmra.mxu0 %v528
  %v1389 = vpop.f32.mrf.mxu0
  %v1390 = vadd.f32 %v1341, %v1389
  %v1391 = vpop.f32.mrf.mxu0
  %v1392 = vadd.f32 %v1343, %v1391
  %1393 = vmatmul.bf16.gmra.mxu0 %v537
  %v1394 = vpop.f32.mrf.mxu0
  %v1395 = vadd.f32 %v1346, %v1394
  %v1396 = vpop.f32.mrf.mxu0
  %v1397 = vadd.f32 %v1348, %v1396
  %1398 = vmatmul.bf16.gmra.mxu0 %v546
  %v1399 = vpop.f32.mrf.mxu0
  %v1400 = vadd.f32 %v1351, %v1399
  %v1401 = vpop.f32.mrf.mxu0
  %v1402 = vadd.f32 %v1353, %v1401
  %1403 = vmatmul.bf16.gmra.mxu0 %v555
  %v1404 = vpop.f32.mrf.mxu0
  %v1405 = vadd.f32 %v1356, %v1404
  %v1406 = vpop.f32.mrf.mxu0
  %v1407 = vadd.f32 %v1358, %v1406
  %1408 = vmatmul.bf16.gmra.mxu0 %v564
  %v1409 = vpop.f32.mrf.mxu0
  %v1410 = vadd.f32 %v1361, %v1409
  %v1411 = vpop.f32.mrf.mxu0
  %v1412 = vadd.f32 %v1363, %v1411
  %1413 = vdwg.mxu0
  %1414 = vmatpush.bf16.msra.mxu0 %v990
  %1415 = vmatpush.bf16.msra.mxu0 %v989
  %1416 = vmatpush.bf16.msra.mxu0 %v988
  %1417 = vmatpush.bf16.msra.mxu0 %v987
  %1418 = vmatpush.bf16.msra.mxu0 %v986
  %1419 = vmatpush.bf16.msra.mxu0 %v985
  %1420 = vmatpush.bf16.msra.mxu0 %v984
  %1421 = vmatpush.bf16.msra.mxu0 %v983
  %1422 = vmatmul.bf16.gmra.mxu0 %v502
  %v1423 = vpop.f32.mrf.mxu0
  %v1424 = vadd.f32 %v1375, %v1423
  %v1425 = vpop.f32.mrf.mxu0
  %v1426 = vadd.f32 %v1377, %v1425
  %1427 = vmatmul.bf16.gmra.mxu0 %v511
  %v1428 = vpop.f32.mrf.mxu0
  %v1429 = vadd.f32 %v1380, %v1428
  %v1430 = vpop.f32.mrf.mxu0
  %v1431 = vadd.f32 %v1382, %v1430
  %1432 = vmatmul.bf16.gmra.mxu0 %v520
  %v1433 = vpop.f32.mrf.mxu0
  %v1434 = vadd.f32 %v1385, %v1433
  %v1435 = vpop.f32.mrf.mxu0
  %v1436 = vadd.f32 %v1387, %v1435
  %1437 = vmatmul.bf16.gmra.mxu0 %v529
  %v1438 = vpop.f32.mrf.mxu0
  %v1439 = vadd.f32 %v1390, %v1438
  %v1440 = vpop.f32.mrf.mxu0
  %v1441 = vadd.f32 %v1392, %v1440
  %1442 = vmatmul.bf16.gmra.mxu0 %v538
  %v1443 = vpop.f32.mrf.mxu0
  %v1444 = vadd.f32 %v1395, %v1443
  %v1445 = vpop.f32.mrf.mxu0
  %v1446 = vadd.f32 %v1397, %v1445
  %1447 = vmatmul.bf16.gmra.mxu0 %v547
  %v1448 = vpop.f32.mrf.mxu0
  %v1449 = vadd.f32 %v1400, %v1448
  %v1450 = vpop.f32.mrf.mxu0
  %v1451 = vadd.f32 %v1402, %v1450
  %1452 = vmatmul.bf16.gmra.mxu0 %v556
  %v1453 = vpop.f32.mrf.mxu0
  %v1454 = vadd.f32 %v1405, %v1453
  %v1455 = vpop.f32.mrf.mxu0
  %v1456 = vadd.f32 %v1407, %v1455
  %1457 = vmatmul.bf16.gmra.mxu0 %v565
  %v1458 = vpop.f32.mrf.mxu0
  %v1459 = vadd.f32 %v1410, %v1458
  %v1460 = vpop.f32.mrf.mxu0
  %v1461 = vadd.f32 %v1412, %v1460
  %1462 = vdwg.mxu0
  %1463 = vmatpush.bf16.msra.mxu0 %v998
  %1464 = vmatpush.bf16.msra.mxu0 %v997
  %1465 = vmatpush.bf16.msra.mxu0 %v996
  %1466 = vmatpush.bf16.msra.mxu0 %v995
  %1467 = vmatpush.bf16.msra.mxu0 %v994
  %1468 = vmatpush.bf16.msra.mxu0 %v993
  %1469 = vmatpush.bf16.msra.mxu0 %v992
  %1470 = vmatpush.bf16.msra.mxu0 %v991
  %1471 = vmatmul.bf16.gmra.mxu0 %v503
  %v1472 = vpop.f32.mrf.mxu0
  %v1473 = vadd.f32 %v1424, %v1472
  %v1474 = vpop.f32.mrf.mxu0
  %v1475 = vadd.f32 %v1426, %v1474
  %1476 = vmatmul.bf16.gmra.mxu0 %v512
  %v1477 = vpop.f32.mrf.mxu0
  %v1478 = vadd.f32 %v1429, %v1477
  %v1479 = vpop.f32.mrf.mxu0
  %v1480 = vadd.f32 %v1431, %v1479
  %1481 = vmatmul.bf16.gmra.mxu0 %v521
  %v1482 = vpop.f32.mrf.mxu0
  %v1483 = vadd.f32 %v1434, %v1482
  %v1484 = vpop.f32.mrf.mxu0
  %v1485 = vadd.f32 %v1436, %v1484
  %1486 = vmatmul.bf16.gmra.mxu0 %v530
  %v1487 = vpop.f32.mrf.mxu0
  %v1488 = vadd.f32 %v1439, %v1487
  %v1489 = vpop.f32.mrf.mxu0
  %v1490 = vadd.f32 %v1441, %v1489
  %1491 = vmatmul.bf16.gmra.mxu0 %v539
  %v1492 = vpop.f32.mrf.mxu0
  %v1493 = vadd.f32 %v1444, %v1492
  %v1494 = vpop.f32.mrf.mxu0
  %v1495 = vadd.f32 %v1446, %v1494
  %1496 = vmatmul.bf16.gmra.mxu0 %v548
  %v1497 = vpop.f32.mrf.mxu0
  %v1498 = vadd.f32 %v1449, %v1497
  %v1499 = vpop.f32.mrf.mxu0
  %v1500 = vadd.f32 %v1451, %v1499
  %1501 = vmatmul.bf16.gmra.mxu0 %v557
  %v1502 = vpop.f32.mrf.mxu0
  %v1503 = vadd.f32 %v1454, %v1502
  %v1504 = vpop.f32.mrf.mxu0
  %v1505 = vadd.f32 %v1456, %v1504
  %1506 = vmatmul.bf16.gmra.mxu0 %v566
  %v1507 = vpop.f32.mrf.mxu0
  %v1508 = vadd.f32 %v1459, %v1507
  %v1509 = vpop.f32.mrf.mxu0
  %v1510 = vadd.f32 %v1461, %v1509
  %1511 = vdwg.mxu0
  %v1512 = vadd.f32 %v31, %v1473
  %v1513 = vadd.f32 %v32, %v1475
  %v1514 = vadd.f32 %v33, %v1478
  %v1515 = vadd.f32 %v34, %v1480
  %v1516 = vadd.f32 %v35, %v1483
  %v1517 = vadd.f32 %v36, %v1485
  %v1518 = vadd.f32 %v37, %v1488
  %v1519 = vadd.f32 %v38, %v1490
  %v1520 = vadd.f32 %v39, %v1493
  %v1521 = vadd.f32 %v40, %v1495
  %v1522 = vadd.f32 %v41, %v1498
  %v1523 = vadd.f32 %v42, %v1500
  %v1524 = vadd.f32 %v43, %v1503
  %v1525 = vadd.f32 %v44, %v1505
  %v1526 = vadd.f32 %v45, %v1508
  %v1527 = vadd.f32 %v46, %v1510
  %1528 = vst [vmem:[#allocation2] sm:$0xff] %v1512
  %1529 = vst [vmem:[#allocation2 + $0x8] sm:$0xff] %v1513
  %1530 = vst [vmem:[#allocation2 + $0x10] sm:$0xff] %v1514
  %1531 = vst [vmem:[#allocation2 + $0x18] sm:$0xff] %v1515
  %1532 = vst [vmem:[#allocation2 + $0x20] sm:$0xff] %v1516
  %1533 = vst [vmem:[#allocation2 + $0x28] sm:$0xff] %v1517
  %1534 = vst [vmem:[#allocation2 + $0x30] sm:$0xff] %v1518
  %1535 = vst [vmem:[#allocation2 + $0x38] sm:$0xff] %v1519
  %1536 = vst [vmem:[#allocation2 + $0x40] sm:$0xff] %v1520
  %1537 = vst [vmem:[#allocation2 + $0x48] sm:$0xff] %v1521
  %1538 = vst [vmem:[#allocation2 + $0x50] sm:$0xff] %v1522
  %1539 = vst [vmem:[#allocation2 + $0x58] sm:$0xff] %v1523
  %1540 = vst [vmem:[#allocation2 + $0x60] sm:$0xff] %v1524
  %1541 = vst [vmem:[#allocation2 + $0x68] sm:$0xff] %v1525
  %1542 = vst [vmem:[#allocation2 + $0x70] sm:$0xff] %v1526
  %1543 = vst [vmem:[#allocation2 + $0x78] sm:$0xff] %v1527
  // Predicated region
  $region14: #{preact_bottleneck_forward.10} parent=0 // pred_check
    %p1544 = pneg %p11
  $region15: #{preact_bottleneck_forward.10} parent=0 // pred_check_branch
    %1546 = sbr.rel (%p1544) target = $region17
  $region16: #{preact_bottleneck_forward.10} parent=0 // pred_region
    %v1547 = vld [vmem:[#allocation2] sm:$0xff]
    %v1548 = vld [vmem:[#allocation2 + $0x8] sm:$0xff]
    %v1549 = vld [vmem:[#allocation2 + $0x10] sm:$0xff]
    %v1550 = vld [vmem:[#allocation2 + $0x18] sm:$0xff]
    %v1551 = vld [vmem:[#allocation2 + $0x20] sm:$0xff]
    %v1552 = vld [vmem:[#allocation2 + $0x28] sm:$0xff]
    %v1553 = vld [vmem:[#allocation2 + $0x30] sm:$0xff]
    %v1554 = vld [vmem:[#allocation2 + $0x38] sm:$0xff]
    %v1555 = vld [vmem:[#allocation2 + $0x40] sm:$0xff]
    %v1556 = vld [vmem:[#allocation2 + $0x48] sm:$0xff]
    %v1557 = vld [vmem:[#allocation2 + $0x50] sm:$0xff]
    %v1558 = vld [vmem:[#allocation2 + $0x58] sm:$0xff]
    %v1559 = vld [vmem:[#allocation2 + $0x60] sm:$0xff]
    %v1560 = vld [vmem:[#allocation2 + $0x68] sm:$0xff]
    %v1561 = vld [vmem:[#allocation2 + $0x70] sm:$0xff]
    %v1562 = vld [vmem:[#allocation2 + $0x78] sm:$0xff]
    %v1563 = vpack.c.bf16 %v1547, %v1547
    %v1564 = vpack.c.bf16 %v1548, %v1548
    %v1565 = vpack.c.bf16 %v1549, %v1549
    %v1566 = vpack.c.bf16 %v1550, %v1550
    %v1567 = vpack.c.bf16 %v1551, %v1551
    %v1568 = vpack.c.bf16 %v1552, %v1552
    %v1569 = vpack.c.bf16 %v1553, %v1553
    %v1570 = vpack.c.bf16 %v1554, %v1554
    %v1571 = vpack.c.bf16 %v1555, %v1555
    %v1572 = vpack.c.bf16 %v1556, %v1556
    %v1573 = vpack.c.bf16 %v1557, %v1557
    %v1574 = vpack.c.bf16 %v1558, %v1558
    %v1575 = vpack.c.bf16 %v1559, %v1559
    %v1576 = vpack.c.bf16 %v1560, %v1560
    %v1577 = vpack.c.bf16 %v1561, %v1561
    %v1578 = vpack.c.bf16 %v1562, %v1562
    %1579 = vst [vmem:[%s2] sm:$0xf] %v1563
    %1580 = vst [vmem:[%s2 + $0x4] sm:$0xf] %v1564
    %1581 = vst [vmem:[%s2 + $0x8] sm:$0xf] %v1565
    %1582 = vst [vmem:[%s2 + $0xc] sm:$0xf] %v1566
    %1583 = vst [vmem:[%s2 + $0x10] sm:$0xf] %v1567
    %1584 = vst [vmem:[%s2 + $0x14] sm:$0xf] %v1568
    %1585 = vst [vmem:[%s2 + $0x18] sm:$0xf] %v1569
    %1586 = vst [vmem:[%s2 + $0x1c] sm:$0xf] %v1570
    %1587 = vst [vmem:[%s2 + $0x20] sm:$0xf] %v1571
    %1588 = vst [vmem:[%s2 + $0x24] sm:$0xf] %v1572
    %1589 = vst [vmem:[%s2 + $0x28] sm:$0xf] %v1573
    %1590 = vst [vmem:[%s2 + $0x2c] sm:$0xf] %v1574
    %1591 = vst [vmem:[%s2 + $0x30] sm:$0xf] %v1575
    %1592 = vst [vmem:[%s2 + $0x34] sm:$0xf] %v1576
    %1593 = vst [vmem:[%s2 + $0x38] sm:$0xf] %v1577
    %1594 = vst [vmem:[%s2 + $0x3c] sm:$0xf] %v1578
  $region17: #{preact_bottleneck_forward.10} parent=0 // pred_fallthru
    _
  // Predicated region
  $region18: #{preact_bottleneck_forward.10} parent=0 // pred_check
    _
  $region19: #{preact_bottleneck_forward.10} parent=0 // pred_check_branch
    %1596 = sbr.rel (0) target = $region21
  $region20: #{preact_bottleneck_forward.10} parent=0 // pred_region
    _
  $region21: #{preact_bottleneck_forward.10} parent=0 // pred_fallthru
    _
  // Predicated region
  $region22: #{preact_bottleneck_forward.10} parent=0 // pred_check
    _
  $region23: #{preact_bottleneck_forward.10} parent=0 // pred_check_branch
    %1598 = sbr.rel (0) target = $region25
  $region24: #{preact_bottleneck_forward.10} parent=0 // pred_region
    _
  $region25: #{preact_bottleneck_forward.10} parent=0 // pred_fallthru
    _

// kernel: preact_bottleneck_forward.13
$region0: #{preact_bottleneck_forward.13}
  #allocation0 [shape = 'u32[]', space=smem, size = 0x4, offset = 0x4, fixed_abs, tag = 'smem constant byte address 0x4 - core index']
  #allocation1 [shape = 'u32[72,128]{1,0:T(1,128)}', space=vmem, size = 0x9000, scoped, tag = 'internal scratch']
  #allocation2 [shape = 'f32[128,128]{1,0:T(8,128)}', space=vmem, size = 0x10000, scoped, tag = 'scratch operand']
  %s0 = inlined_call_operand.vmem [shape: bf16[128,64], index: 0, kind: input, shape index: {}]
  %s1 = inlined_call_operand.vmem [shape: bf16[64,128], index: 1, kind: input, shape index: {}]
  %s2 = inlined_call_operand.vmem [shape: bf16[128,128], index: 2, kind: output, shape index: {}]
  %s3 = sld [smem:[#allocation0]]
  $region26: #{preact_bottleneck_forward.13} parent=0
    _
  %s5 = ssub.s32 1, %s3
  %s6 = scalar_select 0, %s5, %s3
  // Predicated region
  $region2: #{preact_bottleneck_forward.13} parent=0 // pred_check
    _
  $region3: #{preact_bottleneck_forward.13} parent=0 // pred_check_branch
    %8 = sbr.rel (0) target = $region5
  $region4: #{preact_bottleneck_forward.13} parent=0 // pred_region
    _
  $region5: #{preact_bottleneck_forward.13} parent=0 // pred_fallthru
    _
  // Predicated region
  $region6: #{preact_bottleneck_forward.13} parent=0 // pred_check
    _
  $region7: #{preact_bottleneck_forward.13} parent=0 // pred_check_branch
    %10 = sbr.rel (0) target = $region9
  $region8: #{preact_bottleneck_forward.13} parent=0 // pred_region
    _
  $region9: #{preact_bottleneck_forward.13} parent=0 // pred_fallthru
    _
  %p12 = scmp.eq.s32.totalorder 0, 0
  // Predicated region
  $region10: #{preact_bottleneck_forward.13} parent=0 // pred_check
    %p13 = pneg %p12
  $region11: #{preact_bottleneck_forward.13} parent=0 // pred_check_branch
    %15 = sbr.rel (%p13) target = $region13
  $region12: #{preact_bottleneck_forward.13} parent=0 // pred_region
    %16 = vst [vmem:[#allocation2] sm:$0xff] 0.0
    %17 = vst [vmem:[#allocation2 + $0x8] sm:$0xff] 0.0
    %18 = vst [vmem:[#allocation2 + $0x10] sm:$0xff] 0.0
    %19 = vst [vmem:[#allocation2 + $0x18] sm:$0xff] 0.0
    %20 = vst [vmem:[#allocation2 + $0x20] sm:$0xff] 0.0
    %21 = vst [vmem:[#allocation2 + $0x28] sm:$0xff] 0.0
    %22 = vst [vmem:[#allocation2 + $0x30] sm:$0xff] 0.0
    %23 = vst [vmem:[#allocation2 + $0x38] sm:$0xff] 0.0
    %24 = vst [vmem:[#allocation2 + $0x40] sm:$0xff] 0.0
    %25 = vst [vmem:[#allocation2 + $0x48] sm:$0xff] 0.0
    %26 = vst [vmem:[#allocation2 + $0x50] sm:$0xff] 0.0
    %27 = vst [vmem:[#allocation2 + $0x58] sm:$0xff] 0.0
    %28 = vst [vmem:[#allocation2 + $0x60] sm:$0xff] 0.0
    %29 = vst [vmem:[#allocation2 + $0x68] sm:$0xff] 0.0
    %30 = vst [vmem:[#allocation2 + $0x70] sm:$0xff] 0.0
    %31 = vst [vmem:[#allocation2 + $0x78] sm:$0xff] 0.0
  $region13: #{preact_bottleneck_forward.13} parent=0 // pred_fallthru
    _
  %v32 = vld [vmem:[#allocation2] sm:$0xff]
  %v33 = vld [vmem:[#allocation2 + $0x8] sm:$0xff]
  %v34 = vld [vmem:[#allocation2 + $0x10] sm:$0xff]
  %v35 = vld [vmem:[#allocation2 + $0x18] sm:$0xff]
  %v36 = vld [vmem:[#allocation2 + $0x20] sm:$0xff]
  %v37 = vld [vmem:[#allocation2 + $0x28] sm:$0xff]
  %v38 = vld [vmem:[#allocation2 + $0x30] sm:$0xff]
  %v39 = vld [vmem:[#allocation2 + $0x38] sm:$0xff]
  %v40 = vld [vmem:[#allocation2 + $0x40] sm:$0xff]
  %v41 = vld [vmem:[#allocation2 + $0x48] sm:$0xff]
  %v42 = vld [vmem:[#allocation2 + $0x50] sm:$0xff]
  %v43 = vld [vmem:[#allocation2 + $0x58] sm:$0xff]
  %v44 = vld [vmem:[#allocation2 + $0x60] sm:$0xff]
  %v45 = vld [vmem:[#allocation2 + $0x68] sm:$0xff]
  %v46 = vld [vmem:[#allocation2 + $0x70] sm:$0xff]
  %v47 = vld [vmem:[#allocation2 + $0x78] sm:$0xff]
  %v48 = vld [vmem:[%s0] sm:$0xf]
  %v49 = vld [vmem:[%s0 + $0x4] sm:$0xf]
  %v50 = vld [vmem:[%s0 + $0x8] sm:$0xf]
  %v51 = vld [vmem:[%s0 + $0xc] sm:$0xf]
  %v52 = vld [vmem:[%s0 + $0x10] sm:$0xf]
  %v53 = vld [vmem:[%s0 + $0x14] sm:$0xf]
  %v54 = vld [vmem:[%s0 + $0x18] sm:$0xf]
  %v55 = vld [vmem:[%s0 + $0x1c] sm:$0xf]
  %v56 = vld [vmem:[%s0 + $0x20] sm:$0xf]
  %v57 = vld [vmem:[%s0 + $0x24] sm:$0xf]
  %v58 = vld [vmem:[%s0 + $0x28] sm:$0xf]
  %v59 = vld [vmem:[%s0 + $0x2c] sm:$0xf]
  %v60 = vld [vmem:[%s0 + $0x30] sm:$0xf]
  %v61 = vld [vmem:[%s0 + $0x34] sm:$0xf]
  %v62 = vld [vmem:[%s0 + $0x38] sm:$0xf]
  %v63 = vld [vmem:[%s0 + $0x3c] sm:$0xf]
  %v64 = vld [vmem:[%s1] sm:$0xf]
  %v65 = vld [vmem:[%s1 + $0x4] sm:$0xf]
  %v66 = vld [vmem:[%s1 + $0x8] sm:$0xf]
  %v67 = vld [vmem:[%s1 + $0xc] sm:$0xf]
  %v68 = vld [vmem:[%s1 + $0x10] sm:$0xf]
  %v69 = vld [vmem:[%s1 + $0x14] sm:$0xf]
  %v70 = vld [vmem:[%s1 + $0x18] sm:$0xf]
  %v71 = vld [vmem:[%s1 + $0x1c] sm:$0xf]
  %v88 = vunpack.c.l.b16 %v48
  %v89 = vunpack.c.l.b16 %v49
  %v90 = vunpack.c.l.b16 %v50
  %v91 = vunpack.c.l.b16 %v51
  %v92 = vunpack.c.l.b16 %v52
  %v93 = vunpack.c.l.b16 %v53
  %v94 = vunpack.c.l.b16 %v54
  %v95 = vunpack.c.l.b16 %v55
  %v96 = vunpack.c.l.b16 %v56
  %v97 = vunpack.c.l.b16 %v57
  %v98 = vunpack.c.l.b16 %v58
  %v99 = vunpack.c.l.b16 %v59
  %v100 = vunpack.c.l.b16 %v60
  %v101 = vunpack.c.l.b16 %v61
  %v102 = vunpack.c.l.b16 %v62
  %v103 = vunpack.c.l.b16 %v63
  %v104 = vpack.c.b16 %v89, %v88
  %v105 = vpack.c.b16 %v91, %v90
  %v106 = vpack.c.b16 %v93, %v92
  %v107 = vpack.c.b16 %v95, %v94
  %v108 = vpack.c.b16 %v97, %v96
  %v109 = vpack.c.b16 %v99, %v98
  %v110 = vpack.c.b16 %v101, %v100
  %v111 = vpack.c.b16 %v103, %v102
  %v120 = vunpack.c.l.b16 %v64
  %v121 = vunpack.c.l.b16 %v65
  %v122 = vunpack.c.l.b16 %v66
  %v123 = vunpack.c.l.b16 %v67
  %v124 = vunpack.c.l.b16 %v68
  %v125 = vunpack.c.l.b16 %v69
  %v126 = vunpack.c.l.b16 %v70
  %v127 = vunpack.c.l.b16 %v71
  %v128 = vpack.c.b16 %v121, %v120
  %v129 = vpack.c.b16 %v123, %v122
  %v130 = vpack.c.b16 %v125, %v124
  %v131 = vpack.c.b16 %v127, %v126
  %vm136 = vcmask 523264
  %v138 = vsel %vm136, %v104, 0
  %v141 = vsel %vm136, %v105, 0
  %v144 = vsel %vm136, %v106, 0
  %v147 = vsel %vm136, %v107, 0
  %v150 = vsel %vm136, %v108, 0
  %v153 = vsel %vm136, %v109, 0
  %v156 = vsel %vm136, %v110, 0
  %v159 = vsel %vm136, %v111, 0
  %161 = vmatpush.bf16.msra.mxu0 0
  %162 = vmatpush.bf16.msra.mxu0 0
  %163 = vmatpush.bf16.msra.mxu0 0
  %164 = vmatpush.bf16.msra.mxu0 0
  %165 = vmatpush.bf16.msra.mxu0 %v131
  %166 = vmatpush.bf16.msra.mxu0 %v130
  %167 = vmatpush.bf16.msra.mxu0 %v129
  %168 = vmatpush.bf16.msra.mxu0 %v128
  %169 = vmatmul.bf16.gmra.mxu0 %v138
  %v170 = vpop.f32.mrf.mxu0
  %v171 = vadd.f32 0.0, %v170
  %v172 = vpop.f32.mrf.mxu0
  %v173 = vadd.f32 0.0, %v172
  %174 = vmatmul.bf16.gmra.mxu0 %v141
  %v175 = vpop.f32.mrf.mxu0
  %v176 = vadd.f32 0.0, %v175
  %v177 = vpop.f32.mrf.mxu0
  %v178 = vadd.f32 0.0, %v177
  %179 = vmatmul.bf16.gmra.mxu0 %v144
  %v180 = vpop.f32.mrf.mxu0
  %v181 = vadd.f32 0.0, %v180
  %v182 = vpop.f32.mrf.mxu0
  %v183 = vadd.f32 0.0, %v182
  %184 = vmatmul.bf16.gmra.mxu0 %v147
  %v185 = vpop.f32.mrf.mxu0
  %v186 = vadd.f32 0.0, %v185
  %v187 = vpop.f32.mrf.mxu0
  %v188 = vadd.f32 0.0, %v187
  %189 = vmatmul.bf16.gmra.mxu0 %v150
  %v190 = vpop.f32.mrf.mxu0
  %v191 = vadd.f32 0.0, %v190
  %v192 = vpop.f32.mrf.mxu0
  %v193 = vadd.f32 0.0, %v192
  %194 = vmatmul.bf16.gmra.mxu0 %v153
  %v195 = vpop.f32.mrf.mxu0
  %v196 = vadd.f32 0.0, %v195
  %v197 = vpop.f32.mrf.mxu0
  %v198 = vadd.f32 0.0, %v197
  %199 = vmatmul.bf16.gmra.mxu0 %v156
  %v200 = vpop.f32.mrf.mxu0
  %v201 = vadd.f32 0.0, %v200
  %v202 = vpop.f32.mrf.mxu0
  %v203 = vadd.f32 0.0, %v202
  %204 = vmatmul.bf16.gmra.mxu0 %v159
  %v205 = vpop.f32.mrf.mxu0
  %v206 = vadd.f32 0.0, %v205
  %v207 = vpop.f32.mrf.mxu0
  %v208 = vadd.f32 0.0, %v207
  %209 = vdwg.mxu0
  %v210 = vadd.f32 %v32, %v171
  %v211 = vadd.f32 %v33, %v173
  %v212 = vadd.f32 %v34, %v176
  %v213 = vadd.f32 %v35, %v178
  %v214 = vadd.f32 %v36, %v181
  %v215 = vadd.f32 %v37, %v183
  %v216 = vadd.f32 %v38, %v186
  %v217 = vadd.f32 %v39, %v188
  %v218 = vadd.f32 %v40, %v191
  %v219 = vadd.f32 %v41, %v193
  %v220 = vadd.f32 %v42, %v196
  %v221 = vadd.f32 %v43, %v198
  %v222 = vadd.f32 %v44, %v201
  %v223 = vadd.f32 %v45, %v203
  %v224 = vadd.f32 %v46, %v206
  %v225 = vadd.f32 %v47, %v208
  %226 = vst [vmem:[#allocation2] sm:$0xff] %v210
  %227 = vst [vmem:[#allocation2 + $0x8] sm:$0xff] %v211
  %228 = vst [vmem:[#allocation2 + $0x10] sm:$0xff] %v212
  %229 = vst [vmem:[#allocation2 + $0x18] sm:$0xff] %v213
  %230 = vst [vmem:[#allocation2 + $0x20] sm:$0xff] %v214
  %231 = vst [vmem:[#allocation2 + $0x28] sm:$0xff] %v215
  %232 = vst [vmem:[#allocation2 + $0x30] sm:$0xff] %v216
  %233 = vst [vmem:[#allocation2 + $0x38] sm:$0xff] %v217
  %234 = vst [vmem:[#allocation2 + $0x40] sm:$0xff] %v218
  %235 = vst [vmem:[#allocation2 + $0x48] sm:$0xff] %v219
  %236 = vst [vmem:[#allocation2 + $0x50] sm:$0xff] %v220
  %237 = vst [vmem:[#allocation2 + $0x58] sm:$0xff] %v221
  %238 = vst [vmem:[#allocation2 + $0x60] sm:$0xff] %v222
  %239 = vst [vmem:[#allocation2 + $0x68] sm:$0xff] %v223
  %240 = vst [vmem:[#allocation2 + $0x70] sm:$0xff] %v224
  %241 = vst [vmem:[#allocation2 + $0x78] sm:$0xff] %v225
  // Predicated region
  $region14: #{preact_bottleneck_forward.13} parent=0 // pred_check
    %p242 = pneg %p12
  $region15: #{preact_bottleneck_forward.13} parent=0 // pred_check_branch
    %244 = sbr.rel (%p242) target = $region17
  $region16: #{preact_bottleneck_forward.13} parent=0 // pred_region
    %v245 = vld [vmem:[#allocation2] sm:$0xff]
    %v246 = vld [vmem:[#allocation2 + $0x8] sm:$0xff]
    %v247 = vld [vmem:[#allocation2 + $0x10] sm:$0xff]
    %v248 = vld [vmem:[#allocation2 + $0x18] sm:$0xff]
    %v249 = vld [vmem:[#allocation2 + $0x20] sm:$0xff]
    %v250 = vld [vmem:[#allocation2 + $0x28] sm:$0xff]
    %v251 = vld [vmem:[#allocation2 + $0x30] sm:$0xff]
    %v252 = vld [vmem:[#allocation2 + $0x38] sm:$0xff]
    %v253 = vld [vmem:[#allocation2 + $0x40] sm:$0xff]
    %v254 = vld [vmem:[#allocation2 + $0x48] sm:$0xff]
    %v255 = vld [vmem:[#allocation2 + $0x50] sm:$0xff]
    %v256 = vld [vmem:[#allocation2 + $0x58] sm:$0xff]
    %v257 = vld [vmem:[#allocation2 + $0x60] sm:$0xff]
    %v258 = vld [vmem:[#allocation2 + $0x68] sm:$0xff]
    %v259 = vld [vmem:[#allocation2 + $0x70] sm:$0xff]
    %v260 = vld [vmem:[#allocation2 + $0x78] sm:$0xff]
    %v261 = vpack.c.bf16 %v245, %v245
    %v262 = vpack.c.bf16 %v246, %v246
    %v263 = vpack.c.bf16 %v247, %v247
    %v264 = vpack.c.bf16 %v248, %v248
    %v265 = vpack.c.bf16 %v249, %v249
    %v266 = vpack.c.bf16 %v250, %v250
    %v267 = vpack.c.bf16 %v251, %v251
    %v268 = vpack.c.bf16 %v252, %v252
    %v269 = vpack.c.bf16 %v253, %v253
    %v270 = vpack.c.bf16 %v254, %v254
    %v271 = vpack.c.bf16 %v255, %v255
    %v272 = vpack.c.bf16 %v256, %v256
    %v273 = vpack.c.bf16 %v257, %v257
    %v274 = vpack.c.bf16 %v258, %v258
    %v275 = vpack.c.bf16 %v259, %v259
    %v276 = vpack.c.bf16 %v260, %v260
    %277 = vst [vmem:[%s2] sm:$0xf] %v261
    %278 = vst [vmem:[%s2 + $0x4] sm:$0xf] %v262
    %279 = vst [vmem:[%s2 + $0x8] sm:$0xf] %v263
    %280 = vst [vmem:[%s2 + $0xc] sm:$0xf] %v264
    %281 = vst [vmem:[%s2 + $0x10] sm:$0xf] %v265
    %282 = vst [vmem:[%s2 + $0x14] sm:$0xf] %v266
    %283 = vst [vmem:[%s2 + $0x18] sm:$0xf] %v267
    %284 = vst [vmem:[%s2 + $0x1c] sm:$0xf] %v268
    %285 = vst [vmem:[%s2 + $0x20] sm:$0xf] %v269
    %286 = vst [vmem:[%s2 + $0x24] sm:$0xf] %v270
    %287 = vst [vmem:[%s2 + $0x28] sm:$0xf] %v271
    %288 = vst [vmem:[%s2 + $0x2c] sm:$0xf] %v272
    %289 = vst [vmem:[%s2 + $0x30] sm:$0xf] %v273
    %290 = vst [vmem:[%s2 + $0x34] sm:$0xf] %v274
    %291 = vst [vmem:[%s2 + $0x38] sm:$0xf] %v275
    %292 = vst [vmem:[%s2 + $0x3c] sm:$0xf] %v276
  $region17: #{preact_bottleneck_forward.13} parent=0 // pred_fallthru
    _
  // Predicated region
  $region18: #{preact_bottleneck_forward.13} parent=0 // pred_check
    _
  $region19: #{preact_bottleneck_forward.13} parent=0 // pred_check_branch
    %294 = sbr.rel (0) target = $region21
  $region20: #{preact_bottleneck_forward.13} parent=0 // pred_region
    _
  $region21: #{preact_bottleneck_forward.13} parent=0 // pred_fallthru
    _
  // Predicated region
  $region22: #{preact_bottleneck_forward.13} parent=0 // pred_check
    _
  $region23: #{preact_bottleneck_forward.13} parent=0 // pred_check_branch
    %296 = sbr.rel (0) target = $region25
  $region24: #{preact_bottleneck_forward.13} parent=0 // pred_region
    _
  $region25: #{preact_bottleneck_forward.13} parent=0 // pred_fallthru
    _

// kernel: preact_bottleneck_forward.14
$region0: #{preact_bottleneck_forward.14}
  #allocation0 [shape = 'u32[]', space=smem, size = 0x4, offset = 0x4, fixed_abs, tag = 'smem constant byte address 0x4 - core index']
  #allocation1 [shape = 'u32[72,128]{1,0:T(1,128)}', space=vmem, size = 0x9000, scoped, tag = 'internal scratch']
  #allocation2 [shape = 'f32[8,128]{1,0:T(8,128)}', space=vmem, size = 0x1000, scoped, tag = 'scratch operand']
  #allocation3 [shape = 'f32[2,128]{1,0:T(2,128)}', space=vmem, size = 0x400, scoped, tag = 'scratch operand']
  %s0 = inlined_call_operand.vmem [shape: bf16[2,64,128], index: 0, kind: input, shape index: {}]
  %s1 = inlined_call_operand.vmem [shape: f32[1,128], index: 1, kind: input, shape index: {}]
  %s2 = inlined_call_operand.vmem [shape: f32[1,128], index: 2, kind: input, shape index: {}]
  %s3 = inlined_call_operand.vmem [shape: f32[128,128], index: 3, kind: input, shape index: {}]
  %s4 = inlined_call_operand.vmem [shape: bf16[2,64,128], index: 4, kind: output, shape index: {}]
  %s5 = sld [smem:[#allocation0]]
  $region65: #{preact_bottleneck_forward.14} parent=0
    _
  %s7 = ssub.s32 1, %s5
  %s8 = scalar_select 0, %s7, %s5
  loop: start=0, step=1, limit=6
  $region2: #{preact_bottleneck_forward.14} parent=0 // loop_pre_header
    _
  $region3: #{preact_bottleneck_forward.14} parent=0 // loop_header
    %s10 = sphi 0, %s14
    %p11 = scmp.ge.s32.totalorder %s10, 6
    %s17 = sphi 0, %s36
    %s18 = sphi 0, %s32
    %s19 = sphi 0, %s28
    %s20 = sphi 0, %s17
    %s21 = sphi 0, %s18
    %s22 = sphi 0, %s19
    %s23 = sphi 0, %s20
    %s24 = sphi 0, %s21
    %s25 = sphi 0, %s22
    %s41 = sphi 0, %s43
    %s44 = sphi 0, %s41
    %s45 = sphi 0, %s44
    %s61 = sphi 0, %s45
    %s65 = sphi 0, %s65
    %s67 = sphi 0, %s65
    %s68 = sphi 0, %s67
    %s82 = sphi 0, %s68
    %s86 = sphi 0, %s86
    %s88 = sphi 0, %s86
    %s89 = sphi 0, %s88
    %s103 = sphi 0, %s89
    %s107 = sphi 0, %s107
    %s109 = sphi 0, %s107
    %s110 = sphi 0, %s109
    %s124 = sphi 0, %s110
    %s134 = sphi 0, %s136
    %s137 = sphi 0, %s134
    %s138 = sphi 0, %s137
    %s154 = sphi 0, %s138
  $region4: #{preact_bottleneck_forward.14} parent=0 // loop_header_branch
    %13 = sbr.rel (%p11) target = $region8
  $region5: #{preact_bottleneck_forward.14} parent=0 // loop_body
    %s15 = ssub.s32 %s10, 1
    %s16 = ssub.s32 %s10, 2
    %s26 = sadd.s32 1, %s19
    %p27 = scmp.ge.s32.totalorder %s26, 1
    %s28 = scalar_select %p27, 0, %s26
    %s29 = sadd.s32 1, %s18
    %s30 = scalar_select %p27, %s29, %s18
    %p31 = scmp.ge.s32.totalorder %s30, 2
    %s32 = scalar_select %p31, 0, %s30
    %s33 = sadd.s32 1, %s17
    %s34 = scalar_select %p31, %s33, %s17
    %p35 = scmp.ge.s32.totalorder %s34, 2
    %s36 = scalar_select %p35, 0, %s34
    %s37 = ssub.s32 %s17, %s36
    %s38 = ssub.s32 %s19, %s28
    %s39 = sor.u32 %s37, %s38
    %p40 = scmp.eq.s32.totalorder %s39, 0
    %s42 = sadd.s32 %s41, 1
    %s43 = scalar_select %p40, %s41, %s42
    %p46 = pneg %p40
    %p47 = scmp.eq.s32.totalorder %s10, 3
    %p48 = por %p46, %p47
    %p49 = scmp.ne.s32.totalorder %s41, %s44
    %p50 = scmp.eq.s32.totalorder %s10, 0
    %p51 = por %p49, %p50
    %p52 = scmp.ne.s32.totalorder %s41, %s44
    %p53 = scmp.eq.s32.totalorder %s15, 3
    %p54 = por %p52, %p53
    %p55 = scmp.ne.s32.totalorder %s44, %s45
    %p56 = scmp.eq.s32.totalorder %s15, 0
    %p57 = por %p55, %p56
    %p58 = scmp.ne.s32.totalorder %s44, %s45
    %p59 = scmp.eq.s32.totalorder %s16, 3
    %p60 = por %p58, %p59
    %p62 = scmp.ne.s32.totalorder %s45, %s61
    %p63 = scmp.eq.s32.totalorder %s16, 0
    %p64 = por %p62, %p63
    %s66 = sadd.s32 %s65, 1
    %p69 = scmp.eq.s32.totalorder %s10, 3
    %p70 = scmp.ne.s32.totalorder %s65, %s67
    %p71 = scmp.eq.s32.totalorder %s10, 0
    %p72 = por %p70, %p71
    %p73 = scmp.ne.s32.totalorder %s65, %s67
    %p74 = scmp.eq.s32.totalorder %s15, 3
    %p75 = por %p73, %p74
    %p76 = scmp.ne.s32.totalorder %s67, %s68
    %p77 = scmp.eq.s32.totalorder %s15, 0
    %p78 = por %p76, %p77
    %p79 = scmp.ne.s32.totalorder %s67, %s68
    %p80 = scmp.eq.s32.totalorder %s16, 3
    %p81 = por %p79, %p80
    %p83 = scmp.ne.s32.totalorder %s68, %s82
    %p84 = scmp.eq.s32.totalorder %s16, 0
    %p85 = por %p83, %p84
    %s87 = sadd.s32 %s86, 1
    %p90 = scmp.eq.s32.totalorder %s10, 3
    %p91 = scmp.ne.s32.totalorder %s86, %s88
    %p92 = scmp.eq.s32.totalorder %s10, 0
    %p93 = por %p91, %p92
    %p94 = scmp.ne.s32.totalorder %s86, %s88
    %p95 = scmp.eq.s32.totalorder %s15, 3
    %p96 = por %p94, %p95
    %p97 = scmp.ne.s32.totalorder %s88, %s89
    %p98 = scmp.eq.s32.totalorder %s15, 0
    %p99 = por %p97, %p98
    %p100 = scmp.ne.s32.totalorder %s88, %s89
    %p101 = scmp.eq.s32.totalorder %s16, 3
    %p102 = por %p100, %p101
    %p104 = scmp.ne.s32.totalorder %s89, %s103
    %p105 = scmp.eq.s32.totalorder %s16, 0
    %p106 = por %p104, %p105
    %s108 = sadd.s32 %s107, 1
    %p111 = scmp.eq.s32.totalorder %s10, 3
    %p112 = scmp.ne.s32.totalorder %s107, %s109
    %p113 = scmp.eq.s32.totalorder %s10, 0
    %p114 = por %p112, %p113
    %p115 = scmp.ne.s32.totalorder %s107, %s109
    %p116 = scmp.eq.s32.totalorder %s15, 3
    %p117 = por %p115, %p116
    %p118 = scmp.ne.s32.totalorder %s109, %s110
    %p119 = scmp.eq.s32.totalorder %s15, 0
    %p120 = por %p118, %p119
    %p121 = scmp.ne.s32.totalorder %s109, %s110
    %p122 = scmp.eq.s32.totalorder %s16, 3
    %p123 = por %p121, %p122
    %p125 = scmp.ne.s32.totalorder %s110, %s124
    %p126 = scmp.eq.s32.totalorder %s16, 0
    %p127 = por %p125, %p126
    %s128 = smul.u32 %s19, %s18
    %s129 = smul.u32 %s28, %s32
    %s130 = ssub.s32 %s17, %s36
    %s131 = ssub.s32 %s128, %s129
    %s132 = sor.u32 %s130, %s131
    %p133 = scmp.eq.s32.totalorder %s132, 0
    %s135 = sadd.s32 %s134, 1
    %s136 = scalar_select %p133, %s134, %s135
    %p139 = pneg %p133
    %p140 = scmp.eq.s32.totalorder %s10, 3
    %p141 = por %p139, %p140
    %p142 = scmp.ne.s32.totalorder %s134, %s137
    %p143 = scmp.eq.s32.totalorder %s10, 0
    %p144 = por %p142, %p143
    %p145 = scmp.ne.s32.totalorder %s134, %s137
    %p146 = scmp.eq.s32.totalorder %s15, 3
    %p147 = por %p145, %p146
    %p148 = scmp.ne.s32.totalorder %s137, %s138
    %p149 = scmp.eq.s32.totalorder %s15, 0
    %p150 = por %p148, %p149
    %p151 = scmp.ne.s32.totalorder %s137, %s138
    %p152 = scmp.eq.s32.totalorder %s16, 3
    %p153 = por %p151, %p152
    %p155 = scmp.ne.s32.totalorder %s138, %s154
    %p156 = scmp.eq.s32.totalorder %s16, 0
    %p157 = por %p155, %p156
    %p158 = scmp.le.s32.totalorder 1, %s10
    %p159 = scmp.lt.s32.totalorder %s10, 5
    %p160 = pnand %p158, %p159
    %p161 = pneg %p160
    // Predicated region
    $region9: #{preact_bottleneck_forward.14} parent=5 // pred_check
      _
    $region10: #{preact_bottleneck_forward.14} parent=5 // pred_check_branch
      %163 = sbr.rel (%p160) target = $region12
    $region11: #{preact_bottleneck_forward.14} parent=5 // pred_region
      %s164 = ssub.s32 %s10, 1
      // Predicated region
      $region13: #{preact_bottleneck_forward.14} parent=11 // pred_check
        %p165 = pneg %p78
      $region14: #{preact_bottleneck_forward.14} parent=11 // pred_check_branch
        %167 = sbr.rel (%p165) target = $region16
      $region15: #{preact_bottleneck_forward.14} parent=11 // pred_region
        _
      $region16: #{preact_bottleneck_forward.14} parent=11 // pred_fallthru
        _
      // Predicated region
      $region17: #{preact_bottleneck_forward.14} parent=11 // pred_check
        %p168 = pneg %p99
      $region18: #{preact_bottleneck_forward.14} parent=11 // pred_check_branch
        %170 = sbr.rel (%p168) target = $region20
      $region19: #{preact_bottleneck_forward.14} parent=11 // pred_region
        _
      $region20: #{preact_bottleneck_forward.14} parent=11 // pred_fallthru
        _
      // Predicated region
      $region21: #{preact_bottleneck_forward.14} parent=11 // pred_check
        %p171 = pneg %p120
      $region22: #{preact_bottleneck_forward.14} parent=11 // pred_check_branch
        %173 = sbr.rel (%p171) target = $region24
      $region23: #{preact_bottleneck_forward.14} parent=11 // pred_region
        _
      $region24: #{preact_bottleneck_forward.14} parent=11 // pred_fallthru
        _
    $region12: #{preact_bottleneck_forward.14} parent=5 // pred_fallthru
      _
    %p174 = scmp.lt.s32.totalorder %s10, 4
    // Predicated region
    $region25: #{preact_bottleneck_forward.14} parent=5 // pred_check
      %p175 = pneg %p174
    $region26: #{preact_bottleneck_forward.14} parent=5 // pred_check_branch
      %177 = sbr.rel (%p175) target = $region28
    $region27: #{preact_bottleneck_forward.14} parent=5 // pred_region
      // Predicated region
      $region29: #{preact_bottleneck_forward.14} parent=27 // pred_check
        %p178 = pneg %p51
      $region30: #{preact_bottleneck_forward.14} parent=27 // pred_check_branch
        %180 = sbr.rel (%p178) target = $region32
      $region31: #{preact_bottleneck_forward.14} parent=27 // pred_region
        %s181 = smul.u32 8, %s19
        %p182 = scmp.lt.s32.totalorder %s17, 1
        %s183 = scalar_select %p182, %s17, 1
        %p184 = scmp.lt.s32.totalorder %s181, 7
        %s185 = scalar_select %p184, %s181, 7
        %s186 = smul.addr %s183, 8
        %s187 = sadd.s32 %s185, %s186
        %s188 = smul.addr %s187, 4
        %s189 = scalar_lea.vmem %s0, %s188
        %s190 = smul.u32 8, %s19
      $region32: #{preact_bottleneck_forward.14} parent=27 // pred_fallthru
        _
    $region28: #{preact_bottleneck_forward.14} parent=5 // pred_fallthru
      _
    %p191 = scmp.le.s32.totalorder 1, %s10
    %p192 = scmp.lt.s32.totalorder %s10, 5
    %p193 = pnand %p191, %p192
    %p194 = pneg %p193
    // Predicated region
    $region33: #{preact_bottleneck_forward.14} parent=5 // pred_check
      _
    $region34: #{preact_bottleneck_forward.14} parent=5 // pred_check_branch
      %196 = sbr.rel (%p193) target = $region36
    $region35: #{preact_bottleneck_forward.14} parent=5 // pred_region
      %s197 = ssub.s32 %s10, 1
      %s198 = smul.u32 8, %s22
      %p199 = scmp.lt.s32.totalorder %s20, 1
      %s200 = scalar_select %p199, %s20, 1
      %p201 = scmp.lt.s32.totalorder %s198, 7
      %s202 = scalar_select %p201, %s198, 7
      %s203 = smul.addr %s200, 8
      %s204 = sadd.s32 %s202, %s203
      %s205 = smul.addr %s204, 4
      %s206 = scalar_lea.vmem %s0, %s205
      %p207 = pneg %p57
      %p208 = pneg %p54
      %p209 = pneg %p78
      %p210 = pneg %p75
      %p211 = pneg %p99
      %p212 = pneg %p96
      %p213 = pneg %p120
      %p214 = pneg %p117
      %p215 = pneg %p150
      %p216 = pneg %p147
      %s217 = smul.u32 %s22, %s21
      %s218 = smul.u32 8, %s217
      %p219 = scmp.lt.s32.totalorder %s20, 1
      %s220 = scalar_select %p219, %s20, 1
      %p221 = scmp.lt.s32.totalorder %s218, 7
      %s222 = scalar_select %p221, %s218, 7
      %s223 = smul.addr %s220, 8
      %s224 = sadd.s32 %s222, %s223
      %s225 = smul.addr %s224, 4
      %s226 = scalar_lea.vmem %s4, %s225
      %s227 = smul.u32 8, %s22
      %p228 = scmp.lt.s32.totalorder %s20, 1
      %s229 = scalar_select %p228, %s20, 1
      %p230 = scmp.lt.s32.totalorder %s227, 7
      %s231 = scalar_select %p230, %s227, 7
      %s232 = smul.addr %s229, 8
      %s233 = sadd.s32 %s231, %s232
      %s234 = smul.addr %s233, 4
      %s235 = scalar_lea.vmem %s0, %s234
      %s236 = smul.u32 8, %s22
      %s237 = smul.u32 %s22, %s21
      %s238 = smul.u32 8, %s237
      %p239 = scmp.lt.s32.totalorder %s20, 1
      %s240 = scalar_select %p239, %s20, 1
      %p241 = scmp.lt.s32.totalorder %s238, 7
      %s242 = scalar_select %p241, %s238, 7
      %s243 = smul.addr %s240, 8
      %s244 = sadd.s32 %s242, %s243
      %s245 = smul.addr %s244, 4
      %s246 = scalar_lea.vmem %s4, %s245
      %s247 = smul.u32 %s22, %s21
      %s248 = smul.u32 8, %s247
      %p249 = scmp.eq.s32.totalorder %s21, 0
      %p250 = scmp.eq.s32.totalorder %s22, 0
      %p251 = pnand %p249, %p250
      %p252 = pneg %p251
      // Predicated region
      $region37: #{preact_bottleneck_forward.14} parent=35 // pred_check
        _
      $region38: #{preact_bottleneck_forward.14} parent=35 // pred_check_branch
        %254 = sbr.rel (%p251) target = $region40
      $region39: #{preact_bottleneck_forward.14} parent=35 // pred_region
        %255 = vst [vmem:[#allocation2] sm:$0xff] 0.0
      $region40: #{preact_bottleneck_forward.14} parent=35 // pred_fallthru
        _
      %v256 = vld [vmem:[%s235] sm:$0xf]
      %v257 = vld [vmem:[%s235 + $0x4] sm:$0xf]
      %v258 = vld [vmem:[%s235 + $0x8] sm:$0xf]
      %v259 = vld [vmem:[%s235 + $0xc] sm:$0xf]
      %v260 = vld [vmem:[%s235 + $0x10] sm:$0xf]
      %v261 = vld [vmem:[%s235 + $0x14] sm:$0xf]
      %v262 = vld [vmem:[%s235 + $0x18] sm:$0xf]
      %v263 = vld [vmem:[%s235 + $0x1c] sm:$0xf]
      %v264 = vunpack.c.l.bf16 %v256
      %v265 = vunpack.c.l.bf16 %v257
      %v266 = vunpack.c.l.bf16 %v258
      %v267 = vunpack.c.l.bf16 %v259
      %v268 = vunpack.c.l.bf16 %v260
      %v269 = vunpack.c.l.bf16 %v261
      %v270 = vunpack.c.l.bf16 %v262
      %v271 = vunpack.c.l.bf16 %v263
      // Predicated region
      $region41: #{preact_bottleneck_forward.14} parent=35 // pred_check
        %p272 = pneg %p249
      $region42: #{preact_bottleneck_forward.14} parent=35 // pred_check_branch
        %274 = sbr.rel (%p272) target = $region44
      $region43: #{preact_bottleneck_forward.14} parent=35 // pred_region
        %v275 = vld [vmem:[#allocation2] sm:$0x1]
        %v276 = vadd.f32 %v264, %v265
        %v277 = vadd.f32 %v276, %v266
        %v278 = vadd.f32 %v277, %v267
        %v279 = vadd.f32 %v278, %v268
        %v280 = vadd.f32 %v279, %v269
        %v281 = vadd.f32 %v280, %v270
        %v282 = vadd.f32 %v281, %v271
        %v283 = vrot.slane %v282, 4
        %v284 = vadd.f32 %v282, %v283
        %v285 = vrot.slane %v284, 2
        %v286 = vadd.f32 %v284, %v285
        %v287 = vrot.slane %v286, 1
        %v288 = vadd.f32 %v286, %v287
        %v289 = vadd.f32 %v275, %v288
        %290 = vst [vmem:[#allocation2] sm:$0x1] %v289
        %v291 = vld [vmem:[#allocation2 + $0x1] sm:$0x1]
        %v292 = vmul.f32 %v264, %v264
        %v293 = vmul.f32 %v265, %v265
        %v294 = vmul.f32 %v266, %v266
        %v295 = vmul.f32 %v267, %v267
        %v296 = vmul.f32 %v268, %v268
        %v297 = vmul.f32 %v269, %v269
        %v298 = vmul.f32 %v270, %v270
        %v299 = vmul.f32 %v271, %v271
        %v300 = vadd.f32 %v292, %v293
        %v301 = vadd.f32 %v300, %v294
        %v302 = vadd.f32 %v301, %v295
        %v303 = vadd.f32 %v302, %v296
        %v304 = vadd.f32 %v303, %v297
        %v305 = vadd.f32 %v304, %v298
        %v306 = vadd.f32 %v305, %v299
        %v307 = vrot.slane %v306, 4
        %v308 = vadd.f32 %v306, %v307
        %v309 = vrot.slane %v308, 2
        %v310 = vadd.f32 %v308, %v309
        %v311 = vrot.slane %v310, 1
        %v312 = vadd.f32 %v310, %v311
        %v313 = vadd.f32 %v291, %v312
        %314 = vst [vmem:[#allocation2 + $0x1] sm:$0x1] %v313
      $region44: #{preact_bottleneck_forward.14} parent=35 // pred_fallthru
        _
      %p315 = scmp.eq.s32.totalorder %s21, 1
      %p316 = pnand %p315, %p250
      %p317 = pneg %p316
      // Predicated region
      $region45: #{preact_bottleneck_forward.14} parent=35 // pred_check
        _
      $region46: #{preact_bottleneck_forward.14} parent=35 // pred_check_branch
        %319 = sbr.rel (%p316) target = $region48
      $region47: #{preact_bottleneck_forward.14} parent=35 // pred_region
        %v320 = vld [vmem:[#allocation2] sm:$0xff]
        %v321 = vld [vmem:[%s3] sm:$0xff]
        %v322 = vld [vmem:[%s3 + $0x8] sm:$0xff]
        %v323 = vld [vmem:[%s3 + $0x10] sm:$0xff]
        %v324 = vld [vmem:[%s3 + $0x18] sm:$0xff]
        %v325 = vld [vmem:[%s3 + $0x20] sm:$0xff]
        %v326 = vld [vmem:[%s3 + $0x28] sm:$0xff]
        %v327 = vld [vmem:[%s3 + $0x30] sm:$0xff]
        %v328 = vld [vmem:[%s3 + $0x38] sm:$0xff]
        %v329 = vld [vmem:[%s3 + $0x40] sm:$0xff]
        %v330 = vld [vmem:[%s3 + $0x48] sm:$0xff]
        %v331 = vld [vmem:[%s3 + $0x50] sm:$0xff]
        %v332 = vld [vmem:[%s3 + $0x58] sm:$0xff]
        %v333 = vld [vmem:[%s3 + $0x60] sm:$0xff]
        %v334 = vld [vmem:[%s3 + $0x68] sm:$0xff]
        %v335 = vld [vmem:[%s3 + $0x70] sm:$0xff]
        %v336 = vld [vmem:[%s3 + $0x78] sm:$0xff]
        %337 = vmatpush.msra.mxu0 %v336
        %338 = vmatpush.msra.mxu0 %v335
        %339 = vmatpush.msra.mxu0 %v334
        %340 = vmatpush.msra.mxu0 %v333
        %341 = vmatpush.msra.mxu0 %v332
        %342 = vmatpush.msra.mxu0 %v331
        %343 = vmatpush.msra.mxu0 %v330
        %344 = vmatpush.msra.mxu0 %v329
        %345 = vmatpush.msra.mxu0 %v328
        %346 = vmatpush.msra.mxu0 %v327
        %347 = vmatpush.msra.mxu0 %v326
        %348 = vmatpush.msra.mxu0 %v325
        %349 = vmatpush.msra.mxu0 %v324
        %350 = vmatpush.msra.mxu0 %v323
        %351 = vmatpush.msra.mxu0 %v322
        %352 = vmatpush.msra.mxu0 %v321
        %353 = vmatmul.f32.gmra.mxu0 %v320
        %v354 = vpop.f32.mrf.mxu0
        %v355 = vadd.f32 0.0, %v354
        %356 = vdwg.mxu0
        %v357 = vmul.f32 %v355, %v355
        %v359 = vrot.slane %v357, 7
        %v361 = vsub.f32 %v355, %v359
        %v362 = vmax.f32 %v361, 0.0
        %v363 = vadd.f32 %v362, 1e-05
        %v364 = vrsqrt.pop %v363
        %v365 = vmul.f32 %v364, %v363
        %v366 = vmul.f32 %v365, %v364
        %v367 = vmul.f32 0.5, %v366
        %v368 = vsub.f32 1.5, %v367
        %v369 = vmul.f32 %v364, %v368
        %vm370 = vweird.f32 %v363
        %vm371 = vweird.f32 %v364
        %vm372 = vmor %vm370, %vm371
        %v373 = vsel %vm372, %v364, %v369
        %v374 = vld [vmem:[%s1] sm:$0x1]
        %v376 = vperm.slane %v374, 0
        %v378 = vmul.f32 %v373, %v376
        %379 = vst [vmem:[#allocation3 - $0x1] sm:$0x2] %v378
        %v380 = vld [vmem:[%s2] sm:$0x1]
        %v382 = vrot.slane %v378, 1
        %v384 = vmul.f32 %v355, %v382
        %v385 = vsub.f32 %v380, %v384
        %386 = vst [vmem:[#allocation3 + $0x1] sm:$0x1] %v385
      $region48: #{preact_bottleneck_forward.14} parent=35 // pred_fallthru
        _
      // Predicated region
      $region49: #{preact_bottleneck_forward.14} parent=35 // pred_check
        %p387 = pneg %p315
      $region50: #{preact_bottleneck_forward.14} parent=35 // pred_check_branch
        %389 = sbr.rel (%p387) target = $region52
      $region51: #{preact_bottleneck_forward.14} parent=35 // pred_region
        %v390 = vld [vmem:[#allocation3] sm:$0x1]
        %v391 = vperm.slane %v390, 0
        %v392 = vmul.f32 %v264, %v391
        %v393 = vmul.f32 %v265, %v391
        %v394 = vmul.f32 %v266, %v391
        %v395 = vmul.f32 %v267, %v391
        %v396 = vmul.f32 %v268, %v391
        %v397 = vmul.f32 %v269, %v391
        %v398 = vmul.f32 %v270, %v391
        %v399 = vmul.f32 %v271, %v391
        %v400 = vld [vmem:[#allocation3 + $0x1] sm:$0x1]
        %v401 = vperm.slane %v400, 0
        %v402 = vadd.f32 %v392, %v401
        %v403 = vadd.f32 %v393, %v401
        %v404 = vadd.f32 %v394, %v401
        %v405 = vadd.f32 %v395, %v401
        %v406 = vadd.f32 %v396, %v401
        %v407 = vadd.f32 %v397, %v401
        %v408 = vadd.f32 %v398, %v401
        %v409 = vadd.f32 %v399, %v401
        %v410 = vpack.c.bf16 %v402, %v402
        %v411 = vpack.c.bf16 %v403, %v403
        %v412 = vpack.c.bf16 %v404, %v404
        %v413 = vpack.c.bf16 %v405, %v405
        %v414 = vpack.c.bf16 %v406, %v406
        %v415 = vpack.c.bf16 %v407, %v407
        %v416 = vpack.c.bf16 %v408, %v408
        %v417 = vpack.c.bf16 %v409, %v409
        %418 = vst [vmem:[%s246] sm:$0xf] %v410
        %419 = vst [vmem:[%s246 + $0x4] sm:$0xf] %v411
        %420 = vst [vmem:[%s246 + $0x8] sm:$0xf] %v412
        %421 = vst [vmem:[%s246 + $0xc] sm:$0xf] %v413
        %422 = vst [vmem:[%s246 + $0x10] sm:$0xf] %v414
        %423 = vst [vmem:[%s246 + $0x14] sm:$0xf] %v415
        %424 = vst [vmem:[%s246 + $0x18] sm:$0xf] %v416
        %425 = vst [vmem:[%s246 + $0x1c] sm:$0xf] %v417
      $region52: #{preact_bottleneck_forward.14} parent=35 // pred_fallthru
        _
      %s426 = smul.u32 %s22, %s21
      %s427 = smul.u32 8, %s426
      %p428 = scmp.lt.s32.totalorder %s20, 1
      %s429 = scalar_select %p428, %s20, 1
      %p430 = scmp.lt.s32.totalorder %s427, 7
      %s431 = scalar_select %p430, %s427, 7
      %s432 = smul.addr %s429, 8
      %s433 = sadd.s32 %s431, %s432
      %s434 = smul.addr %s433, 4
      %s435 = scalar_lea.vmem %s4, %s434
      // Predicated region
      $region53: #{preact_bottleneck_forward.14} parent=35 // pred_check
        %p436 = pneg %p147
      $region54: #{preact_bottleneck_forward.14} parent=35 // pred_check_branch
        %438 = sbr.rel (%p436) target = $region56
      $region55: #{preact_bottleneck_forward.14} parent=35 // pred_region
        %s439 = smul.u32 %s22, %s21
        %s440 = smul.u32 8, %s439
      $region56: #{preact_bottleneck_forward.14} parent=35 // pred_fallthru
        _
    $region36: #{preact_bottleneck_forward.14} parent=5 // pred_fallthru
      _
    %p441 = scmp.le.s32.totalorder 2, %s10
    // Predicated region
    $region57: #{preact_bottleneck_forward.14} parent=5 // pred_check
      %p442 = pneg %p441
    $region58: #{preact_bottleneck_forward.14} parent=5 // pred_check_branch
      %444 = sbr.rel (%p442) target = $region60
    $region59: #{preact_bottleneck_forward.14} parent=5 // pred_region
      %s445 = ssub.s32 %s10, 2
      // Predicated region
      $region61: #{preact_bottleneck_forward.14} parent=59 // pred_check
        %p446 = pneg %p153
      $region62: #{preact_bottleneck_forward.14} parent=59 // pred_check_branch
        %448 = sbr.rel (%p446) target = $region64
      $region63: #{preact_bottleneck_forward.14} parent=59 // pred_region
        %s449 = smul.u32 %s25, %s24
        %s450 = smul.u32 8, %s449
        %p451 = scmp.lt.s32.totalorder %s23, 1
        %s452 = scalar_select %p451, %s23, 1
        %p453 = scmp.lt.s32.totalorder %s450, 7
        %s454 = scalar_select %p453, %s450, 7
        %s455 = smul.addr %s452, 8
        %s456 = sadd.s32 %s454, %s455
        %s457 = smul.addr %s456, 4
        %s458 = scalar_lea.vmem %s4, %s457
      $region64: #{preact_bottleneck_forward.14} parent=59 // pred_fallthru
        _
    $region60: #{preact_bottleneck_forward.14} parent=5 // pred_fallthru
      _
  $region6: #{preact_bottleneck_forward.14} parent=0 // loop_footer
    %s14 = sadd.s32 1, %s10
  $region7: #{preact_bottleneck_forward.14} parent=0 // loop_footer_branch
    %9 = sbr.rel target = $region3
  $region8: #{preact_bottleneck_forward.14} parent=0 // loop_exit
    _

// kernel: preact_bottleneck_forward.15
$region0: #{preact_bottleneck_forward.15}
  #allocation0 [shape = 'u32[]', space=smem, size = 0x4, offset = 0x4, fixed_abs, tag = 'smem constant byte address 0x4 - core index']
  #allocation1 [shape = 'u32[72,128]{1,0:T(1,128)}', space=vmem, size = 0x9000, scoped, tag = 'internal scratch']
  #allocation2 [shape = 'f32[8,128]{1,0:T(8,128)}', space=vmem, size = 0x1000, scoped, tag = 'scratch operand']
  #allocation3 [shape = 'f32[2,128]{1,0:T(2,128)}', space=vmem, size = 0x400, scoped, tag = 'scratch operand']
  %s0 = inlined_call_operand.vmem [shape: bf16[2,64,128], index: 0, kind: input, shape index: {}]
  %s1 = inlined_call_operand.vmem [shape: bf16[2,64,128], index: 1, kind: input, shape index: {}]
  %s2 = inlined_call_operand.vmem [shape: f32[1,128], index: 2, kind: input, shape index: {}]
  %s3 = inlined_call_operand.vmem [shape: f32[1,128], index: 3, kind: input, shape index: {}]
  %s4 = inlined_call_operand.vmem [shape: f32[128,128], index: 4, kind: input, shape index: {}]
  %s5 = inlined_call_operand.vmem [shape: f32[2,128,64], index: 5, kind: output, shape index: {}]
  %s6 = sld [smem:[#allocation0]]
  $region69: #{preact_bottleneck_forward.15} parent=0
    _
  %s8 = ssub.s32 1, %s6
  %s9 = scalar_select 0, %s8, %s6
  loop: start=0, step=1, limit=6
  $region2: #{preact_bottleneck_forward.15} parent=0 // loop_pre_header
    _
  $region3: #{preact_bottleneck_forward.15} parent=0 // loop_header
    %s11 = sphi 0, %s15
    %p12 = scmp.ge.s32.totalorder %s11, 6
    %s18 = sphi 0, %s37
    %s19 = sphi 0, %s33
    %s20 = sphi 0, %s29
    %s21 = sphi 0, %s18
    %s22 = sphi 0, %s19
    %s23 = sphi 0, %s20
    %s24 = sphi 0, %s21
    %s25 = sphi 0, %s22
    %s26 = sphi 0, %s23
    %s42 = sphi 0, %s44
    %s45 = sphi 0, %s42
    %s46 = sphi 0, %s45
    %s62 = sphi 0, %s46
    %s72 = sphi 0, %s74
    %s75 = sphi 0, %s72
    %s76 = sphi 0, %s75
    %s92 = sphi 0, %s76
    %s96 = sphi 0, %s96
    %s98 = sphi 0, %s96
    %s99 = sphi 0, %s98
    %s113 = sphi 0, %s99
    %s117 = sphi 0, %s117
    %s119 = sphi 0, %s117
    %s120 = sphi 0, %s119
    %s134 = sphi 0, %s120
    %s138 = sphi 0, %s138
    %s140 = sphi 0, %s138
    %s141 = sphi 0, %s140
    %s155 = sphi 0, %s141
    %s165 = sphi 0, %s167
    %s168 = sphi 0, %s165
    %s169 = sphi 0, %s168
    %s185 = sphi 0, %s169
  $region4: #{preact_bottleneck_forward.15} parent=0 // loop_header_branch
    %14 = sbr.rel (%p12) target = $region8
  $region5: #{preact_bottleneck_forward.15} parent=0 // loop_body
    %s16 = ssub.s32 %s11, 1
    %s17 = ssub.s32 %s11, 2
    %s27 = sadd.s32 1, %s20
    %p28 = scmp.ge.s32.totalorder %s27, 1
    %s29 = scalar_select %p28, 0, %s27
    %s30 = sadd.s32 1, %s19
    %s31 = scalar_select %p28, %s30, %s19
    %p32 = scmp.ge.s32.totalorder %s31, 2
    %s33 = scalar_select %p32, 0, %s31
    %s34 = sadd.s32 1, %s18
    %s35 = scalar_select %p32, %s34, %s18
    %p36 = scmp.ge.s32.totalorder %s35, 2
    %s37 = scalar_select %p36, 0, %s35
    %s38 = ssub.s32 %s18, %s37
    %s39 = ssub.s32 %s20, %s29
    %s40 = sor.u32 %s38, %s39
    %p41 = scmp.eq.s32.totalorder %s40, 0
    %s43 = sadd.s32 %s42, 1
    %s44 = scalar_select %p41, %s42, %s43
    %p47 = pneg %p41
    %p48 = scmp.eq.s32.totalorder %s11, 3
    %p49 = por %p47, %p48
    %p50 = scmp.ne.s32.totalorder %s42, %s45
    %p51 = scmp.eq.s32.totalorder %s11, 0
    %p52 = por %p50, %p51
    %p53 = scmp.ne.s32.totalorder %s42, %s45
    %p54 = scmp.eq.s32.totalorder %s16, 3
    %p55 = por %p53, %p54
    %p56 = scmp.ne.s32.totalorder %s45, %s46
    %p57 = scmp.eq.s32.totalorder %s16, 0
    %p58 = por %p56, %p57
    %p59 = scmp.ne.s32.totalorder %s45, %s46
    %p60 = scmp.eq.s32.totalorder %s17, 3
    %p61 = por %p59, %p60
    %p63 = scmp.ne.s32.totalorder %s46, %s62
    %p64 = scmp.eq.s32.totalorder %s17, 0
    %p65 = por %p63, %p64
    %s66 = smul.u32 %s20, %s19
    %s67 = smul.u32 %s29, %s33
    %s68 = ssub.s32 %s18, %s37
    %s69 = ssub.s32 %s66, %s67
    %s70 = sor.u32 %s68, %s69
    %p71 = scmp.eq.s32.totalorder %s70, 0
    %s73 = sadd.s32 %s72, 1
    %s74 = scalar_select %p71, %s72, %s73
    %p77 = pneg %p71
    %p78 = scmp.eq.s32.totalorder %s11, 3
    %p79 = por %p77, %p78
    %p80 = scmp.ne.s32.totalorder %s72, %s75
    %p81 = scmp.eq.s32.totalorder %s11, 0
    %p82 = por %p80, %p81
    %p83 = scmp.ne.s32.totalorder %s72, %s75
    %p84 = scmp.eq.s32.totalorder %s16, 3
    %p85 = por %p83, %p84
    %p86 = scmp.ne.s32.totalorder %s75, %s76
    %p87 = scmp.eq.s32.totalorder %s16, 0
    %p88 = por %p86, %p87
    %p89 = scmp.ne.s32.totalorder %s75, %s76
    %p90 = scmp.eq.s32.totalorder %s17, 3
    %p91 = por %p89, %p90
    %p93 = scmp.ne.s32.totalorder %s76, %s92
    %p94 = scmp.eq.s32.totalorder %s17, 0
    %p95 = por %p93, %p94
    %s97 = sadd.s32 %s96, 1
    %p100 = scmp.eq.s32.totalorder %s11, 3
    %p101 = scmp.ne.s32.totalorder %s96, %s98
    %p102 = scmp.eq.s32.totalorder %s11, 0
    %p103 = por %p101, %p102
    %p104 = scmp.ne.s32.totalorder %s96, %s98
    %p105 = scmp.eq.s32.totalorder %s16, 3
    %p106 = por %p104, %p105
    %p107 = scmp.ne.s32.totalorder %s98, %s99
    %p108 = scmp.eq.s32.totalorder %s16, 0
    %p109 = por %p107, %p108
    %p110 = scmp.ne.s32.totalorder %s98, %s99
    %p111 = scmp.eq.s32.totalorder %s17, 3
    %p112 = por %p110, %p111
    %p114 = scmp.ne.s32.totalorder %s99, %s113
    %p115 = scmp.eq.s32.totalorder %s17, 0
    %p116 = por %p114, %p115
    %s118 = sadd.s32 %s117, 1
    %p121 = scmp.eq.s32.totalorder %s11, 3
    %p122 = scmp.ne.s32.totalorder %s117, %s119
    %p123 = scmp.eq.s32.totalorder %s11, 0
    %p124 = por %p122, %p123
    %p125 = scmp.ne.s32.totalorder %s117, %s119
    %p126 = scmp.eq.s32.totalorder %s16, 3
    %p127 = por %p125, %p126
    %p128 = scmp.ne.s32.totalorder %s119, %s120
    %p129 = scmp.eq.s32.totalorder %s16, 0
    %p130 = por %p128, %p129
    %p131 = scmp.ne.s32.totalorder %s119, %s120
    %p132 = scmp.eq.s32.totalorder %s17, 3
    %p133 = por %p131, %p132
    %p135 = scmp.ne.s32.totalorder %s120, %s134
    %p136 = scmp.eq.s32.totalorder %s17, 0
    %p137 = por %p135, %p136
    %s139 = sadd.s32 %s138, 1
    %p142 = scmp.eq.s32.totalorder %s11, 3
    %p143 = scmp.ne.s32.totalorder %s138, %s140
    %p144 = scmp.eq.s32.totalorder %s11, 0
    %p145 = por %p143, %p144
    %p146 = scmp.ne.s32.totalorder %s138, %s140
    %p147 = scmp.eq.s32.totalorder %s16, 3
    %p148 = por %p146, %p147
    %p149 = scmp.ne.s32.totalorder %s140, %s141
    %p150 = scmp.eq.s32.totalorder %s16, 0
    %p151 = por %p149, %p150
    %p152 = scmp.ne.s32.totalorder %s140, %s141
    %p153 = scmp.eq.s32.totalorder %s17, 3
    %p154 = por %p152, %p153
    %p156 = scmp.ne.s32.totalorder %s141, %s155
    %p157 = scmp.eq.s32.totalorder %s17, 0
    %p158 = por %p156, %p157
    %s159 = smul.u32 %s20, %s19
    %s160 = smul.u32 %s29, %s33
    %s161 = ssub.s32 %s18, %s37
    %s162 = ssub.s32 %s159, %s160
    %s163 = sor.u32 %s161, %s162
    %p164 = scmp.eq.s32.totalorder %s163, 0
    %s166 = sadd.s32 %s165, 1
    %s167 = scalar_select %p164, %s165, %s166
    %p170 = pneg %p164
    %p171 = scmp.eq.s32.totalorder %s11, 3
    %p172 = por %p170, %p171
    %p173 = scmp.ne.s32.totalorder %s165, %s168
    %p174 = scmp.eq.s32.totalorder %s11, 0
    %p175 = por %p173, %p174
    %p176 = scmp.ne.s32.totalorder %s165, %s168
    %p177 = scmp.eq.s32.totalorder %s16, 3
    %p178 = por %p176, %p177
    %p179 = scmp.ne.s32.totalorder %s168, %s169
    %p180 = scmp.eq.s32.totalorder %s16, 0
    %p181 = por %p179, %p180
    %p182 = scmp.ne.s32.totalorder %s168, %s169
    %p183 = scmp.eq.s32.totalorder %s17, 3
    %p184 = por %p182, %p183
    %p186 = scmp.ne.s32.totalorder %s169, %s185
    %p187 = scmp.eq.s32.totalorder %s17, 0
    %p188 = por %p186, %p187
    %p189 = scmp.le.s32.totalorder 1, %s11
    %p190 = scmp.lt.s32.totalorder %s11, 5
    %p191 = pnand %p189, %p190
    %p192 = pneg %p191
    // Predicated region
    $region9: #{preact_bottleneck_forward.15} parent=5 // pred_check
      _
    $region10: #{preact_bottleneck_forward.15} parent=5 // pred_check_branch
      %194 = sbr.rel (%p191) target = $region12
    $region11: #{preact_bottleneck_forward.15} parent=5 // pred_region
      %s195 = ssub.s32 %s11, 1
      // Predicated region
      $region13: #{preact_bottleneck_forward.15} parent=11 // pred_check
        %p196 = pneg %p109
      $region14: #{preact_bottleneck_forward.15} parent=11 // pred_check_branch
        %198 = sbr.rel (%p196) target = $region16
      $region15: #{preact_bottleneck_forward.15} parent=11 // pred_region
        _
      $region16: #{preact_bottleneck_forward.15} parent=11 // pred_fallthru
        _
      // Predicated region
      $region17: #{preact_bottleneck_forward.15} parent=11 // pred_check
        %p199 = pneg %p130
      $region18: #{preact_bottleneck_forward.15} parent=11 // pred_check_branch
        %201 = sbr.rel (%p199) target = $region20
      $region19: #{preact_bottleneck_forward.15} parent=11 // pred_region
        _
      $region20: #{preact_bottleneck_forward.15} parent=11 // pred_fallthru
        _
      // Predicated region
      $region21: #{preact_bottleneck_forward.15} parent=11 // pred_check
        %p202 = pneg %p151
      $region22: #{preact_bottleneck_forward.15} parent=11 // pred_check_branch
        %204 = sbr.rel (%p202) target = $region24
      $region23: #{preact_bottleneck_forward.15} parent=11 // pred_region
        _
      $region24: #{preact_bottleneck_forward.15} parent=11 // pred_fallthru
        _
    $region12: #{preact_bottleneck_forward.15} parent=5 // pred_fallthru
      _
    %p205 = scmp.lt.s32.totalorder %s11, 4
    // Predicated region
    $region25: #{preact_bottleneck_forward.15} parent=5 // pred_check
      %p206 = pneg %p205
    $region26: #{preact_bottleneck_forward.15} parent=5 // pred_check_branch
      %208 = sbr.rel (%p206) target = $region28
    $region27: #{preact_bottleneck_forward.15} parent=5 // pred_region
      // Predicated region
      $region29: #{preact_bottleneck_forward.15} parent=27 // pred_check
        %p209 = pneg %p52
      $region30: #{preact_bottleneck_forward.15} parent=27 // pred_check_branch
        %211 = sbr.rel (%p209) target = $region32
      $region31: #{preact_bottleneck_forward.15} parent=27 // pred_region
        %s212 = smul.u32 8, %s20
        %p213 = scmp.lt.s32.totalorder %s18, 1
        %s214 = scalar_select %p213, %s18, 1
        %p215 = scmp.lt.s32.totalorder %s212, 7
        %s216 = scalar_select %p215, %s212, 7
        %s217 = smul.addr %s214, 8
        %s218 = sadd.s32 %s216, %s217
        %s219 = smul.addr %s218, 4
        %s220 = scalar_lea.vmem %s0, %s219
        %s221 = smul.u32 8, %s20
      $region32: #{preact_bottleneck_forward.15} parent=27 // pred_fallthru
        _
      // Predicated region
      $region33: #{preact_bottleneck_forward.15} parent=27 // pred_check
        %p222 = pneg %p82
      $region34: #{preact_bottleneck_forward.15} parent=27 // pred_check_branch
        %224 = sbr.rel (%p222) target = $region36
      $region35: #{preact_bottleneck_forward.15} parent=27 // pred_region
        %s225 = smul.u32 %s20, %s19
        %s226 = smul.u32 8, %s225
        %p227 = scmp.lt.s32.totalorder %s18, 1
        %s228 = scalar_select %p227, %s18, 1
        %p229 = scmp.lt.s32.totalorder %s226, 7
        %s230 = scalar_select %p229, %s226, 7
        %s231 = smul.addr %s228, 8
        %s232 = sadd.s32 %s230, %s231
        %s233 = smul.addr %s232, 4
        %s234 = scalar_lea.vmem %s1, %s233
        %s235 = smul.u32 %s20, %s19
        %s236 = smul.u32 8, %s235
      $region36: #{preact_bottleneck_forward.15} parent=27 // pred_fallthru
        _
    $region28: #{preact_bottleneck_forward.15} parent=5 // pred_fallthru
      _
    %p237 = scmp.le.s32.totalorder 1, %s11
    %p238 = scmp.lt.s32.totalorder %s11, 5
    %p239 = pnand %p237, %p238
    %p240 = pneg %p239
    // Predicated region
    $region37: #{preact_bottleneck_forward.15} parent=5 // pred_check
      _
    $region38: #{preact_bottleneck_forward.15} parent=5 // pred_check_branch
      %242 = sbr.rel (%p239) target = $region40
    $region39: #{preact_bottleneck_forward.15} parent=5 // pred_region
      %s243 = ssub.s32 %s11, 1
      %s244 = smul.u32 8, %s23
      %p245 = scmp.lt.s32.totalorder %s21, 1
      %s246 = scalar_select %p245, %s21, 1
      %p247 = scmp.lt.s32.totalorder %s244, 7
      %s248 = scalar_select %p247, %s244, 7
      %s249 = smul.addr %s246, 8
      %s250 = sadd.s32 %s248, %s249
      %s251 = smul.addr %s250, 4
      %s252 = scalar_lea.vmem %s0, %s251
      %p253 = pneg %p58
      %p254 = pneg %p55
      %s255 = smul.u32 %s23, %s22
      %s256 = smul.u32 8, %s255
      %p257 = scmp.lt.s32.totalorder %s21, 1
      %s258 = scalar_select %p257, %s21, 1
      %p259 = scmp.lt.s32.totalorder %s256, 7
      %s260 = scalar_select %p259, %s256, 7
      %s261 = smul.addr %s258, 8
      %s262 = sadd.s32 %s260, %s261
      %s263 = smul.addr %s262, 4
      %s264 = scalar_lea.vmem %s1, %s263
      %p265 = pneg %p88
      %p266 = pneg %p85
      %p267 = pneg %p109
      %p268 = pneg %p106
      %p269 = pneg %p130
      %p270 = pneg %p127
      %p271 = pneg %p151
      %p272 = pneg %p148
      %p273 = pneg %p181
      %p274 = pneg %p178
      %s275 = smul.u32 %s23, %s22
      %p276 = scmp.lt.s32.totalorder %s21, 1
      %s277 = scalar_select %p276, %s21, 1
      %p278 = scmp.lt.s32.totalorder %s275, 0
      %s279 = scalar_select %p278, %s275, 0
      %s280 = smul.addr %s277, 16
      %s281 = sadd.s32 %s279, %s280
      %s282 = smul.addr %s281, 8
      %s283 = scalar_lea.vmem %s5, %s282
      %s284 = smul.u32 8, %s23
      %p285 = scmp.lt.s32.totalorder %s21, 1
      %s286 = scalar_select %p285, %s21, 1
      %p287 = scmp.lt.s32.totalorder %s284, 7
      %s288 = scalar_select %p287, %s284, 7
      %s289 = smul.addr %s286, 8
      %s290 = sadd.s32 %s288, %s289
      %s291 = smul.addr %s290, 4
      %s292 = scalar_lea.vmem %s0, %s291
      %s293 = smul.u32 8, %s23
      %s294 = smul.u32 %s23, %s22
      %s295 = smul.u32 8, %s294
      %p296 = scmp.lt.s32.totalorder %s21, 1
      %s297 = scalar_select %p296, %s21, 1
      %p298 = scmp.lt.s32.totalorder %s295, 7
      %s299 = scalar_select %p298, %s295, 7
      %s300 = smul.addr %s297, 8
      %s301 = sadd.s32 %s299, %s300
      %s302 = smul.addr %s301, 4
      %s303 = scalar_lea.vmem %s1, %s302
      %s304 = smul.u32 %s23, %s22
      %s305 = smul.u32 8, %s304
      %s306 = smul.u32 %s23, %s22
      %p307 = scmp.lt.s32.totalorder %s21, 1
      %s308 = scalar_select %p307, %s21, 1
      %p309 = scmp.lt.s32.totalorder %s306, 0
      %s310 = scalar_select %p309, %s306, 0
      %s311 = smul.addr %s308, 16
      %s312 = sadd.s32 %s310, %s311
      %s313 = smul.addr %s312, 8
      %s314 = scalar_lea.vmem %s5, %s313
      %s315 = smul.u32 %s23, %s22
      %p316 = scmp.eq.s32.totalorder %s22, 0
      %p317 = scmp.eq.s32.totalorder %s23, 0
      %p318 = pnand %p316, %p317
      %p319 = pneg %p318
      // Predicated region
      $region41: #{preact_bottleneck_forward.15} parent=39 // pred_check
        _
      $region42: #{preact_bottleneck_forward.15} parent=39 // pred_check_branch
        %321 = sbr.rel (%p318) target = $region44
      $region43: #{preact_bottleneck_forward.15} parent=39 // pred_region
        %322 = vst [vmem:[#allocation2] sm:$0xff] 0.0
      $region44: #{preact_bottleneck_forward.15} parent=39 // pred_fallthru
        _
      %v323 = vld [vmem:[%s292] sm:$0xf]
      %v324 = vld [vmem:[%s292 + $0x4] sm:$0xf]
      %v325 = vld [vmem:[%s292 + $0x8] sm:$0xf]
      %v326 = vld [vmem:[%s292 + $0xc] sm:$0xf]
      %v327 = vld [vmem:[%s292 + $0x10] sm:$0xf]
      %v328 = vld [vmem:[%s292 + $0x14] sm:$0xf]
      %v329 = vld [vmem:[%s292 + $0x18] sm:$0xf]
      %v330 = vld [vmem:[%s292 + $0x1c] sm:$0xf]
      %v331 = vunpack.c.l.bf16 %v323
      %v332 = vunpack.c.l.bf16 %v324
      %v333 = vunpack.c.l.bf16 %v325
      %v334 = vunpack.c.l.bf16 %v326
      %v335 = vunpack.c.l.bf16 %v327
      %v336 = vunpack.c.l.bf16 %v328
      %v337 = vunpack.c.l.bf16 %v329
      %v338 = vunpack.c.l.bf16 %v330
      // Predicated region
      $region45: #{preact_bottleneck_forward.15} parent=39 // pred_check
        %p339 = pneg %p316
      $region46: #{preact_bottleneck_forward.15} parent=39 // pred_check_branch
        %341 = sbr.rel (%p339) target = $region48
      $region47: #{preact_bottleneck_forward.15} parent=39 // pred_region
        %v342 = vld [vmem:[#allocation2] sm:$0x1]
        %v343 = vadd.f32 %v331, %v332
        %v344 = vadd.f32 %v343, %v333
        %v345 = vadd.f32 %v344, %v334
        %v346 = vadd.f32 %v345, %v335
        %v347 = vadd.f32 %v346, %v336
        %v348 = vadd.f32 %v347, %v337
        %v349 = vadd.f32 %v348, %v338
        %v350 = vrot.slane %v349, 4
        %v351 = vadd.f32 %v349, %v350
        %v352 = vrot.slane %v351, 2
        %v353 = vadd.f32 %v351, %v352
        %v354 = vrot.slane %v353, 1
        %v355 = vadd.f32 %v353, %v354
        %v356 = vadd.f32 %v342, %v355
        %357 = vst [vmem:[#allocation2] sm:$0x1] %v356
        %v358 = vld [vmem:[#allocation2 + $0x1] sm:$0x1]
        %v359 = vmul.f32 %v331, %v331
        %v360 = vmul.f32 %v332, %v332
        %v361 = vmul.f32 %v333, %v333
        %v362 = vmul.f32 %v334, %v334
        %v363 = vmul.f32 %v335, %v335
        %v364 = vmul.f32 %v336, %v336
        %v365 = vmul.f32 %v337, %v337
        %v366 = vmul.f32 %v338, %v338
        %v367 = vadd.f32 %v359, %v360
        %v368 = vadd.f32 %v367, %v361
        %v369 = vadd.f32 %v368, %v362
        %v370 = vadd.f32 %v369, %v363
        %v371 = vadd.f32 %v370, %v364
        %v372 = vadd.f32 %v371, %v365
        %v373 = vadd.f32 %v372, %v366
        %v374 = vrot.slane %v373, 4
        %v375 = vadd.f32 %v373, %v374
        %v376 = vrot.slane %v375, 2
        %v377 = vadd.f32 %v375, %v376
        %v378 = vrot.slane %v377, 1
        %v379 = vadd.f32 %v377, %v378
        %v380 = vadd.f32 %v358, %v379
        %381 = vst [vmem:[#allocation2 + $0x1] sm:$0x1] %v380
      $region48: #{preact_bottleneck_forward.15} parent=39 // pred_fallthru
        _
      %p382 = scmp.eq.s32.totalorder %s22, 1
      %p383 = pnand %p382, %p317
      %p384 = pneg %p383
      // Predicated region
      $region49: #{preact_bottleneck_forward.15} parent=39 // pred_check
        _
      $region50: #{preact_bottleneck_forward.15} parent=39 // pred_check_branch
        %386 = sbr.rel (%p383) target = $region52
      $region51: #{preact_bottleneck_forward.15} parent=39 // pred_region
        %v387 = vld [vmem:[#allocation2] sm:$0xff]
        %v388 = vld [vmem:[%s4] sm:$0xff]
        %v389 = vld [vmem:[%s4 + $0x8] sm:$0xff]
        %v390 = vld [vmem:[%s4 + $0x10] sm:$0xff]
        %v391 = vld [vmem:[%s4 + $0x18] sm:$0xff]
        %v392 = vld [vmem:[%s4 + $0x20] sm:$0xff]
        %v393 = vld [vmem:[%s4 + $0x28] sm:$0xff]
        %v394 = vld [vmem:[%s4 + $0x30] sm:$0xff]
        %v395 = vld [vmem:[%s4 + $0x38] sm:$0xff]
        %v396 = vld [vmem:[%s4 + $0x40] sm:$0xff]
        %v397 = vld [vmem:[%s4 + $0x48] sm:$0xff]
        %v398 = vld [vmem:[%s4 + $0x50] sm:$0xff]
        %v399 = vld [vmem:[%s4 + $0x58] sm:$0xff]
        %v400 = vld [vmem:[%s4 + $0x60] sm:$0xff]
        %v401 = vld [vmem:[%s4 + $0x68] sm:$0xff]
        %v402 = vld [vmem:[%s4 + $0x70] sm:$0xff]
        %v403 = vld [vmem:[%s4 + $0x78] sm:$0xff]
        %404 = vmatpush.msra.mxu0 %v403
        %405 = vmatpush.msra.mxu0 %v402
        %406 = vmatpush.msra.mxu0 %v401
        %407 = vmatpush.msra.mxu0 %v400
        %408 = vmatpush.msra.mxu0 %v399
        %409 = vmatpush.msra.mxu0 %v398
        %410 = vmatpush.msra.mxu0 %v397
        %411 = vmatpush.msra.mxu0 %v396
        %412 = vmatpush.msra.mxu0 %v395
        %413 = vmatpush.msra.mxu0 %v394
        %414 = vmatpush.msra.mxu0 %v393
        %415 = vmatpush.msra.mxu0 %v392
        %416 = vmatpush.msra.mxu0 %v391
        %417 = vmatpush.msra.mxu0 %v390
        %418 = vmatpush.msra.mxu0 %v389
        %419 = vmatpush.msra.mxu0 %v388
        %420 = vmatmul.f32.gmra.mxu0 %v387
        %v421 = vpop.f32.mrf.mxu0
        %v422 = vadd.f32 0.0, %v421
        %423 = vdwg.mxu0
        %v424 = vmul.f32 %v422, %v422
        %v426 = vrot.slane %v424, 7
        %v428 = vsub.f32 %v422, %v426
        %v429 = vmax.f32 %v428, 0.0
        %v430 = vadd.f32 %v429, 1e-06
        %v431 = vrsqrt.pop %v430
        %v432 = vmul.f32 %v431, %v430
        %v433 = vmul.f32 %v432, %v431
        %v434 = vmul.f32 0.5, %v433
        %v435 = vsub.f32 1.5, %v434
        %v436 = vmul.f32 %v431, %v435
        %vm437 = vweird.f32 %v430
        %vm438 = vweird.f32 %v431
        %vm439 = vmor %vm437, %vm438
        %v440 = vsel %vm439, %v431, %v436
        %v441 = vld [vmem:[%s2] sm:$0x1]
        %v443 = vperm.slane %v441, 0
        %v445 = vmul.f32 %v440, %v443
        %446 = vst [vmem:[#allocation3 - $0x1] sm:$0x2] %v445
        %v447 = vld [vmem:[%s3] sm:$0x1]
        %v449 = vrot.slane %v445, 1
        %v451 = vmul.f32 %v422, %v449
        %v452 = vsub.f32 %v447, %v451
        %453 = vst [vmem:[#allocation3 + $0x1] sm:$0x1] %v452
      $region52: #{preact_bottleneck_forward.15} parent=39 // pred_fallthru
        _
      // Predicated region
      $region53: #{preact_bottleneck_forward.15} parent=39 // pred_check
        %p454 = pneg %p382
      $region54: #{preact_bottleneck_forward.15} parent=39 // pred_check_branch
        %456 = sbr.rel (%p454) target = $region56
      $region55: #{preact_bottleneck_forward.15} parent=39 // pred_region
        %v457 = vld [vmem:[#allocation3] sm:$0x1]
        %v458 = vperm.slane %v457, 0
        %v459 = vmul.f32 %v331, %v458
        %v460 = vmul.f32 %v332, %v458
        %v461 = vmul.f32 %v333, %v458
        %v462 = vmul.f32 %v334, %v458
        %v463 = vmul.f32 %v335, %v458
        %v464 = vmul.f32 %v336, %v458
        %v465 = vmul.f32 %v337, %v458
        %v466 = vmul.f32 %v338, %v458
        %v467 = vld [vmem:[#allocation3 + $0x1] sm:$0x1]
        %v468 = vperm.slane %v467, 0
        %v469 = vadd.f32 %v459, %v468
        %v470 = vadd.f32 %v460, %v468
        %v471 = vadd.f32 %v461, %v468
        %v472 = vadd.f32 %v462, %v468
        %v473 = vadd.f32 %v463, %v468
        %v474 = vadd.f32 %v464, %v468
        %v475 = vadd.f32 %v465, %v468
        %v476 = vadd.f32 %v466, %v468
        %v477 = vld [vmem:[%s303] sm:$0xf]
        %v478 = vld [vmem:[%s303 + $0x4] sm:$0xf]
        %v479 = vld [vmem:[%s303 + $0x8] sm:$0xf]
        %v480 = vld [vmem:[%s303 + $0xc] sm:$0xf]
        %v481 = vld [vmem:[%s303 + $0x10] sm:$0xf]
        %v482 = vld [vmem:[%s303 + $0x14] sm:$0xf]
        %v483 = vld [vmem:[%s303 + $0x18] sm:$0xf]
        %v484 = vld [vmem:[%s303 + $0x1c] sm:$0xf]
        %v485 = vunpack.c.l.bf16 %v477
        %v486 = vunpack.c.l.bf16 %v478
        %v487 = vunpack.c.l.bf16 %v479
        %v488 = vunpack.c.l.bf16 %v480
        %v489 = vunpack.c.l.bf16 %v481
        %v490 = vunpack.c.l.bf16 %v482
        %v491 = vunpack.c.l.bf16 %v483
        %v492 = vunpack.c.l.bf16 %v484
        %v493 = vadd.f32 %v469, %v485
        %v494 = vadd.f32 %v470, %v486
        %v495 = vadd.f32 %v471, %v487
        %v496 = vadd.f32 %v472, %v488
        %v497 = vadd.f32 %v473, %v489
        %v498 = vadd.f32 %v474, %v490
        %v499 = vadd.f32 %v475, %v491
        %v500 = vadd.f32 %v476, %v492
        %v501 = vmax.f32 %v493, 0.0
        %v502 = vmax.f32 %v494, 0.0
        %v503 = vmax.f32 %v495, 0.0
        %v504 = vmax.f32 %v496, 0.0
        %v505 = vmax.f32 %v497, 0.0
        %v506 = vmax.f32 %v498, 0.0
        %v507 = vmax.f32 %v499, 0.0
        %v508 = vmax.f32 %v500, 0.0
        %509 = vxpose.xlu0.b32.start [1/16] %v501, 128
        %510 = vxpose.xlu0.b32.cont [2/16] %v502, 128
        %511 = vxpose.xlu0.b32.cont [3/16] %v503, 128
        %512 = vxpose.xlu0.b32.cont [4/16] %v504, 128
        %513 = vxpose.xlu0.b32.cont [5/16] %v505, 128
        %514 = vxpose.xlu0.b32.cont [6/16] %v506, 128
        %515 = vxpose.xlu0.b32.cont [7/16] %v507, 128
        %516 = vxpose.xlu0.b32.cont [8/16] %v508, 128
        %517 = vxpose.xlu0.b32.cont [9/16] 0.0, 128
        %518 = vxpose.xlu0.b32.cont [10/16] 0.0, 128
        %519 = vxpose.xlu0.b32.cont [11/16] 0.0, 128
        %520 = vxpose.xlu0.b32.cont [12/16] 0.0, 128
        %521 = vxpose.xlu0.b32.cont [13/16] 0.0, 128
        %522 = vxpose.xlu0.b32.cont [14/16] 0.0, 128
        %523 = vxpose.xlu0.b32.cont [15/16] 0.0, 128
        %524 = vxpose.xlu0.b32.end [16/16] 0.0, 128
        %v525 = vpop.trf.xlu0
        %v526 = vpop.trf.xlu0
        %v527 = vpop.trf.xlu0
        %v528 = vpop.trf.xlu0
        %v529 = vpop.trf.xlu0
        %v530 = vpop.trf.xlu0
        %v531 = vpop.trf.xlu0
        %v532 = vpop.trf.xlu0
        %v533 = vpop.trf.xlu0
        %v534 = vpop.trf.xlu0
        %v535 = vpop.trf.xlu0
        %v536 = vpop.trf.xlu0
        %v537 = vpop.trf.xlu0
        %v538 = vpop.trf.xlu0
        %v539 = vpop.trf.xlu0
        %v540 = vpop.trf.xlu0
        %vm541 = vcmask 523264
        %542 = vst.msk [vmem:[%s314] sm:$0xff] %vm541, %v525
        %543 = vst.msk [vmem:[%s314 + $0x8] sm:$0xff] %vm541, %v526
        %544 = vst.msk [vmem:[%s314 + $0x10] sm:$0xff] %vm541, %v527
        %545 = vst.msk [vmem:[%s314 + $0x18] sm:$0xff] %vm541, %v528
        %546 = vst.msk [vmem:[%s314 + $0x20] sm:$0xff] %vm541, %v529
        %547 = vst.msk [vmem:[%s314 + $0x28] sm:$0xff] %vm541, %v530
        %548 = vst.msk [vmem:[%s314 + $0x30] sm:$0xff] %vm541, %v531
        %549 = vst.msk [vmem:[%s314 + $0x38] sm:$0xff] %vm541, %v532
        %550 = vst.msk [vmem:[%s314 + $0x40] sm:$0xff] %vm541, %v533
        %551 = vst.msk [vmem:[%s314 + $0x48] sm:$0xff] %vm541, %v534
        %552 = vst.msk [vmem:[%s314 + $0x50] sm:$0xff] %vm541, %v535
        %553 = vst.msk [vmem:[%s314 + $0x58] sm:$0xff] %vm541, %v536
        %554 = vst.msk [vmem:[%s314 + $0x60] sm:$0xff] %vm541, %v537
        %555 = vst.msk [vmem:[%s314 + $0x68] sm:$0xff] %vm541, %v538
        %556 = vst.msk [vmem:[%s314 + $0x70] sm:$0xff] %vm541, %v539
        %557 = vst.msk [vmem:[%s314 + $0x78] sm:$0xff] %vm541, %v540
      $region56: #{preact_bottleneck_forward.15} parent=39 // pred_fallthru
        _
      %s558 = smul.u32 %s23, %s22
      %p559 = scmp.lt.s32.totalorder %s21, 1
      %s560 = scalar_select %p559, %s21, 1
      %p561 = scmp.lt.s32.totalorder %s558, 0
      %s562 = scalar_select %p561, %s558, 0
      %s563 = smul.addr %s560, 16
      %s564 = sadd.s32 %s562, %s563
      %s565 = smul.addr %s564, 8
      %s566 = scalar_lea.vmem %s5, %s565
      // Predicated region
      $region57: #{preact_bottleneck_forward.15} parent=39 // pred_check
        %p567 = pneg %p178
      $region58: #{preact_bottleneck_forward.15} parent=39 // pred_check_branch
        %569 = sbr.rel (%p567) target = $region60
      $region59: #{preact_bottleneck_forward.15} parent=39 // pred_region
        %s570 = smul.u32 %s23, %s22
      $region60: #{preact_bottleneck_forward.15} parent=39 // pred_fallthru
        _
    $region40: #{preact_bottleneck_forward.15} parent=5 // pred_fallthru
      _
    %p571 = scmp.le.s32.totalorder 2, %s11
    // Predicated region
    $region61: #{preact_bottleneck_forward.15} parent=5 // pred_check
      %p572 = pneg %p571
    $region62: #{preact_bottleneck_forward.15} parent=5 // pred_check_branch
      %574 = sbr.rel (%p572) target = $region64
    $region63: #{preact_bottleneck_forward.15} parent=5 // pred_region
      %s575 = ssub.s32 %s11, 2
      // Predicated region
      $region65: #{preact_bottleneck_forward.15} parent=63 // pred_check
        %p576 = pneg %p184
      $region66: #{preact_bottleneck_forward.15} parent=63 // pred_check_branch
        %578 = sbr.rel (%p576) target = $region68
      $region67: #{preact_bottleneck_forward.15} parent=63 // pred_region
        %s579 = smul.u32 %s26, %s25
        %p580 = scmp.lt.s32.totalorder %s24, 1
        %s581 = scalar_select %p580, %s24, 1
        %p582 = scmp.lt.s32.totalorder %s579, 0
        %s583 = scalar_select %p582, %s579, 0
        %s584 = smul.addr %s581, 16
        %s585 = sadd.s32 %s583, %s584
        %s586 = smul.addr %s585, 8
        %s587 = scalar_lea.vmem %s5, %s586
      $region68: #{preact_bottleneck_forward.15} parent=63 // pred_fallthru
        _
    $region64: #{preact_bottleneck_forward.15} parent=5 // pred_fallthru
      _
  $region6: #{preact_bottleneck_forward.15} parent=0 // loop_footer
    %s15 = sadd.s32 1, %s11
  $region7: #{preact_bottleneck_forward.15} parent=0 // loop_footer_branch
    %10 = sbr.rel target = $region3
  $region8: #{preact_bottleneck_forward.15} parent=0 // loop_exit
    _

</llo_original>
